<compile_context>
chip_gen: v7x
topology: tpu7x:2x2x1
jax: 0.10.0
libtpu: 0.0.40
codegen_flags: <defaults>
</compile_context>

<pallas_src>
import functools

import jax
import jax.numpy as jnp
import numpy as np
from jax import lax
from jax.experimental import pallas as pl
from jax.experimental.pallas import tpu as pltpu

LANES = 128
BN_EPS = 1e-5


def _down_up_kernel(xr_ref, wd_ref, wt_ref, y_ref, st_ref, hp_ref, *,
                    hh, wh, cin2, chp, cop):
    """Fused LeakyReLU -> Conv2d(4,4,s2,p1) -> ReLU -> ConvTranspose2d(4,4,s2,p1).

    xr_ref : [1, hh+1, 2, wh+1, cin2] f32   padded input, column-pair grouped
    wd_ref : [8, cin2, chp]           bf16  down-conv weights (index 2*i + beta)
    wt_ref : [16, chp, cop]           bf16  up-conv weights   (index 4*i + j)
    y_ref  : [1, 4, hh, wh, cop]      f32   pre-BN output, sub-pixel phase layout
    st_ref : [1, 2, cop]              f32   per-sample (sum, sum-of-squares)
    hp_ref : [hh+2, wh+2, chp]        f32   VMEM scratch: zero-padded hidden act
    """
    # ---------------- down path: LeakyReLU(0.2) + 4x4/s2 conv + ReLU --------
    xr = xr_ref[0]                                       # [hh+1, 2, wh+1, cin2]
    xr = jnp.where(xr >= 0, xr, 0.2 * xr)                # LeakyReLU (pad zeros stay 0)
    acc_h = jnp.zeros((hh * wh, chp), jnp.float32)
    for i in range(4):                                    # kernel-row tap
        al, a = i // 2, i % 2
        for be in range(2):                               # column-pair offset
            slab = xr[al:al + hh, a, be:be + wh, :]       # [hh, wh, cin2]
            acc_h += jnp.dot(
                slab.reshape(hh * wh, cin2).astype(jnp.bfloat16),
                wd_ref[2 * i + be],
                preferred_element_type=jnp.float32)
    hidden = jnp.maximum(acc_h, 0.0).reshape(hh, wh, chp)  # fused up-path ReLU

    # zero-padded hidden activation (pad=1) kept entirely in VMEM
    hp_ref[...] = jnp.zeros_like(hp_ref)
    hp_ref[1:hh + 1, 1:wh + 1, :] = hidden

    # ------------ up path: 4x4/s2 transposed conv in sub-pixel phases -------
    s1 = jnp.zeros((1, cop), jnp.float32)
    s2 = jnp.zeros((1, cop), jnp.float32)
    for sh in range(2):
        for sw in range(2):
            acc = jnp.zeros((hh * wh, cop), jnp.float32)
            for du in range(2):
                for dv in range(2):
                    it = (3 - sh) - 2 * du                # kernel-row tap
                    jt = (3 - sw) - 2 * dv                # kernel-col tap
                    slab = hp_ref[sh + du:sh + du + hh, sw + dv:sw + dv + wh, :]
                    acc += jnp.dot(
                        slab.reshape(hh * wh, chp).astype(jnp.bfloat16),
                        wt_ref[4 * it + jt],
                        preferred_element_type=jnp.float32)
            y_ref[0, 2 * sh + sw] = acc.reshape(hh, wh, cop)
            s1 += jnp.sum(acc, axis=0, keepdims=True)
            s2 += jnp.sum(acc * acc, axis=0, keepdims=True)
    st_ref[0, 0:1, :] = s1
    st_ref[0, 1:2, :] = s2


def _bn_kernel(y_ref, scale_ref, shift_ref, o_ref, *, cop):
    # y_ref / o_ref: [1, 4, hh, wh, cop];  scale/shift: [1, cop]
    scale = scale_ref[...].reshape(1, 1, 1, cop)
    shift = shift_ref[...].reshape(1, 1, 1, cop)
    o_ref[0] = y_ref[0] * scale + shift


def unet_block_inner(x, w_down, w_up, gamma, beta):
    """UnetBlock(inner=True) forward. x: [N, Cin, H, W] (NCHW, like PyTorch)."""
    N, cin, H, W = x.shape
    ch = w_down.shape[0]                 # hidden_channel
    cout = w_up.shape[1]                 # out_channel
    assert H % 2 == 0 and W % 2 == 0
    hh, wh = H // 2, W // 2
    cin2 = 2 * cin
    chp = LANES                          # lane-dense padded hidden channels
    cop = LANES                          # lane-dense padded output channels
    assert ch <= chp and cout <= cop

    xf = x.astype(jnp.float32)

    # ---- entry glue: single NCHW->NHWC transpose, spatial pad=1, and group W
    #      into column pairs so the kernel needs no strided slicing ----------
    x_nhwc = jnp.transpose(xf, (0, 2, 3, 1))
    xp = jnp.pad(x_nhwc, ((0, 0), (1, 1), (1, 1), (0, 0)))
    xr = xp.reshape(N, hh + 1, 2, wh + 1, cin2)

    # ---- weight repack (tiny, once per call) --------------------------------
    # Conv2d weight [Ch, Cin, 4, 4] -> [8, 2*Cin, CHP]; entry (2*i+beta) holds
    # rows (b*Cin + ci) = w[co, ci, i, 2*beta + b].
    wd_t = jnp.transpose(w_down.astype(jnp.float32), (2, 3, 1, 0))   # [i,j,ci,co]
    wd_t = wd_t.reshape(4, 2, cin2, ch)
    wd2 = jnp.zeros((4, 2, cin2, chp), jnp.float32).at[..., :ch].set(wd_t)
    wd2 = wd2.reshape(8, cin2, chp).astype(jnp.bfloat16)
    # ConvTranspose2d weight [Ch, Cout, 4, 4] -> [16, CHP, COP], index 4*i + j.
    wt_t = jnp.transpose(w_up.astype(jnp.float32), (2, 3, 0, 1))     # [i,j,ci,co]
    wt16 = jnp.zeros((4, 4, chp, cop), jnp.float32).at[:, :, :ch, :cout].set(wt_t)
    wt16 = wt16.reshape(16, chp, cop).astype(jnp.bfloat16)

    kernel1 = functools.partial(_down_up_kernel, hh=hh, wh=wh, cin2=cin2,
                                chp=chp, cop=cop)
    y_pre, stats = pl.pallas_call(
        kernel1,
        grid=(N,),
        in_specs=[
            pl.BlockSpec((1, hh + 1, 2, wh + 1, cin2),
                         lambda n: (n, 0, 0, 0, 0)),
            pl.BlockSpec((8, cin2, chp), lambda n: (0, 0, 0)),
            pl.BlockSpec((16, chp, cop), lambda n: (0, 0, 0)),
        ],
        out_specs=(
            pl.BlockSpec((1, 4, hh, wh, cop), lambda n: (n, 0, 0, 0, 0)),
            pl.BlockSpec((1, 2, cop), lambda n: (n, 0, 0)),
        ),
        out_shape=(
            jax.ShapeDtypeStruct((N, 4, hh, wh, cop), jnp.float32),
            jax.ShapeDtypeStruct((N, 2, cop), jnp.float32),
        ),
        scratch_shapes=[pltpu.VMEM((hh + 2, wh + 2, chp), jnp.float32)],
        compiler_params=pltpu.CompilerParams(
            dimension_semantics=("parallel",),
            vmem_limit_bytes=32 * 1024 * 1024),
    )(xr, wd2, wt16)

    # ---- BatchNorm2d statistics (training-mode, biased variance) ------------
    count = float(N * H * W)
    ssum = jnp.sum(stats[:, 0, :], axis=0)               # [cop]
    ssq = jnp.sum(stats[:, 1, :], axis=0)                # [cop]
    mean = ssum / count
    var = jnp.maximum(ssq / count - mean * mean, 0.0)
    g = jnp.zeros((cop,), jnp.float32).at[:cout].set(gamma.astype(jnp.float32))
    b = jnp.zeros((cop,), jnp.float32).at[:cout].set(beta.astype(jnp.float32))
    scale = g * lax.rsqrt(var + BN_EPS)
    shift = b - mean * scale

    kernel2 = functools.partial(_bn_kernel, cop=cop)
    y_norm = pl.pallas_call(
        kernel2,
        grid=(N,),
        in_specs=[
            pl.BlockSpec((1, 4, hh, wh, cop), lambda n: (n, 0, 0, 0, 0)),
            pl.BlockSpec((1, cop), lambda n: (0, 0)),
            pl.BlockSpec((1, cop), lambda n: (0, 0)),
        ],
        out_specs=pl.BlockSpec((1, 4, hh, wh, cop), lambda n: (n, 0, 0, 0, 0)),
        out_shape=jax.ShapeDtypeStruct((N, 4, hh, wh, cop), jnp.float32),
        input_output_aliases={0: 0},       # normalize y_pre in place
        compiler_params=pltpu.CompilerParams(
            dimension_semantics=("parallel",),
            vmem_limit_bytes=32 * 1024 * 1024),
    )(y_pre, scale.reshape(1, cop), shift.reshape(1, cop))

    # ---- exit glue: un-shuffle sub-pixel phases, back to NCHW, skip concat --
    y = y_norm.reshape(N, 2, 2, hh, wh, cop)             # [n, sh, sw, r, c, co]
    y = jnp.transpose(y, (0, 5, 3, 1, 4, 2)).reshape(N, cop, H, W)[:, :cout]
    # Literal PyTorch semantics: the in-place LeakyReLU mutates x before
    # torch.cat reads it, so the skip branch carries LeakyReLU(0.2)(x).
    skip = jnp.where(xf >= 0, xf, 0.2 * xf)
    return jnp.concatenate([skip, y], axis=1)


def _reference(x, w_down, w_up, gamma, beta):
    """Pure-JAX reference of the same (literal) PyTorch forward."""
    xf = x.astype(jnp.float32)
    a = jnp.where(xf >= 0, xf, 0.2 * xf)                                 # LeakyReLU
    h = lax.conv_general_dilated(a, w_down, (2, 2), ((1, 1), (1, 1)),
                                 dimension_numbers=("NCHW", "OIHW", "NCHW"))
    h = jnp.maximum(h, 0.0)                                              # ReLU
    k = jnp.transpose(jnp.flip(w_up, (2, 3)), (1, 0, 2, 3))              # [Cout,Ch,4,4]
    y = lax.conv_general_dilated(h, k, (1, 1), ((2, 2), (2, 2)),
                                 lhs_dilation=(2, 2),
                                 dimension_numbers=("NCHW", "OIHW", "NCHW"))
    mean = y.mean(axis=(0, 2, 3), keepdims=True)
    var = ((y - mean) ** 2).mean(axis=(0, 2, 3), keepdims=True)          # biased
    y = (y - mean) * lax.rsqrt(var + BN_EPS)
    y = y * gamma.reshape(1, -1, 1, 1) + beta.reshape(1, -1, 1, 1)
    return jnp.concatenate([a, y], axis=1)                               # in-place skip


if __name__ == "__main__":
    key = jax.random.PRNGKey(0)
    kx, kd, ku, kg, kb = jax.random.split(key, 5)

    # UnetBlock(in_channel=None -> out_channel, out_channel=4, hidden_channel=8,
    #           inner=True, norm_layer=BatchNorm2d)
    N, Cin, H, W = 2, 4, 16, 16
    Ch, Cout = 8, 4

    x = jax.random.normal(kx, (N, Cin, H, W), dtype=jnp.float32)
    w_down = 0.1 * jax.random.normal(kd, (Ch, Cin, 4, 4), dtype=jnp.float32)
    w_up = 0.1 * jax.random.normal(ku, (Ch, Cout, 4, 4), dtype=jnp.float32)
    gamma = 1.0 + 0.1 * jax.random.normal(kg, (Cout,), dtype=jnp.float32)
    beta = 0.1 * jax.random.normal(kb, (Cout,), dtype=jnp.float32)

    fwd = jax.jit(unet_block_inner)
    out = jax.block_until_ready(fwd(x, w_down, w_up, gamma, beta))

    ref = jax.block_until_ready(_reference(x, w_down, w_up, gamma, beta))
    assert out.shape == (N, Cin + Cout, H, W), (out.shape,)
    np.testing.assert_allclose(np.asarray(out), np.asarray(ref),
                               rtol=5e-2, atol=5e-2)
    print("KERNEL_OK")
</pallas_src>

<mosaic_0001>
module attributes {stable_mosaic.version = 11 : i64} {
  func.func @_bn_kernel(%arg0: i32, %arg1: memref<1x4x8x8x128xf32, #tpu.memory_space<vmem>>, %arg2: memref<1x128xf32, #tpu.memory_space<vmem>>, %arg3: memref<1x128xf32, #tpu.memory_space<vmem>>, %arg4: memref<1x4x8x8x128xf32, #tpu.memory_space<vmem>>) attributes {dimension_semantics = [#tpu.dimension_semantics<parallel>], iteration_bounds = array<i64: 2>, scalar_prefetch = 0 : i64, scratch_operands = 0 : i64, tpu.core_type = #tpu.core_type<tc>, window_params = [{transform_indices = @transform_0, window_bounds = array<i64: 1, 4, 8, 8, 128>}, {pipeline_mode = #tpu.pipeline_mode<synchronous>, transform_indices = @transform_1, window_bounds = array<i64: 1, 128>}, {pipeline_mode = #tpu.pipeline_mode<synchronous>, transform_indices = @transform_2, window_bounds = array<i64: 1, 128>}, {transform_indices = @transform_3, window_bounds = array<i64: 1, 4, 8, 8, 128>}]} {
    %c0 = arith.constant 0 : index
    %c0_0 = arith.constant 0 : index
    %0 = vector.load %arg2[%c0, %c0_0] : memref<1x128xf32, #tpu.memory_space<vmem>>, vector<1x128xf32>
    %1 = vector.shape_cast %0 : vector<1x128xf32> to vector<1x1x1x128xf32>
    %c0_1 = arith.constant 0 : index
    %c0_2 = arith.constant 0 : index
    %2 = vector.load %arg3[%c0_1, %c0_2] : memref<1x128xf32, #tpu.memory_space<vmem>>, vector<1x128xf32>
    %3 = vector.shape_cast %2 : vector<1x128xf32> to vector<1x1x1x128xf32>
    %c0_3 = arith.constant 0 : index
    %c0_4 = arith.constant 0 : index
    %c0_5 = arith.constant 0 : index
    %c0_6 = arith.constant 0 : index
    %c0_7 = arith.constant 0 : index
    %4 = vector.load %arg1[%c0_3, %c0_4, %c0_5, %c0_6, %c0_7] : memref<1x4x8x8x128xf32, #tpu.memory_space<vmem>>, vector<1x4x8x8x128xf32>
    %5 = vector.shape_cast %4 : vector<1x4x8x8x128xf32> to vector<4x8x8x128xf32>
    %6 = vector.broadcast %1 : vector<1x1x1x128xf32> to vector<4x8x8x128xf32>
    %7 = arith.mulf %5, %6 : vector<4x8x8x128xf32>
    %8 = vector.broadcast %3 : vector<1x1x1x128xf32> to vector<4x8x8x128xf32>
    %9 = arith.addf %7, %8 : vector<4x8x8x128xf32>
    %c0_8 = arith.constant 0 : index
    %c0_9 = arith.constant 0 : index
    %c0_10 = arith.constant 0 : index
    %c0_11 = arith.constant 0 : index
    %c0_12 = arith.constant 0 : index
    %10 = vector.load %arg4[%c0_8, %c0_9, %c0_10, %c0_11, %c0_12] : memref<1x4x8x8x128xf32, #tpu.memory_space<vmem>>, vector<1x4x8x8x128xf32>
    %11 = vector.shape_cast %10 : vector<1x4x8x8x128xf32> to vector<4x8x8x128xf32>
    %12 = vector.shape_cast %9 : vector<4x8x8x128xf32> to vector<1x4x8x8x128xf32>
    tpu.vector_store %arg4[%c0_8, %c0_9, %c0_10, %c0_11, %c0_12], %12 {strides = array<i32>} : memref<1x4x8x8x128xf32, #tpu.memory_space<vmem>>, vector<1x4x8x8x128xf32>,
    return
  }
  func.func @transform_0(%arg0: i32) -> (i32, i32, i32, i32, i32) {
    %c0_i32 = arith.constant 0 : i32
    %c0_i32_0 = arith.constant 0 : i32
    %c0_i32_1 = arith.constant 0 : i32
    %c0_i32_2 = arith.constant 0 : i32
    %c0_i32_3 = arith.constant 0 : i32
    return %arg0, %c0_i32, %c0_i32_0, %c0_i32_1, %c0_i32_2 : i32, i32, i32, i32, i32
  }
  func.func @transform_1(%arg0: i32) -> (i32, i32) {
    %c0_i32 = arith.constant 0 : i32
    %c0_i32_0 = arith.constant 0 : i32
    %c0_i32_1 = arith.constant 0 : i32
    return %c0_i32, %c0_i32_0 : i32, i32
  }
  func.func @transform_2(%arg0: i32) -> (i32, i32) {
    %c0_i32 = arith.constant 0 : i32
    %c0_i32_0 = arith.constant 0 : i32
    %c0_i32_1 = arith.constant 0 : i32
    return %c0_i32, %c0_i32_0 : i32, i32
  }
  func.func @transform_3(%arg0: i32) -> (i32, i32, i32, i32, i32) {
    %c0_i32 = arith.constant 0 : i32
    %c0_i32_0 = arith.constant 0 : i32
    %c0_i32_1 = arith.constant 0 : i32
    %c0_i32_2 = arith.constant 0 : i32
    %c0_i32_3 = arith.constant 0 : i32
    return %arg0, %c0_i32, %c0_i32_0, %c0_i32_1, %c0_i32_2 : i32, i32, i32, i32, i32
  }
}

module attributes {stable_mosaic.version = 11 : i64} {
  func.func @_down_up_kernel(%arg0: i32, %arg1: memref<1x9x2x9x8xf32, #tpu.memory_space<vmem>>, %arg2: memref<8x8x128xbf16, #tpu.memory_space<vmem>>, %arg3: memref<16x128x128xbf16, #tpu.memory_space<vmem>>, %arg4: memref<1x4x8x8x128xf32, #tpu.memory_space<vmem>>, %arg5: memref<1x2x128xf32, #tpu.memory_space<vmem>>, %arg6: memref<10x10x128xf32, #tpu.memory_space<vmem>>) attributes {dimension_semantics = [#tpu.dimension_semantics<parallel>], iteration_bounds = array<i64: 2>, scalar_prefetch = 0 : i64, scratch_operands = 1 : i64, tpu.core_type = #tpu.core_type<tc>, window_params = [{transform_indices = @transform_0, window_bounds = array<i64: 1, 9, 2, 9, 8>}, {pipeline_mode = #tpu.pipeline_mode<synchronous>, transform_indices = @transform_1, window_bounds = array<i64: 8, 8, 128>}, {pipeline_mode = #tpu.pipeline_mode<synchronous>, transform_indices = @transform_2, window_bounds = array<i64: 16, 128, 128>}, {transform_indices = @transform_3, window_bounds = array<i64: 1, 4, 8, 8, 128>}, {transform_indices = @transform_4, window_bounds = array<i64: 1, 2, 128>}]} {
    %c0 = arith.constant 0 : index
    %c0_0 = arith.constant 0 : index
    %c0_1 = arith.constant 0 : index
    %c0_2 = arith.constant 0 : index
    %c0_3 = arith.constant 0 : index
    %0 = vector.load %arg1[%c0, %c0_0, %c0_1, %c0_2, %c0_3] : memref<1x9x2x9x8xf32, #tpu.memory_space<vmem>>, vector<1x9x2x9x8xf32>
    %1 = vector.shape_cast %0 : vector<1x9x2x9x8xf32> to vector<9x2x9x8xf32>
    %cst = arith.constant 0.000000e+00 : f32
    %2 = vector.broadcast %cst : f32 to vector<9x2x9x8xf32>
    %3 = arith.cmpf oge, %1, %2 : vector<9x2x9x8xf32>
    %cst_4 = arith.constant 2.000000e-01 : f32
    %4 = vector.broadcast %cst_4 : f32 to vector<9x2x9x8xf32>
    %5 = arith.mulf %4, %1 : vector<9x2x9x8xf32>
    %6 = arith.select %3, %1, %5 : vector<9x2x9x8xi1>, vector<9x2x9x8xf32>
    %cst_5 = arith.constant 0.000000e+00 : f32
    %7 = vector.broadcast %cst_5 : f32 to vector<64x128xf32>
    %8 = vector.extract_strided_slice %6 {offsets = [0, 0, 0, 0], sizes = [8, 1, 8, 8], strides = [1, 1, 1, 1]} : vector<9x2x9x8xf32> to vector<8x1x8x8xf32>
    %9 = vector.shape_cast %8 : vector<8x1x8x8xf32> to vector<8x8x8xf32>
    %10 = vector.shape_cast %9 : vector<8x8x8xf32> to vector<64x8xf32>
    %11 = arith.truncf %10 : vector<64x8xf32> to vector<64x8xbf16>
    %c0_6 = arith.constant 0 : index
    %c0_7 = arith.constant 0 : index
    %c0_8 = arith.constant 0 : index
    %12 = vector.load %arg2[%c0_6, %c0_7, %c0_8] : memref<8x8x128xbf16, #tpu.memory_space<vmem>>, vector<1x8x128xbf16>
    %13 = vector.shape_cast %12 : vector<1x8x128xbf16> to vector<8x128xbf16>
    %cst_9 = arith.constant dense<0.000000e+00> : vector<64x128xf32>
    %14 = tpu.matmul %11, %13, %cst_9 {dimension_numbers = #tpu.dot_dimension_numbers<[1], [0], [0], [1], [0, 0, 1, 1], [], []>} : vector<64x8xbf16>, vector<8x128xbf16>, vector<64x128xf32> -> vector<64x128xf32>
    %15 = arith.addf %7, %14 : vector<64x128xf32>
    %16 = vector.extract_strided_slice %6 {offsets = [0, 0, 1, 0], sizes = [8, 1, 8, 8], strides = [1, 1, 1, 1]} : vector<9x2x9x8xf32> to vector<8x1x8x8xf32>
    %17 = vector.shape_cast %16 : vector<8x1x8x8xf32> to vector<8x8x8xf32>
    %18 = vector.shape_cast %17 : vector<8x8x8xf32> to vector<64x8xf32>
    %19 = arith.truncf %18 : vector<64x8xf32> to vector<64x8xbf16>
    %c1 = arith.constant 1 : index
    %c0_10 = arith.constant 0 : index
    %c0_11 = arith.constant 0 : index
    %20 = vector.load %arg2[%c1, %c0_10, %c0_11] : memref<8x8x128xbf16, #tpu.memory_space<vmem>>, vector<1x8x128xbf16>
    %21 = vector.shape_cast %20 : vector<1x8x128xbf16> to vector<8x128xbf16>
    %cst_12 = arith.constant dense<0.000000e+00> : vector<64x128xf32>
    %22 = tpu.matmul %19, %21, %cst_12 {dimension_numbers = #tpu.dot_dimension_numbers<[1], [0], [0], [1], [0, 0, 1, 1], [], []>} : vector<64x8xbf16>, vector<8x128xbf16>, vector<64x128xf32> -> vector<64x128xf32>
    %23 = arith.addf %15, %22 : vector<64x128xf32>
    %24 = vector.extract_strided_slice %6 {offsets = [0, 1, 0, 0], sizes = [8, 1, 8, 8], strides = [1, 1, 1, 1]} : vector<9x2x9x8xf32> to vector<8x1x8x8xf32>
    %25 = vector.shape_cast %24 : vector<8x1x8x8xf32> to vector<8x8x8xf32>
    %26 = vector.shape_cast %25 : vector<8x8x8xf32> to vector<64x8xf32>
    %27 = arith.truncf %26 : vector<64x8xf32> to vector<64x8xbf16>
    %c2 = arith.constant 2 : index
    %c0_13 = arith.constant 0 : index
    %c0_14 = arith.constant 0 : index
    %28 = vector.load %arg2[%c2, %c0_13, %c0_14] : memref<8x8x128xbf16, #tpu.memory_space<vmem>>, vector<1x8x128xbf16>
    %29 = vector.shape_cast %28 : vector<1x8x128xbf16> to vector<8x128xbf16>
    %cst_15 = arith.constant dense<0.000000e+00> : vector<64x128xf32>
    %30 = tpu.matmul %27, %29, %cst_15 {dimension_numbers = #tpu.dot_dimension_numbers<[1], [0], [0], [1], [0, 0, 1, 1], [], []>} : vector<64x8xbf16>, vector<8x128xbf16>, vector<64x128xf32> -> vector<64x128xf32>
    %31 = arith.addf %23, %30 : vector<64x128xf32>
    %32 = vector.extract_strided_slice %6 {offsets = [0, 1, 1, 0], sizes = [8, 1, 8, 8], strides = [1, 1, 1, 1]} : vector<9x2x9x8xf32> to vector<8x1x8x8xf32>
    %33 = vector.shape_cast %32 : vector<8x1x8x8xf32> to vector<8x8x8xf32>
    %34 = vector.shape_cast %33 : vector<8x8x8xf32> to vector<64x8xf32>
    %35 = arith.truncf %34 : vector<64x8xf32> to vector<64x8xbf16>
    %c3 = arith.constant 3 : index
    %c0_16 = arith.constant 0 : index
    %c0_17 = arith.constant 0 : index
    %36 = vector.load %arg2[%c3, %c0_16, %c0_17] : memref<8x8x128xbf16, #tpu.memory_space<vmem>>, vector<1x8x128xbf16>
    %37 = vector.shape_cast %36 : vector<1x8x128xbf16> to vector<8x128xbf16>
    %cst_18 = arith.constant dense<0.000000e+00> : vector<64x128xf32>
    %38 = tpu.matmul %35, %37, %cst_18 {dimension_numbers = #tpu.dot_dimension_numbers<[1], [0], [0], [1], [0, 0, 1, 1], [], []>} : vector<64x8xbf16>, vector<8x128xbf16>, vector<64x128xf32> -> vector<64x128xf32>
    %39 = arith.addf %31, %38 : vector<64x128xf32>
    %40 = vector.extract_strided_slice %6 {offsets = [1, 0, 0, 0], sizes = [8, 1, 8, 8], strides = [1, 1, 1, 1]} : vector<9x2x9x8xf32> to vector<8x1x8x8xf32>
    %41 = vector.shape_cast %40 : vector<8x1x8x8xf32> to vector<8x8x8xf32>
    %42 = vector.shape_cast %41 : vector<8x8x8xf32> to vector<64x8xf32>
    %43 = arith.truncf %42 : vector<64x8xf32> to vector<64x8xbf16>
    %c4 = arith.constant 4 : index
    %c0_19 = arith.constant 0 : index
    %c0_20 = arith.constant 0 : index
    %44 = vector.load %arg2[%c4, %c0_19, %c0_20] : memref<8x8x128xbf16, #tpu.memory_space<vmem>>, vector<1x8x128xbf16>
    %45 = vector.shape_cast %44 : vector<1x8x128xbf16> to vector<8x128xbf16>
    %cst_21 = arith.constant dense<0.000000e+00> : vector<64x128xf32>
    %46 = tpu.matmul %43, %45, %cst_21 {dimension_numbers = #tpu.dot_dimension_numbers<[1], [0], [0], [1], [0, 0, 1, 1], [], []>} : vector<64x8xbf16>, vector<8x128xbf16>, vector<64x128xf32> -> vector<64x128xf32>
    %47 = arith.addf %39, %46 : vector<64x128xf32>
    %48 = vector.extract_strided_slice %6 {offsets = [1, 0, 1, 0], sizes = [8, 1, 8, 8], strides = [1, 1, 1, 1]} : vector<9x2x9x8xf32> to vector<8x1x8x8xf32>
    %49 = vector.shape_cast %48 : vector<8x1x8x8xf32> to vector<8x8x8xf32>
    %50 = vector.shape_cast %49 : vector<8x8x8xf32> to vector<64x8xf32>
    %51 = arith.truncf %50 : vector<64x8xf32> to vector<64x8xbf16>
    %c5 = arith.constant 5 : index
    %c0_22 = arith.constant 0 : index
    %c0_23 = arith.constant 0 : index
    %52 = vector.load %arg2[%c5, %c0_22, %c0_23] : memref<8x8x128xbf16, #tpu.memory_space<vmem>>, vector<1x8x128xbf16>
    %53 = vector.shape_cast %52 : vector<1x8x128xbf16> to vector<8x128xbf16>
    %cst_24 = arith.constant dense<0.000000e+00> : vector<64x128xf32>
    %54 = tpu.matmul %51, %53, %cst_24 {dimension_numbers = #tpu.dot_dimension_numbers<[1], [0], [0], [1], [0, 0, 1, 1], [], []>} : vector<64x8xbf16>, vector<8x128xbf16>, vector<64x128xf32> -> vector<64x128xf32>
    %55 = arith.addf %47, %54 : vector<64x128xf32>
    %56 = vector.extract_strided_slice %6 {offsets = [1, 1, 0, 0], sizes = [8, 1, 8, 8], strides = [1, 1, 1, 1]} : vector<9x2x9x8xf32> to vector<8x1x8x8xf32>
    %57 = vector.shape_cast %56 : vector<8x1x8x8xf32> to vector<8x8x8xf32>
    %58 = vector.shape_cast %57 : vector<8x8x8xf32> to vector<64x8xf32>
    %59 = arith.truncf %58 : vector<64x8xf32> to vector<64x8xbf16>
    %c6 = arith.constant 6 : index
    %c0_25 = arith.constant 0 : index
    %c0_26 = arith.constant 0 : index
    %60 = vector.load %arg2[%c6, %c0_25, %c0_26] : memref<8x8x128xbf16, #tpu.memory_space<vmem>>, vector<1x8x128xbf16>
    %61 = vector.shape_cast %60 : vector<1x8x128xbf16> to vector<8x128xbf16>
    %cst_27 = arith.constant dense<0.000000e+00> : vector<64x128xf32>
    %62 = tpu.matmul %59, %61, %cst_27 {dimension_numbers = #tpu.dot_dimension_numbers<[1], [0], [0], [1], [0, 0, 1, 1], [], []>} : vector<64x8xbf16>, vector<8x128xbf16>, vector<64x128xf32> -> vector<64x128xf32>
    %63 = arith.addf %55, %62 : vector<64x128xf32>
    %64 = vector.extract_strided_slice %6 {offsets = [1, 1, 1, 0], sizes = [8, 1, 8, 8], strides = [1, 1, 1, 1]} : vector<9x2x9x8xf32> to vector<8x1x8x8xf32>
    %65 = vector.shape_cast %64 : vector<8x1x8x8xf32> to vector<8x8x8xf32>
    %66 = vector.shape_cast %65 : vector<8x8x8xf32> to vector<64x8xf32>
    %67 = arith.truncf %66 : vector<64x8xf32> to vector<64x8xbf16>
    %c7 = arith.constant 7 : index
    %c0_28 = arith.constant 0 : index
    %c0_29 = arith.constant 0 : index
    %68 = vector.load %arg2[%c7, %c0_28, %c0_29] : memref<8x8x128xbf16, #tpu.memory_space<vmem>>, vector<1x8x128xbf16>
    %69 = vector.shape_cast %68 : vector<1x8x128xbf16> to vector<8x128xbf16>
    %cst_30 = arith.constant dense<0.000000e+00> : vector<64x128xf32>
    %70 = tpu.matmul %67, %69, %cst_30 {dimension_numbers = #tpu.dot_dimension_numbers<[1], [0], [0], [1], [0, 0, 1, 1], [], []>} : vector<64x8xbf16>, vector<8x128xbf16>, vector<64x128xf32> -> vector<64x128xf32>
    %71 = arith.addf %63, %70 : vector<64x128xf32>
    %cst_31 = arith.constant 0.000000e+00 : f32
    %72 = vector.broadcast %cst_31 : f32 to vector<64x128xf32>
    %73 = arith.maximumf %71, %72 : vector<64x128xf32>
    %74 = vector.shape_cast %73 : vector<64x128xf32> to vector<8x8x128xf32>
    %cst_32 = arith.constant 0.000000e+00 : f32
    %75 = vector.broadcast %cst_32 : f32 to vector<10x10x128xf32>
    %c0_33 = arith.constant 0 : index
    %c0_34 = arith.constant 0 : index
    %c0_35 = arith.constant 0 : index
    %76 = vector.load %arg6[%c0_33, %c0_34, %c0_35] : memref<10x10x128xf32, #tpu.memory_space<vmem>>, vector<10x10x128xf32>
    tpu.vector_store %arg6[%c0_33, %c0_34, %c0_35], %75 {strides = array<i32>} : memref<10x10x128xf32, #tpu.memory_space<vmem>>, vector<10x10x128xf32>,
    %c1_36 = arith.constant 1 : index
    %c1_37 = arith.constant 1 : index
    %c0_38 = arith.constant 0 : index
    %77 = vector.load %arg6[%c1_36, %c1_37, %c0_38] : memref<10x10x128xf32, #tpu.memory_space<vmem>>, vector<8x8x128xf32>
    tpu.vector_store %arg6[%c1_36, %c1_37, %c0_38], %74 {strides = array<i32>} : memref<10x10x128xf32, #tpu.memory_space<vmem>>, vector<8x8x128xf32>,
    %cst_39 = arith.constant 0.000000e+00 : f32
    %78 = vector.broadcast %cst_39 : f32 to vector<1x128xf32>
    %cst_40 = arith.constant 0.000000e+00 : f32
    %79 = vector.broadcast %cst_40 : f32 to vector<1x128xf32>
    %cst_41 = arith.constant 0.000000e+00 : f32
    %80 = vector.broadcast %cst_41 : f32 to vector<64x128xf32>
    %c0_42 = arith.constant 0 : index
    %c0_43 = arith.constant 0 : index
    %c0_44 = arith.constant 0 : index
    %81 = vector.load %arg6[%c0_42, %c0_43, %c0_44] : memref<10x10x128xf32, #tpu.memory_space<vmem>>, vector<8x8x128xf32>
    %82 = vector.shape_cast %81 : vector<8x8x128xf32> to vector<64x128xf32>
    %83 = arith.truncf %82 : vector<64x128xf32> to vector<64x128xbf16>
    %c15 = arith.constant 15 : index
    %c0_45 = arith.constant 0 : index
    %c0_46 = arith.constant 0 : index
    %84 = vector.load %arg3[%c15, %c0_45, %c0_46] : memref<16x128x128xbf16, #tpu.memory_space<vmem>>, vector<1x128x128xbf16>
    %85 = vector.shape_cast %84 : vector<1x128x128xbf16> to vector<128x128xbf16>
    %cst_47 = arith.constant dense<0.000000e+00> : vector<64x128xf32>
    %86 = tpu.matmul %83, %85, %cst_47 {dimension_numbers = #tpu.dot_dimension_numbers<[1], [0], [0], [1], [0, 0, 1, 1], [], []>} : vector<64x128xbf16>, vector<128x128xbf16>, vector<64x128xf32> -> vector<64x128xf32>
    %87 = arith.addf %80, %86 : vector<64x128xf32>
    %c0_48 = arith.constant 0 : index
    %c1_49 = arith.constant 1 : index
    %c0_50 = arith.constant 0 : index
    %88 = vector.load %arg6[%c0_48, %c1_49, %c0_50] : memref<10x10x128xf32, #tpu.memory_space<vmem>>, vector<8x8x128xf32>
    %89 = vector.shape_cast %88 : vector<8x8x128xf32> to vector<64x128xf32>
    %90 = arith.truncf %89 : vector<64x128xf32> to vector<64x128xbf16>
    %c13 = arith.constant 13 : index
    %c0_51 = arith.constant 0 : index
    %c0_52 = arith.constant 0 : index
    %91 = vector.load %arg3[%c13, %c0_51, %c0_52] : memref<16x128x128xbf16, #tpu.memory_space<vmem>>, vector<1x128x128xbf16>
    %92 = vector.shape_cast %91 : vector<1x128x128xbf16> to vector<128x128xbf16>
    %cst_53 = arith.constant dense<0.000000e+00> : vector<64x128xf32>
    %93 = tpu.matmul %90, %92, %cst_53 {dimension_numbers = #tpu.dot_dimension_numbers<[1], [0], [0], [1], [0, 0, 1, 1], [], []>} : vector<64x128xbf16>, vector<128x128xbf16>, vector<64x128xf32> -> vector<64x128xf32>
    %94 = arith.addf %87, %93 : vector<64x128xf32>
    %c1_54 = arith.constant 1 : index
    %c0_55 = arith.constant 0 : index
    %c0_56 = arith.constant 0 : index
    %95 = vector.load %arg6[%c1_54, %c0_55, %c0_56] : memref<10x10x128xf32, #tpu.memory_space<vmem>>, vector<8x8x128xf32>
    %96 = vector.shape_cast %95 : vector<8x8x128xf32> to vector<64x128xf32>
    %97 = arith.truncf %96 : vector<64x128xf32> to vector<64x128xbf16>
    %c7_57 = arith.constant 7 : index
    %c0_58 = arith.constant 0 : index
    %c0_59 = arith.constant 0 : index
    %98 = vector.load %arg3[%c7_57, %c0_58, %c0_59] : memref<16x128x128xbf16, #tpu.memory_space<vmem>>, vector<1x128x128xbf16>
    %99 = vector.shape_cast %98 : vector<1x128x128xbf16> to vector<128x128xbf16>
    %cst_60 = arith.constant dense<0.000000e+00> : vector<64x128xf32>
    %100 = tpu.matmul %97, %99, %cst_60 {dimension_numbers = #tpu.dot_dimension_numbers<[1], [0], [0], [1], [0, 0, 1, 1], [], []>} : vector<64x128xbf16>, vector<128x128xbf16>, vector<64x128xf32> -> vector<64x128xf32>
    %101 = arith.addf %94, %100 : vector<64x128xf32>
    %c1_61 = arith.constant 1 : index
    %c1_62 = arith.constant 1 : index
    %c0_63 = arith.constant 0 : index
    %102 = vector.load %arg6[%c1_61, %c1_62, %c0_63] : memref<10x10x128xf32, #tpu.memory_space<vmem>>, vector<8x8x128xf32>
    %103 = vector.shape_cast %102 : vector<8x8x128xf32> to vector<64x128xf32>
    %104 = arith.truncf %103 : vector<64x128xf32> to vector<64x128xbf16>
    %c5_64 = arith.constant 5 : index
    %c0_65 = arith.constant 0 : index
    %c0_66 = arith.constant 0 : index
    %105 = vector.load %arg3[%c5_64, %c0_65, %c0_66] : memref<16x128x128xbf16, #tpu.memory_space<vmem>>, vector<1x128x128xbf16>
    %106 = vector.shape_cast %105 : vector<1x128x128xbf16> to vector<128x128xbf16>
    %cst_67 = arith.constant dense<0.000000e+00> : vector<64x128xf32>
    %107 = tpu.matmul %104, %106, %cst_67 {dimension_numbers = #tpu.dot_dimension_numbers<[1], [0], [0], [1], [0, 0, 1, 1], [], []>} : vector<64x128xbf16>, vector<128x128xbf16>, vector<64x128xf32> -> vector<64x128xf32>
    %108 = arith.addf %101, %107 : vector<64x128xf32>
    %109 = vector.shape_cast %108 : vector<64x128xf32> to vector<8x8x128xf32>
    %c0_68 = arith.constant 0 : index
    %c0_69 = arith.constant 0 : index
    %c0_70 = arith.constant 0 : index
    %c0_71 = arith.constant 0 : index
    %c0_72 = arith.constant 0 : index
    %110 = vector.load %arg4[%c0_68, %c0_69, %c0_70, %c0_71, %c0_72] : memref<1x4x8x8x128xf32, #tpu.memory_space<vmem>>, vector<1x1x8x8x128xf32>
    %111 = vector.shape_cast %110 : vector<1x1x8x8x128xf32> to vector<8x8x128xf32>
    %112 = vector.shape_cast %109 : vector<8x8x128xf32> to vector<1x1x8x8x128xf32>
    tpu.vector_store %arg4[%c0_68, %c0_69, %c0_70, %c0_71, %c0_72], %112 {strides = array<i32>} : memref<1x4x8x8x128xf32, #tpu.memory_space<vmem>>, vector<1x1x8x8x128xf32>,
    %cst_73 = arith.constant dense<0.000000e+00> : vector<128xf32>
    %113 = vector.multi_reduction <add>, %108, %cst_73 [0] : vector<64x128xf32> to vector<128xf32>
    %114 = vector.shape_cast %113 : vector<128xf32> to vector<1x128xf32>
    %115 = arith.addf %78, %114 : vector<1x128xf32>
    %116 = arith.mulf %108, %108 : vector<64x128xf32>
    %cst_74 = arith.constant dense<0.000000e+00> : vector<128xf32>
    %117 = vector.multi_reduction <add>, %116, %cst_74 [0] : vector<64x128xf32> to vector<128xf32>
    %118 = vector.shape_cast %117 : vector<128xf32> to vector<1x128xf32>
    %119 = arith.addf %79, %118 : vector<1x128xf32>
    %cst_75 = arith.constant 0.000000e+00 : f32
    %120 = vector.broadcast %cst_75 : f32 to vector<64x128xf32>
    %c0_76 = arith.constant 0 : index
    %c1_77 = arith.constant 1 : index
    %c0_78 = arith.constant 0 : index
    %121 = vector.load %arg6[%c0_76, %c1_77, %c0_78] : memref<10x10x128xf32, #tpu.memory_space<vmem>>, vector<8x8x128xf32>
    %122 = vector.shape_cast %121 : vector<8x8x128xf32> to vector<64x128xf32>
    %123 = arith.truncf %122 : vector<64x128xf32> to vector<64x128xbf16>
    %c14 = arith.constant 14 : index
    %c0_79 = arith.constant 0 : index
    %c0_80 = arith.constant 0 : index
    %124 = vector.load %arg3[%c14, %c0_79, %c0_80] : memref<16x128x128xbf16, #tpu.memory_space<vmem>>, vector<1x128x128xbf16>
    %125 = vector.shape_cast %124 : vector<1x128x128xbf16> to vector<128x128xbf16>
    %cst_81 = arith.constant dense<0.000000e+00> : vector<64x128xf32>
    %126 = tpu.matmul %123, %125, %cst_81 {dimension_numbers = #tpu.dot_dimension_numbers<[1], [0], [0], [1], [0, 0, 1, 1], [], []>} : vector<64x128xbf16>, vector<128x128xbf16>, vector<64x128xf32> -> vector<64x128xf32>
    %127 = arith.addf %120, %126 : vector<64x128xf32>
    %c0_82 = arith.constant 0 : index
    %c2_83 = arith.constant 2 : index
    %c0_84 = arith.constant 0 : index
    %128 = vector.load %arg6[%c0_82, %c2_83, %c0_84] : memref<10x10x128xf32, #tpu.memory_space<vmem>>, vector<8x8x128xf32>
    %129 = vector.shape_cast %128 : vector<8x8x128xf32> to vector<64x128xf32>
    %130 = arith.truncf %129 : vector<64x128xf32> to vector<64x128xbf16>
    %c12 = arith.constant 12 : index
    %c0_85 = arith.constant 0 : index
    %c0_86 = arith.constant 0 : index
    %131 = vector.load %arg3[%c12, %c0_85, %c0_86] : memref<16x128x128xbf16, #tpu.memory_space<vmem>>, vector<1x128x128xbf16>
    %132 = vector.shape_cast %131 : vector<1x128x128xbf16> to vector<128x128xbf16>
    %cst_87 = arith.constant dense<0.000000e+00> : vector<64x128xf32>
    %133 = tpu.matmul %130, %132, %cst_87 {dimension_numbers = #tpu.dot_dimension_numbers<[1], [0], [0], [1], [0, 0, 1, 1], [], []>} : vector<64x128xbf16>, vector<128x128xbf16>, vector<64x128xf32> -> vector<64x128xf32>
    %134 = arith.addf %127, %133 : vector<64x128xf32>
    %c1_88 = arith.constant 1 : index
    %c1_89 = arith.constant 1 : index
    %c0_90 = arith.constant 0 : index
    %135 = vector.load %arg6[%c1_88, %c1_89, %c0_90] : memref<10x10x128xf32, #tpu.memory_space<vmem>>, vector<8x8x128xf32>
    %136 = vector.shape_cast %135 : vector<8x8x128xf32> to vector<64x128xf32>
    %137 = arith.truncf %136 : vector<64x128xf32> to vector<64x128xbf16>
    %c6_91 = arith.constant 6 : index
    %c0_92 = arith.constant 0 : index
    %c0_93 = arith.constant 0 : index
    %138 = vector.load %arg3[%c6_91, %c0_92, %c0_93] : memref<16x128x128xbf16, #tpu.memory_space<vmem>>, vector<1x128x128xbf16>
    %139 = vector.shape_cast %138 : vector<1x128x128xbf16> to vector<128x128xbf16>
    %cst_94 = arith.constant dense<0.000000e+00> : vector<64x128xf32>
    %140 = tpu.matmul %137, %139, %cst_94 {dimension_numbers = #tpu.dot_dimension_numbers<[1], [0], [0], [1], [0, 0, 1, 1], [], []>} : vector<64x128xbf16>, vector<128x128xbf16>, vector<64x128xf32> -> vector<64x128xf32>
    %141 = arith.addf %134, %140 : vector<64x128xf32>
    %c1_95 = arith.constant 1 : index
    %c2_96 = arith.constant 2 : index
    %c0_97 = arith.constant 0 : index
    %142 = vector.load %arg6[%c1_95, %c2_96, %c0_97] : memref<10x10x128xf32, #tpu.memory_space<vmem>>, vector<8x8x128xf32>
    %143 = vector.shape_cast %142 : vector<8x8x128xf32> to vector<64x128xf32>
    %144 = arith.truncf %143 : vector<64x128xf32> to vector<64x128xbf16>
    %c4_98 = arith.constant 4 : index
    %c0_99 = arith.constant 0 : index
    %c0_100 = arith.constant 0 : index
    %145 = vector.load %arg3[%c4_98, %c0_99, %c0_100] : memref<16x128x128xbf16, #tpu.memory_space<vmem>>, vector<1x128x128xbf16>
    %146 = vector.shape_cast %145 : vector<1x128x128xbf16> to vector<128x128xbf16>
    %cst_101 = arith.constant dense<0.000000e+00> : vector<64x128xf32>
    %147 = tpu.matmul %144, %146, %cst_101 {dimension_numbers = #tpu.dot_dimension_numbers<[1], [0], [0], [1], [0, 0, 1, 1], [], []>} : vector<64x128xbf16>, vector<128x128xbf16>, vector<64x128xf32> -> vector<64x128xf32>
    %148 = arith.addf %141, %147 : vector<64x128xf32>
    %149 = vector.shape_cast %148 : vector<64x128xf32> to vector<8x8x128xf32>
    %c0_102 = arith.constant 0 : index
    %c1_103 = arith.constant 1 : index
    %c0_104 = arith.constant 0 : index
    %c0_105 = arith.constant 0 : index
    %c0_106 = arith.constant 0 : index
    %150 = vector.load %arg4[%c0_102, %c1_103, %c0_104, %c0_105, %c0_106] : memref<1x4x8x8x128xf32, #tpu.memory_space<vmem>>, vector<1x1x8x8x128xf32>
    %151 = vector.shape_cast %150 : vector<1x1x8x8x128xf32> to vector<8x8x128xf32>
    %152 = vector.shape_cast %149 : vector<8x8x128xf32> to vector<1x1x8x8x128xf32>
    tpu.vector_store %arg4[%c0_102, %c1_103, %c0_104, %c0_105, %c0_106], %152 {strides = array<i32>} : memref<1x4x8x8x128xf32, #tpu.memory_space<vmem>>, vector<1x1x8x8x128xf32>,
    %cst_107 = arith.constant dense<0.000000e+00> : vector<128xf32>
    %153 = vector.multi_reduction <add>, %148, %cst_107 [0] : vector<64x128xf32> to vector<128xf32>
    %154 = vector.shape_cast %153 : vector<128xf32> to vector<1x128xf32>
    %155 = arith.addf %115, %154 : vector<1x128xf32>
    %156 = arith.mulf %148, %148 : vector<64x128xf32>
    %cst_108 = arith.constant dense<0.000000e+00> : vector<128xf32>
    %157 = vector.multi_reduction <add>, %156, %cst_108 [0] : vector<64x128xf32> to vector<128xf32>
    %158 = vector.shape_cast %157 : vector<128xf32> to vector<1x128xf32>
    %159 = arith.addf %119, %158 : vector<1x128xf32>
    %cst_109 = arith.constant 0.000000e+00 : f32
    %160 = vector.broadcast %cst_109 : f32 to vector<64x128xf32>
    %c1_110 = arith.constant 1 : index
    %c0_111 = arith.constant 0 : index
    %c0_112 = arith.constant 0 : index
    %161 = vector.load %arg6[%c1_110, %c0_111, %c0_112] : memref<10x10x128xf32, #tpu.memory_space<vmem>>, vector<8x8x128xf32>
    %162 = vector.shape_cast %161 : vector<8x8x128xf32> to vector<64x128xf32>
    %163 = arith.truncf %162 : vector<64x128xf32> to vector<64x128xbf16>
    %c11 = arith.constant 11 : index
    %c0_113 = arith.constant 0 : index
    %c0_114 = arith.constant 0 : index
    %164 = vector.load %arg3[%c11, %c0_113, %c0_114] : memref<16x128x128xbf16, #tpu.memory_space<vmem>>, vector<1x128x128xbf16>
    %165 = vector.shape_cast %164 : vector<1x128x128xbf16> to vector<128x128xbf16>
    %cst_115 = arith.constant dense<0.000000e+00> : vector<64x128xf32>
    %166 = tpu.matmul %163, %165, %cst_115 {dimension_numbers = #tpu.dot_dimension_numbers<[1], [0], [0], [1], [0, 0, 1, 1], [], []>} : vector<64x128xbf16>, vector<128x128xbf16>, vector<64x128xf32> -> vector<64x128xf32>
    %167 = arith.addf %160, %166 : vector<64x128xf32>
    %c1_116 = arith.constant 1 : index
    %c1_117 = arith.constant 1 : index
    %c0_118 = arith.constant 0 : index
    %168 = vector.load %arg6[%c1_116, %c1_117, %c0_118] : memref<10x10x128xf32, #tpu.memory_space<vmem>>, vector<8x8x128xf32>
    %169 = vector.shape_cast %168 : vector<8x8x128xf32> to vector<64x128xf32>
    %170 = arith.truncf %169 : vector<64x128xf32> to vector<64x128xbf16>
    %c9 = arith.constant 9 : index
    %c0_119 = arith.constant 0 : index
    %c0_120 = arith.constant 0 : index
    %171 = vector.load %arg3[%c9, %c0_119, %c0_120] : memref<16x128x128xbf16, #tpu.memory_space<vmem>>, vector<1x128x128xbf16>
    %172 = vector.shape_cast %171 : vector<1x128x128xbf16> to vector<128x128xbf16>
    %cst_121 = arith.constant dense<0.000000e+00> : vector<64x128xf32>
    %173 = tpu.matmul %170, %172, %cst_121 {dimension_numbers = #tpu.dot_dimension_numbers<[1], [0], [0], [1], [0, 0, 1, 1], [], []>} : vector<64x128xbf16>, vector<128x128xbf16>, vector<64x128xf32> -> vector<64x128xf32>
    %174 = arith.addf %167, %173 : vector<64x128xf32>
    %c2_122 = arith.constant 2 : index
    %c0_123 = arith.constant 0 : index
    %c0_124 = arith.constant 0 : index
    %175 = vector.load %arg6[%c2_122, %c0_123, %c0_124] : memref<10x10x128xf32, #tpu.memory_space<vmem>>, vector<8x8x128xf32>
    %176 = vector.shape_cast %175 : vector<8x8x128xf32> to vector<64x128xf32>
    %177 = arith.truncf %176 : vector<64x128xf32> to vector<64x128xbf16>
    %c3_125 = arith.constant 3 : index
    %c0_126 = arith.constant 0 : index
    %c0_127 = arith.constant 0 : index
    %178 = vector.load %arg3[%c3_125, %c0_126, %c0_127] : memref<16x128x128xbf16, #tpu.memory_space<vmem>>, vector<1x128x128xbf16>
    %179 = vector.shape_cast %178 : vector<1x128x128xbf16> to vector<128x128xbf16>
    %cst_128 = arith.constant dense<0.000000e+00> : vector<64x128xf32>
    %180 = tpu.matmul %177, %179, %cst_128 {dimension_numbers = #tpu.dot_dimension_numbers<[1], [0], [0], [1], [0, 0, 1, 1], [], []>} : vector<64x128xbf16>, vector<128x128xbf16>, vector<64x128xf32> -> vector<64x128xf32>
    %181 = arith.addf %174, %180 : vector<64x128xf32>
    %c2_129 = arith.constant 2 : index
    %c1_130 = arith.constant 1 : index
    %c0_131 = arith.constant 0 : index
    %182 = vector.load %arg6[%c2_129, %c1_130, %c0_131] : memref<10x10x128xf32, #tpu.memory_space<vmem>>, vector<8x8x128xf32>
    %183 = vector.shape_cast %182 : vector<8x8x128xf32> to vector<64x128xf32>
    %184 = arith.truncf %183 : vector<64x128xf32> to vector<64x128xbf16>
    %c1_132 = arith.constant 1 : index
    %c0_133 = arith.constant 0 : index
    %c0_134 = arith.constant 0 : index
    %185 = vector.load %arg3[%c1_132, %c0_133, %c0_134] : memref<16x128x128xbf16, #tpu.memory_space<vmem>>, vector<1x128x128xbf16>
    %186 = vector.shape_cast %185 : vector<1x128x128xbf16> to vector<128x128xbf16>
    %cst_135 = arith.constant dense<0.000000e+00> : vector<64x128xf32>
    %187 = tpu.matmul %184, %186, %cst_135 {dimension_numbers = #tpu.dot_dimension_numbers<[1], [0], [0], [1], [0, 0, 1, 1], [], []>} : vector<64x128xbf16>, vector<128x128xbf16>, vector<64x128xf32> -> vector<64x128xf32>
    %188 = arith.addf %181, %187 : vector<64x128xf32>
    %189 = vector.shape_cast %188 : vector<64x128xf32> to vector<8x8x128xf32>
    %c0_136 = arith.constant 0 : index
    %c2_137 = arith.constant 2 : index
    %c0_138 = arith.constant 0 : index
    %c0_139 = arith.constant 0 : index
    %c0_140 = arith.constant 0 : index
    %190 = vector.load %arg4[%c0_136, %c2_137, %c0_138, %c0_139, %c0_140] : memref<1x4x8x8x128xf32, #tpu.memory_space<vmem>>, vector<1x1x8x8x128xf32>
    %191 = vector.shape_cast %190 : vector<1x1x8x8x128xf32> to vector<8x8x128xf32>
    %192 = vector.shape_cast %189 : vector<8x8x128xf32> to vector<1x1x8x8x128xf32>
    tpu.vector_store %arg4[%c0_136, %c2_137, %c0_138, %c0_139, %c0_140], %192 {strides = array<i32>} : memref<1x4x8x8x128xf32, #tpu.memory_space<vmem>>, vector<1x1x8x8x128xf32>,
    %cst_141 = arith.constant dense<0.000000e+00> : vector<128xf32>
    %193 = vector.multi_reduction <add>, %188, %cst_141 [0] : vector<64x128xf32> to vector<128xf32>
    %194 = vector.shape_cast %193 : vector<128xf32> to vector<1x128xf32>
    %195 = arith.addf %155, %194 : vector<1x128xf32>
    %196 = arith.mulf %188, %188 : vector<64x128xf32>
    %cst_142 = arith.constant dense<0.000000e+00> : vector<128xf32>
    %197 = vector.multi_reduction <add>, %196, %cst_142 [0] : vector<64x128xf32> to vector<128xf32>
    %198 = vector.shape_cast %197 : vector<128xf32> to vector<1x128xf32>
    %199 = arith.addf %159, %198 : vector<1x128xf32>
    %cst_143 = arith.constant 0.000000e+00 : f32
    %200 = vector.broadcast %cst_143 : f32 to vector<64x128xf32>
    %c1_144 = arith.constant 1 : index
    %c1_145 = arith.constant 1 : index
    %c0_146 = arith.constant 0 : index
    %201 = vector.load %arg6[%c1_144, %c1_145, %c0_146] : memref<10x10x128xf32, #tpu.memory_space<vmem>>, vector<8x8x128xf32>
    %202 = vector.shape_cast %201 : vector<8x8x128xf32> to vector<64x128xf32>
    %203 = arith.truncf %202 : vector<64x128xf32> to vector<64x128xbf16>
    %c10 = arith.constant 10 : index
    %c0_147 = arith.constant 0 : index
    %c0_148 = arith.constant 0 : index
    %204 = vector.load %arg3[%c10, %c0_147, %c0_148] : memref<16x128x128xbf16, #tpu.memory_space<vmem>>, vector<1x128x128xbf16>
    %205 = vector.shape_cast %204 : vector<1x128x128xbf16> to vector<128x128xbf16>
    %cst_149 = arith.constant dense<0.000000e+00> : vector<64x128xf32>
    %206 = tpu.matmul %203, %205, %cst_149 {dimension_numbers = #tpu.dot_dimension_numbers<[1], [0], [0], [1], [0, 0, 1, 1], [], []>} : vector<64x128xbf16>, vector<128x128xbf16>, vector<64x128xf32> -> vector<64x128xf32>
    %207 = arith.addf %200, %206 : vector<64x128xf32>
    %c1_150 = arith.constant 1 : index
    %c2_151 = arith.constant 2 : index
    %c0_152 = arith.constant 0 : index
    %208 = vector.load %arg6[%c1_150, %c2_151, %c0_152] : memref<10x10x128xf32, #tpu.memory_space<vmem>>, vector<8x8x128xf32>
    %209 = vector.shape_cast %208 : vector<8x8x128xf32> to vector<64x128xf32>
    %210 = arith.truncf %209 : vector<64x128xf32> to vector<64x128xbf16>
    %c8 = arith.constant 8 : index
    %c0_153 = arith.constant 0 : index
    %c0_154 = arith.constant 0 : index
    %211 = vector.load %arg3[%c8, %c0_153, %c0_154] : memref<16x128x128xbf16, #tpu.memory_space<vmem>>, vector<1x128x128xbf16>
    %212 = vector.shape_cast %211 : vector<1x128x128xbf16> to vector<128x128xbf16>
    %cst_155 = arith.constant dense<0.000000e+00> : vector<64x128xf32>
    %213 = tpu.matmul %210, %212, %cst_155 {dimension_numbers = #tpu.dot_dimension_numbers<[1], [0], [0], [1], [0, 0, 1, 1], [], []>} : vector<64x128xbf16>, vector<128x128xbf16>, vector<64x128xf32> -> vector<64x128xf32>
    %214 = arith.addf %207, %213 : vector<64x128xf32>
    %c2_156 = arith.constant 2 : index
    %c1_157 = arith.constant 1 : index
    %c0_158 = arith.constant 0 : index
    %215 = vector.load %arg6[%c2_156, %c1_157, %c0_158] : memref<10x10x128xf32, #tpu.memory_space<vmem>>, vector<8x8x128xf32>
    %216 = vector.shape_cast %215 : vector<8x8x128xf32> to vector<64x128xf32>
    %217 = arith.truncf %216 : vector<64x128xf32> to vector<64x128xbf16>
    %c2_159 = arith.constant 2 : index
    %c0_160 = arith.constant 0 : index
    %c0_161 = arith.constant 0 : index
    %218 = vector.load %arg3[%c2_159, %c0_160, %c0_161] : memref<16x128x128xbf16, #tpu.memory_space<vmem>>, vector<1x128x128xbf16>
    %219 = vector.shape_cast %218 : vector<1x128x128xbf16> to vector<128x128xbf16>
    %cst_162 = arith.constant dense<0.000000e+00> : vector<64x128xf32>
    %220 = tpu.matmul %217, %219, %cst_162 {dimension_numbers = #tpu.dot_dimension_numbers<[1], [0], [0], [1], [0, 0, 1, 1], [], []>} : vector<64x128xbf16>, vector<128x128xbf16>, vector<64x128xf32> -> vector<64x128xf32>
    %221 = arith.addf %214, %220 : vector<64x128xf32>
    %c2_163 = arith.constant 2 : index
    %c2_164 = arith.constant 2 : index
    %c0_165 = arith.constant 0 : index
    %222 = vector.load %arg6[%c2_163, %c2_164, %c0_165] : memref<10x10x128xf32, #tpu.memory_space<vmem>>, vector<8x8x128xf32>
    %223 = vector.shape_cast %222 : vector<8x8x128xf32> to vector<64x128xf32>
    %224 = arith.truncf %223 : vector<64x128xf32> to vector<64x128xbf16>
    %c0_166 = arith.constant 0 : index
    %c0_167 = arith.constant 0 : index
    %c0_168 = arith.constant 0 : index
    %225 = vector.load %arg3[%c0_166, %c0_167, %c0_168] : memref<16x128x128xbf16, #tpu.memory_space<vmem>>, vector<1x128x128xbf16>
    %226 = vector.shape_cast %225 : vector<1x128x128xbf16> to vector<128x128xbf16>
    %cst_169 = arith.constant dense<0.000000e+00> : vector<64x128xf32>
    %227 = tpu.matmul %224, %226, %cst_169 {dimension_numbers = #tpu.dot_dimension_numbers<[1], [0], [0], [1], [0, 0, 1, 1], [], []>} : vector<64x128xbf16>, vector<128x128xbf16>, vector<64x128xf32> -> vector<64x128xf32>
    %228 = arith.addf %221, %227 : vector<64x128xf32>
    %229 = vector.shape_cast %228 : vector<64x128xf32> to vector<8x8x128xf32>
    %c0_170 = arith.constant 0 : index
    %c3_171 = arith.constant 3 : index
    %c0_172 = arith.constant 0 : index
    %c0_173 = arith.constant 0 : index
    %c0_174 = arith.constant 0 : index
    %230 = vector.load %arg4[%c0_170, %c3_171, %c0_172, %c0_173, %c0_174] : memref<1x4x8x8x128xf32, #tpu.memory_space<vmem>>, vector<1x1x8x8x128xf32>
    %231 = vector.shape_cast %230 : vector<1x1x8x8x128xf32> to vector<8x8x128xf32>
    %232 = vector.shape_cast %229 : vector<8x8x128xf32> to vector<1x1x8x8x128xf32>
    tpu.vector_store %arg4[%c0_170, %c3_171, %c0_172, %c0_173, %c0_174], %232 {strides = array<i32>} : memref<1x4x8x8x128xf32, #tpu.memory_space<vmem>>, vector<1x1x8x8x128xf32>,
    %cst_175 = arith.constant dense<0.000000e+00> : vector<128xf32>
    %233 = vector.multi_reduction <add>, %228, %cst_175 [0] : vector<64x128xf32> to vector<128xf32>
    %234 = vector.shape_cast %233 : vector<128xf32> to vector<1x128xf32>
    %235 = arith.addf %195, %234 : vector<1x128xf32>
    %236 = arith.mulf %228, %228 : vector<64x128xf32>
    %cst_176 = arith.constant dense<0.000000e+00> : vector<128xf32>
    %237 = vector.multi_reduction <add>, %236, %cst_176 [0] : vector<64x128xf32> to vector<128xf32>
    %238 = vector.shape_cast %237 : vector<128xf32> to vector<1x128xf32>
    %239 = arith.addf %199, %238 : vector<1x128xf32>
    %c0_177 = arith.constant 0 : index
    %c0_178 = arith.constant 0 : index
    %c0_179 = arith.constant 0 : index
    %240 = vector.load %arg5[%c0_177, %c0_178, %c0_179] : memref<1x2x128xf32, #tpu.memory_space<vmem>>, vector<1x1x128xf32>
    %241 = vector.shape_cast %240 : vector<1x1x128xf32> to vector<1x128xf32>
    %242 = vector.shape_cast %235 : vector<1x128xf32> to vector<1x1x128xf32>
    tpu.vector_store %arg5[%c0_177, %c0_178, %c0_179], %242 {strides = array<i32>} : memref<1x2x128xf32, #tpu.memory_space<vmem>>, vector<1x1x128xf32>,
    %c0_180 = arith.constant 0 : index
    %c1_181 = arith.constant 1 : index
    %c0_182 = arith.constant 0 : index
    %243 = vector.load %arg5[%c0_180, %c1_181, %c0_182] : memref<1x2x128xf32, #tpu.memory_space<vmem>>, vector<1x1x128xf32>
    %244 = vector.shape_cast %243 : vector<1x1x128xf32> to vector<1x128xf32>
    %245 = vector.shape_cast %239 : vector<1x128xf32> to vector<1x1x128xf32>
    tpu.vector_store %arg5[%c0_180, %c1_181, %c0_182], %245 {strides = array<i32>} : memref<1x2x128xf32, #tpu.memory_space<vmem>>, vector<1x1x128xf32>,
    return
  }
  func.func @transform_0(%arg0: i32) -> (i32, i32, i32, i32, i32) {
    %c0_i32 = arith.constant 0 : i32
    %c0_i32_0 = arith.constant 0 : i32
    %c0_i32_1 = arith.constant 0 : i32
    %c0_i32_2 = arith.constant 0 : i32
    %c0_i32_3 = arith.constant 0 : i32
    return %arg0, %c0_i32, %c0_i32_0, %c0_i32_1, %c0_i32_2 : i32, i32, i32, i32, i32
  }
  func.func @transform_1(%arg0: i32) -> (i32, i32, i32) {
    %c0_i32 = arith.constant 0 : i32
    %c0_i32_0 = arith.constant 0 : i32
    %c0_i32_1 = arith.constant 0 : i32
    %c0_i32_2 = arith.constant 0 : i32
    return %c0_i32, %c0_i32_0, %c0_i32_1 : i32, i32, i32
  }
  func.func @transform_2(%arg0: i32) -> (i32, i32, i32) {
    %c0_i32 = arith.constant 0 : i32
    %c0_i32_0 = arith.constant 0 : i32
    %c0_i32_1 = arith.constant 0 : i32
    %c0_i32_2 = arith.constant 0 : i32
    return %c0_i32, %c0_i32_0, %c0_i32_1 : i32, i32, i32
  }
  func.func @transform_3(%arg0: i32) -> (i32, i32, i32, i32, i32) {
    %c0_i32 = arith.constant 0 : i32
    %c0_i32_0 = arith.constant 0 : i32
    %c0_i32_1 = arith.constant 0 : i32
    %c0_i32_2 = arith.constant 0 : i32
    %c0_i32_3 = arith.constant 0 : i32
    return %arg0, %c0_i32, %c0_i32_0, %c0_i32_1, %c0_i32_2 : i32, i32, i32, i32, i32
  }
  func.func @transform_4(%arg0: i32) -> (i32, i32, i32) {
    %c0_i32 = arith.constant 0 : i32
    %c0_i32_0 = arith.constant 0 : i32
    %c0_i32_1 = arith.constant 0 : i32
    return %arg0, %c0_i32, %c0_i32_0 : i32, i32, i32
  }
}

</mosaic_0001>

<llo_original>
// kernel: unet_block_inner.3
$region0: #{unet_block_inner.3}
  #allocation0 [shape = 'u32[]', space=smem, size = 0x4, offset = 0x4, fixed_abs, tag = 'smem constant byte address 0x4 - core index']
  #allocation1 [shape = 'u32[144,128]{1,0:T(1,128)}', space=vmem, size = 0x12000, scoped, tag = 'internal scratch']
  %s0 = inlined_call_operand.vmem [shape: f32[2,4,8,8,128], index: 0, kind: input, shape index: {}, may-alias: {0,3}]
  %s1 = inlined_call_operand.vmem [shape: f32[1,128], index: 1, kind: input, shape index: {}]
  %s2 = inlined_call_operand.vmem [shape: f32[1,128], index: 2, kind: input, shape index: {}]
  %s3 = inlined_call_operand.vmem [shape: f32[2,4,8,8,128], index: 3, kind: output, shape index: {}, may-alias: {0,3}]
  %s4 = sld [smem:[#allocation0]]
  $region45: #{unet_block_inner.3} parent=0
    _
  %s6 = ssub.s32 1, %s4
  %s7 = scalar_select 0, %s6, %s4
  loop: start=0, step=1, limit=4
  $region2: #{unet_block_inner.3} parent=0 // loop_pre_header
    _
  $region3: #{unet_block_inner.3} parent=0 // loop_header
    %s9 = sphi 0, %s13
    %p10 = scmp.ge.s32.totalorder %s9, 4
    %s19 = sphi 0, %s21
    %s22 = sphi 0, %s19
    %s23 = sphi 0, %s22
    %s39 = sphi 0, %s23
    %s43 = sphi 0, %s43
    %s45 = sphi 0, %s43
    %s46 = sphi 0, %s45
    %s60 = sphi 0, %s46
    %s64 = sphi 0, %s64
    %s66 = sphi 0, %s64
    %s67 = sphi 0, %s66
    %s81 = sphi 0, %s67
    %s87 = sphi 0, %s89
    %s90 = sphi 0, %s87
    %s91 = sphi 0, %s90
    %s107 = sphi 0, %s91
  $region4: #{unet_block_inner.3} parent=0 // loop_header_branch
    %12 = sbr.rel (%p10) target = $region8
  $region5: #{unet_block_inner.3} parent=0 // loop_body
    %s14 = ssub.s32 %s9, 1
    %s15 = ssub.s32 %s9, 2
    %s16 = sadd.s32 %s9, 1
    %s17 = ssub.s32 %s9, %s16
    %p18 = scmp.eq.s32.totalorder %s17, 0
    %s20 = sadd.s32 %s19, 1
    %s21 = scalar_select %p18, %s19, %s20
    %p24 = pneg %p18
    %p25 = scmp.eq.s32.totalorder %s9, 1
    %p26 = por %p24, %p25
    %p27 = scmp.ne.s32.totalorder %s19, %s22
    %p28 = scmp.eq.s32.totalorder %s9, 0
    %p29 = por %p27, %p28
    %p30 = scmp.ne.s32.totalorder %s19, %s22
    %p31 = scmp.eq.s32.totalorder %s14, 1
    %p32 = por %p30, %p31
    %p33 = scmp.ne.s32.totalorder %s22, %s23
    %p34 = scmp.eq.s32.totalorder %s14, 0
    %p35 = por %p33, %p34
    %p36 = scmp.ne.s32.totalorder %s22, %s23
    %p37 = scmp.eq.s32.totalorder %s15, 1
    %p38 = por %p36, %p37
    %p40 = scmp.ne.s32.totalorder %s23, %s39
    %p41 = scmp.eq.s32.totalorder %s15, 0
    %p42 = por %p40, %p41
    %s44 = sadd.s32 %s43, 1
    %p47 = scmp.eq.s32.totalorder %s9, 1
    %p48 = scmp.ne.s32.totalorder %s43, %s45
    %p49 = scmp.eq.s32.totalorder %s9, 0
    %p50 = por %p48, %p49
    %p51 = scmp.ne.s32.totalorder %s43, %s45
    %p52 = scmp.eq.s32.totalorder %s14, 1
    %p53 = por %p51, %p52
    %p54 = scmp.ne.s32.totalorder %s45, %s46
    %p55 = scmp.eq.s32.totalorder %s14, 0
    %p56 = por %p54, %p55
    %p57 = scmp.ne.s32.totalorder %s45, %s46
    %p58 = scmp.eq.s32.totalorder %s15, 1
    %p59 = por %p57, %p58
    %p61 = scmp.ne.s32.totalorder %s46, %s60
    %p62 = scmp.eq.s32.totalorder %s15, 0
    %p63 = por %p61, %p62
    %s65 = sadd.s32 %s64, 1
    %p68 = scmp.eq.s32.totalorder %s9, 1
    %p69 = scmp.ne.s32.totalorder %s64, %s66
    %p70 = scmp.eq.s32.totalorder %s9, 0
    %p71 = por %p69, %p70
    %p72 = scmp.ne.s32.totalorder %s64, %s66
    %p73 = scmp.eq.s32.totalorder %s14, 1
    %p74 = por %p72, %p73
    %p75 = scmp.ne.s32.totalorder %s66, %s67
    %p76 = scmp.eq.s32.totalorder %s14, 0
    %p77 = por %p75, %p76
    %p78 = scmp.ne.s32.totalorder %s66, %s67
    %p79 = scmp.eq.s32.totalorder %s15, 1
    %p80 = por %p78, %p79
    %p82 = scmp.ne.s32.totalorder %s67, %s81
    %p83 = scmp.eq.s32.totalorder %s15, 0
    %p84 = por %p82, %p83
    %s85 = ssub.s32 %s9, %s16
    %p86 = scmp.eq.s32.totalorder %s85, 0
    %s88 = sadd.s32 %s87, 1
    %s89 = scalar_select %p86, %s87, %s88
    %p92 = pneg %p86
    %p93 = scmp.eq.s32.totalorder %s9, 1
    %p94 = por %p92, %p93
    %p95 = scmp.ne.s32.totalorder %s87, %s90
    %p96 = scmp.eq.s32.totalorder %s9, 0
    %p97 = por %p95, %p96
    %p98 = scmp.ne.s32.totalorder %s87, %s90
    %p99 = scmp.eq.s32.totalorder %s14, 1
    %p100 = por %p98, %p99
    %p101 = scmp.ne.s32.totalorder %s90, %s91
    %p102 = scmp.eq.s32.totalorder %s14, 0
    %p103 = por %p101, %p102
    %p104 = scmp.ne.s32.totalorder %s90, %s91
    %p105 = scmp.eq.s32.totalorder %s15, 1
    %p106 = por %p104, %p105
    %p108 = scmp.ne.s32.totalorder %s91, %s107
    %p109 = scmp.eq.s32.totalorder %s15, 0
    %p110 = por %p108, %p109
    %p111 = scmp.le.s32.totalorder 1, %s9
    %p112 = scmp.lt.s32.totalorder %s9, 3
    %p113 = pnand %p111, %p112
    %p114 = pneg %p113
    // Predicated region
    $region9: #{unet_block_inner.3} parent=5 // pred_check
      _
    $region10: #{unet_block_inner.3} parent=5 // pred_check_branch
      %116 = sbr.rel (%p113) target = $region12
    $region11: #{unet_block_inner.3} parent=5 // pred_region
      %s117 = ssub.s32 %s9, 1
      // Predicated region
      $region13: #{unet_block_inner.3} parent=11 // pred_check
        %p118 = pneg %p56
      $region14: #{unet_block_inner.3} parent=11 // pred_check_branch
        %120 = sbr.rel (%p118) target = $region16
      $region15: #{unet_block_inner.3} parent=11 // pred_region
        _
      $region16: #{unet_block_inner.3} parent=11 // pred_fallthru
        _
      // Predicated region
      $region17: #{unet_block_inner.3} parent=11 // pred_check
        %p121 = pneg %p77
      $region18: #{unet_block_inner.3} parent=11 // pred_check_branch
        %123 = sbr.rel (%p121) target = $region20
      $region19: #{unet_block_inner.3} parent=11 // pred_region
        _
      $region20: #{unet_block_inner.3} parent=11 // pred_fallthru
        _
    $region12: #{unet_block_inner.3} parent=5 // pred_fallthru
      _
    %p124 = scmp.lt.s32.totalorder %s9, 2
    // Predicated region
    $region21: #{unet_block_inner.3} parent=5 // pred_check
      %p125 = pneg %p124
    $region22: #{unet_block_inner.3} parent=5 // pred_check_branch
      %127 = sbr.rel (%p125) target = $region24
    $region23: #{unet_block_inner.3} parent=5 // pred_region
      // Predicated region
      $region25: #{unet_block_inner.3} parent=23 // pred_check
        %p128 = pneg %p29
      $region26: #{unet_block_inner.3} parent=23 // pred_check_branch
        %130 = sbr.rel (%p128) target = $region28
      $region27: #{unet_block_inner.3} parent=23 // pred_region
        %p131 = scmp.lt.s32.totalorder %s9, 1
        %s132 = scalar_select %p131, %s9, 1
        %s133 = smul.addr %s132, 32
        %s134 = smul.addr %s133, 8
        %s135 = scalar_lea.vmem %s0, %s134
      $region28: #{unet_block_inner.3} parent=23 // pred_fallthru
        _
    $region24: #{unet_block_inner.3} parent=5 // pred_fallthru
      _
    %p136 = scmp.le.s32.totalorder 1, %s9
    %p137 = scmp.lt.s32.totalorder %s9, 3
    %p138 = pnand %p136, %p137
    %p139 = pneg %p138
    // Predicated region
    $region29: #{unet_block_inner.3} parent=5 // pred_check
      _
    $region30: #{unet_block_inner.3} parent=5 // pred_check_branch
      %141 = sbr.rel (%p138) target = $region32
    $region31: #{unet_block_inner.3} parent=5 // pred_region
      %s142 = ssub.s32 %s9, 1
      %p143 = scmp.lt.s32.totalorder %s14, 1
      %s144 = scalar_select %p143, %s14, 1
      %s145 = smul.addr %s144, 32
      %s146 = smul.addr %s145, 8
      %s147 = scalar_lea.vmem %s0, %s146
      %p148 = pneg %p35
      %p149 = pneg %p32
      %p150 = pneg %p56
      %p151 = pneg %p53
      %p152 = pneg %p77
      %p153 = pneg %p74
      %p154 = pneg %p103
      %p155 = pneg %p100
      %p156 = scmp.lt.s32.totalorder %s14, 1
      %s157 = scalar_select %p156, %s14, 1
      %s158 = smul.addr %s157, 32
      %s159 = smul.addr %s158, 8
      %s160 = scalar_lea.vmem %s3, %s159
      %p161 = scmp.lt.s32.totalorder %s14, 1
      %s162 = scalar_select %p161, %s14, 1
      %s163 = smul.addr %s162, 32
      %s164 = smul.addr %s163, 8
      %s165 = scalar_lea.vmem %s0, %s164
      %p166 = scmp.lt.s32.totalorder %s14, 1
      %s167 = scalar_select %p166, %s14, 1
      %s168 = smul.addr %s167, 32
      %s169 = smul.addr %s168, 8
      %s170 = scalar_lea.vmem %s3, %s169
      %v171 = vld [vmem:[%s1] sm:$0x1]
      %v172 = vld [vmem:[%s2] sm:$0x1]
      %v173 = vld [vmem:[%s165] sm:$0xff]
      %v174 = vld [vmem:[%s165 + $0x8] sm:$0xff]
      %v175 = vld [vmem:[%s165 + $0x10] sm:$0xff]
      %v176 = vld [vmem:[%s165 + $0x18] sm:$0xff]
      %v177 = vld [vmem:[%s165 + $0x20] sm:$0xff]
      %v178 = vld [vmem:[%s165 + $0x28] sm:$0xff]
      %v179 = vld [vmem:[%s165 + $0x30] sm:$0xff]
      %v180 = vld [vmem:[%s165 + $0x38] sm:$0xff]
      %v181 = vld [vmem:[%s165 + $0x40] sm:$0xff]
      %v182 = vld [vmem:[%s165 + $0x48] sm:$0xff]
      %v183 = vld [vmem:[%s165 + $0x50] sm:$0xff]
      %v184 = vld [vmem:[%s165 + $0x58] sm:$0xff]
      %v185 = vld [vmem:[%s165 + $0x60] sm:$0xff]
      %v186 = vld [vmem:[%s165 + $0x68] sm:$0xff]
      %v187 = vld [vmem:[%s165 + $0x70] sm:$0xff]
      %v188 = vld [vmem:[%s165 + $0x78] sm:$0xff]
      %v189 = vld [vmem:[%s165 + $0x80] sm:$0xff]
      %v190 = vld [vmem:[%s165 + $0x88] sm:$0xff]
      %v191 = vld [vmem:[%s165 + $0x90] sm:$0xff]
      %v192 = vld [vmem:[%s165 + $0x98] sm:$0xff]
      %v193 = vld [vmem:[%s165 + $0xa0] sm:$0xff]
      %v194 = vld [vmem:[%s165 + $0xa8] sm:$0xff]
      %v195 = vld [vmem:[%s165 + $0xb0] sm:$0xff]
      %v196 = vld [vmem:[%s165 + $0xb8] sm:$0xff]
      %v197 = vld [vmem:[%s165 + $0xc0] sm:$0xff]
      %v198 = vld [vmem:[%s165 + $0xc8] sm:$0xff]
      %v199 = vld [vmem:[%s165 + $0xd0] sm:$0xff]
      %v200 = vld [vmem:[%s165 + $0xd8] sm:$0xff]
      %v201 = vld [vmem:[%s165 + $0xe0] sm:$0xff]
      %v202 = vld [vmem:[%s165 + $0xe8] sm:$0xff]
      %v203 = vld [vmem:[%s165 + $0xf0] sm:$0xff]
      %v204 = vld [vmem:[%s165 + $0xf8] sm:$0xff]
      %v206 = vlaneseq
      %v207 = vshrl.u32 %v206, 7
      %v208 = vsub.s32 0, %v207
      %v209 = vrot.slane %v171, %v208
      %v211 = vmul.f32 %v173, %v209
      %v212 = vmul.f32 %v174, %v209
      %v213 = vmul.f32 %v175, %v209
      %v214 = vmul.f32 %v176, %v209
      %v215 = vmul.f32 %v177, %v209
      %v216 = vmul.f32 %v178, %v209
      %v217 = vmul.f32 %v179, %v209
      %v218 = vmul.f32 %v180, %v209
      %v219 = vmul.f32 %v181, %v209
      %v220 = vmul.f32 %v182, %v209
      %v221 = vmul.f32 %v183, %v209
      %v222 = vmul.f32 %v184, %v209
      %v223 = vmul.f32 %v185, %v209
      %v224 = vmul.f32 %v186, %v209
      %v225 = vmul.f32 %v187, %v209
      %v226 = vmul.f32 %v188, %v209
      %v227 = vmul.f32 %v189, %v209
      %v228 = vmul.f32 %v190, %v209
      %v229 = vmul.f32 %v191, %v209
      %v230 = vmul.f32 %v192, %v209
      %v231 = vmul.f32 %v193, %v209
      %v232 = vmul.f32 %v194, %v209
      %v233 = vmul.f32 %v195, %v209
      %v234 = vmul.f32 %v196, %v209
      %v235 = vmul.f32 %v197, %v209
      %v236 = vmul.f32 %v198, %v209
      %v237 = vmul.f32 %v199, %v209
      %v238 = vmul.f32 %v200, %v209
      %v239 = vmul.f32 %v201, %v209
      %v240 = vmul.f32 %v202, %v209
      %v241 = vmul.f32 %v203, %v209
      %v242 = vmul.f32 %v204, %v209
      %v244 = vlaneseq
      %v245 = vshrl.u32 %v244, 7
      %v246 = vsub.s32 0, %v245
      %v247 = vrot.slane %v172, %v246
      %v249 = vadd.f32 %v211, %v247
      %v250 = vadd.f32 %v212, %v247
      %v251 = vadd.f32 %v213, %v247
      %v252 = vadd.f32 %v214, %v247
      %v253 = vadd.f32 %v215, %v247
      %v254 = vadd.f32 %v216, %v247
      %v255 = vadd.f32 %v217, %v247
      %v256 = vadd.f32 %v218, %v247
      %v257 = vadd.f32 %v219, %v247
      %v258 = vadd.f32 %v220, %v247
      %v259 = vadd.f32 %v221, %v247
      %v260 = vadd.f32 %v222, %v247
      %v261 = vadd.f32 %v223, %v247
      %v262 = vadd.f32 %v224, %v247
      %v263 = vadd.f32 %v225, %v247
      %v264 = vadd.f32 %v226, %v247
      %v265 = vadd.f32 %v227, %v247
      %v266 = vadd.f32 %v228, %v247
      %v267 = vadd.f32 %v229, %v247
      %v268 = vadd.f32 %v230, %v247
      %v269 = vadd.f32 %v231, %v247
      %v270 = vadd.f32 %v232, %v247
      %v271 = vadd.f32 %v233, %v247
      %v272 = vadd.f32 %v234, %v247
      %v273 = vadd.f32 %v235, %v247
      %v274 = vadd.f32 %v236, %v247
      %v275 = vadd.f32 %v237, %v247
      %v276 = vadd.f32 %v238, %v247
      %v277 = vadd.f32 %v239, %v247
      %v278 = vadd.f32 %v240, %v247
      %v279 = vadd.f32 %v241, %v247
      %v280 = vadd.f32 %v242, %v247
      %281 = vst [vmem:[%s170] sm:$0xff] %v249
      %282 = vst [vmem:[%s170 + $0x8] sm:$0xff] %v250
      %283 = vst [vmem:[%s170 + $0x10] sm:$0xff] %v251
      %284 = vst [vmem:[%s170 + $0x18] sm:$0xff] %v252
      %285 = vst [vmem:[%s170 + $0x20] sm:$0xff] %v253
      %286 = vst [vmem:[%s170 + $0x28] sm:$0xff] %v254
      %287 = vst [vmem:[%s170 + $0x30] sm:$0xff] %v255
      %288 = vst [vmem:[%s170 + $0x38] sm:$0xff] %v256
      %289 = vst [vmem:[%s170 + $0x40] sm:$0xff] %v257
      %290 = vst [vmem:[%s170 + $0x48] sm:$0xff] %v258
      %291 = vst [vmem:[%s170 + $0x50] sm:$0xff] %v259
      %292 = vst [vmem:[%s170 + $0x58] sm:$0xff] %v260
      %293 = vst [vmem:[%s170 + $0x60] sm:$0xff] %v261
      %294 = vst [vmem:[%s170 + $0x68] sm:$0xff] %v262
      %295 = vst [vmem:[%s170 + $0x70] sm:$0xff] %v263
      %296 = vst [vmem:[%s170 + $0x78] sm:$0xff] %v264
      %297 = vst [vmem:[%s170 + $0x80] sm:$0xff] %v265
      %298 = vst [vmem:[%s170 + $0x88] sm:$0xff] %v266
      %299 = vst [vmem:[%s170 + $0x90] sm:$0xff] %v267
      %300 = vst [vmem:[%s170 + $0x98] sm:$0xff] %v268
      %301 = vst [vmem:[%s170 + $0xa0] sm:$0xff] %v269
      %302 = vst [vmem:[%s170 + $0xa8] sm:$0xff] %v270
      %303 = vst [vmem:[%s170 + $0xb0] sm:$0xff] %v271
      %304 = vst [vmem:[%s170 + $0xb8] sm:$0xff] %v272
      %305 = vst [vmem:[%s170 + $0xc0] sm:$0xff] %v273
      %306 = vst [vmem:[%s170 + $0xc8] sm:$0xff] %v274
      %307 = vst [vmem:[%s170 + $0xd0] sm:$0xff] %v275
      %308 = vst [vmem:[%s170 + $0xd8] sm:$0xff] %v276
      %309 = vst [vmem:[%s170 + $0xe0] sm:$0xff] %v277
      %310 = vst [vmem:[%s170 + $0xe8] sm:$0xff] %v278
      %311 = vst [vmem:[%s170 + $0xf0] sm:$0xff] %v279
      %312 = vst [vmem:[%s170 + $0xf8] sm:$0xff] %v280
      %p313 = scmp.lt.s32.totalorder %s14, 1
      %s314 = scalar_select %p313, %s14, 1
      %s315 = smul.addr %s314, 32
      %s316 = smul.addr %s315, 8
      %s317 = scalar_lea.vmem %s3, %s316
      // Predicated region
      $region33: #{unet_block_inner.3} parent=31 // pred_check
        %p318 = pneg %p100
      $region34: #{unet_block_inner.3} parent=31 // pred_check_branch
        %320 = sbr.rel (%p318) target = $region36
      $region35: #{unet_block_inner.3} parent=31 // pred_region
        _
      $region36: #{unet_block_inner.3} parent=31 // pred_fallthru
        _
    $region32: #{unet_block_inner.3} parent=5 // pred_fallthru
      _
    %p321 = scmp.le.s32.totalorder 2, %s9
    // Predicated region
    $region37: #{unet_block_inner.3} parent=5 // pred_check
      %p322 = pneg %p321
    $region38: #{unet_block_inner.3} parent=5 // pred_check_branch
      %324 = sbr.rel (%p322) target = $region40
    $region39: #{unet_block_inner.3} parent=5 // pred_region
      %s325 = ssub.s32 %s9, 2
      // Predicated region
      $region41: #{unet_block_inner.3} parent=39 // pred_check
        %p326 = pneg %p106
      $region42: #{unet_block_inner.3} parent=39 // pred_check_branch
        %328 = sbr.rel (%p326) target = $region44
      $region43: #{unet_block_inner.3} parent=39 // pred_region
        %p329 = scmp.lt.s32.totalorder %s15, 1
        %s330 = scalar_select %p329, %s15, 1
        %s331 = smul.addr %s330, 32
        %s332 = smul.addr %s331, 8
        %s333 = scalar_lea.vmem %s3, %s332
      $region44: #{unet_block_inner.3} parent=39 // pred_fallthru
        _
    $region40: #{unet_block_inner.3} parent=5 // pred_fallthru
      _
  $region6: #{unet_block_inner.3} parent=0 // loop_footer
    %s13 = sadd.s32 1, %s9
  $region7: #{unet_block_inner.3} parent=0 // loop_footer_branch
    %8 = sbr.rel target = $region3
  $region8: #{unet_block_inner.3} parent=0 // loop_exit
    _

// kernel: unet_block_inner.2
$region0: #{unet_block_inner.2}
  #allocation0 [shape = 'u32[]', space=smem, size = 0x4, offset = 0x4, fixed_abs, tag = 'smem constant byte address 0x4 - core index']
  #allocation1 [shape = 'u32[144,128]{1,0:T(1,128)}', space=vmem, size = 0x12000, scoped, tag = 'internal scratch']
  #allocation2 [shape = 'f32[10,10,128]{2,1,0:T(8,128)}', space=vmem, size = 0x14000, scoped, tag = 'scratch operand']
  %s0 = inlined_call_operand.vmem [shape: f32[2,9,2,9,8], index: 0, kind: input, shape index: {}]
  %s1 = inlined_call_operand.vmem [shape: bf16[8,8,128], index: 1, kind: input, shape index: {}]
  %s2 = inlined_call_operand.vmem [shape: bf16[16,128,128], index: 2, kind: input, shape index: {}]
  %s3 = inlined_call_operand.vmem [shape: f32[2,4,8,8,128], index: 3, kind: output, shape index: {0}]
  %s4 = inlined_call_operand.vmem [shape: f32[2,2,128], index: 4, kind: output, shape index: {1}]
  %5 = xla_tuple %s3, %s4
  %s6 = sld [smem:[#allocation0]]
  $region53: #{unet_block_inner.2} parent=0
    _
  %s8 = ssub.s32 1, %s6
  %s9 = scalar_select 0, %s8, %s6
  loop: start=0, step=1, limit=4
  $region2: #{unet_block_inner.2} parent=0 // loop_pre_header
    _
  $region3: #{unet_block_inner.2} parent=0 // loop_header
    %s11 = sphi 0, %s15
    %p12 = scmp.ge.s32.totalorder %s11, 4
    %s21 = sphi 0, %s23
    %s24 = sphi 0, %s21
    %s25 = sphi 0, %s24
    %s41 = sphi 0, %s25
    %s45 = sphi 0, %s45
    %s47 = sphi 0, %s45
    %s48 = sphi 0, %s47
    %s62 = sphi 0, %s48
    %s66 = sphi 0, %s66
    %s68 = sphi 0, %s66
    %s69 = sphi 0, %s68
    %s83 = sphi 0, %s69
    %s89 = sphi 0, %s91
    %s92 = sphi 0, %s89
    %s93 = sphi 0, %s92
    %s109 = sphi 0, %s93
    %s115 = sphi 0, %s117
    %s118 = sphi 0, %s115
    %s119 = sphi 0, %s118
    %s135 = sphi 0, %s119
  $region4: #{unet_block_inner.2} parent=0 // loop_header_branch
    %14 = sbr.rel (%p12) target = $region8
  $region5: #{unet_block_inner.2} parent=0 // loop_body
    %s16 = ssub.s32 %s11, 1
    %s17 = ssub.s32 %s11, 2
    %s18 = sadd.s32 %s11, 1
    %s19 = ssub.s32 %s11, %s18
    %p20 = scmp.eq.s32.totalorder %s19, 0
    %s22 = sadd.s32 %s21, 1
    %s23 = scalar_select %p20, %s21, %s22
    %p26 = pneg %p20
    %p27 = scmp.eq.s32.totalorder %s11, 1
    %p28 = por %p26, %p27
    %p29 = scmp.ne.s32.totalorder %s21, %s24
    %p30 = scmp.eq.s32.totalorder %s11, 0
    %p31 = por %p29, %p30
    %p32 = scmp.ne.s32.totalorder %s21, %s24
    %p33 = scmp.eq.s32.totalorder %s16, 1
    %p34 = por %p32, %p33
    %p35 = scmp.ne.s32.totalorder %s24, %s25
    %p36 = scmp.eq.s32.totalorder %s16, 0
    %p37 = por %p35, %p36
    %p38 = scmp.ne.s32.totalorder %s24, %s25
    %p39 = scmp.eq.s32.totalorder %s17, 1
    %p40 = por %p38, %p39
    %p42 = scmp.ne.s32.totalorder %s25, %s41
    %p43 = scmp.eq.s32.totalorder %s17, 0
    %p44 = por %p42, %p43
    %s46 = sadd.s32 %s45, 1
    %p49 = scmp.eq.s32.totalorder %s11, 1
    %p50 = scmp.ne.s32.totalorder %s45, %s47
    %p51 = scmp.eq.s32.totalorder %s11, 0
    %p52 = por %p50, %p51
    %p53 = scmp.ne.s32.totalorder %s45, %s47
    %p54 = scmp.eq.s32.totalorder %s16, 1
    %p55 = por %p53, %p54
    %p56 = scmp.ne.s32.totalorder %s47, %s48
    %p57 = scmp.eq.s32.totalorder %s16, 0
    %p58 = por %p56, %p57
    %p59 = scmp.ne.s32.totalorder %s47, %s48
    %p60 = scmp.eq.s32.totalorder %s17, 1
    %p61 = por %p59, %p60
    %p63 = scmp.ne.s32.totalorder %s48, %s62
    %p64 = scmp.eq.s32.totalorder %s17, 0
    %p65 = por %p63, %p64
    %s67 = sadd.s32 %s66, 1
    %p70 = scmp.eq.s32.totalorder %s11, 1
    %p71 = scmp.ne.s32.totalorder %s66, %s68
    %p72 = scmp.eq.s32.totalorder %s11, 0
    %p73 = por %p71, %p72
    %p74 = scmp.ne.s32.totalorder %s66, %s68
    %p75 = scmp.eq.s32.totalorder %s16, 1
    %p76 = por %p74, %p75
    %p77 = scmp.ne.s32.totalorder %s68, %s69
    %p78 = scmp.eq.s32.totalorder %s16, 0
    %p79 = por %p77, %p78
    %p80 = scmp.ne.s32.totalorder %s68, %s69
    %p81 = scmp.eq.s32.totalorder %s17, 1
    %p82 = por %p80, %p81
    %p84 = scmp.ne.s32.totalorder %s69, %s83
    %p85 = scmp.eq.s32.totalorder %s17, 0
    %p86 = por %p84, %p85
    %s87 = ssub.s32 %s11, %s18
    %p88 = scmp.eq.s32.totalorder %s87, 0
    %s90 = sadd.s32 %s89, 1
    %s91 = scalar_select %p88, %s89, %s90
    %p94 = pneg %p88
    %p95 = scmp.eq.s32.totalorder %s11, 1
    %p96 = por %p94, %p95
    %p97 = scmp.ne.s32.totalorder %s89, %s92
    %p98 = scmp.eq.s32.totalorder %s11, 0
    %p99 = por %p97, %p98
    %p100 = scmp.ne.s32.totalorder %s89, %s92
    %p101 = scmp.eq.s32.totalorder %s16, 1
    %p102 = por %p100, %p101
    %p103 = scmp.ne.s32.totalorder %s92, %s93
    %p104 = scmp.eq.s32.totalorder %s16, 0
    %p105 = por %p103, %p104
    %p106 = scmp.ne.s32.totalorder %s92, %s93
    %p107 = scmp.eq.s32.totalorder %s17, 1
    %p108 = por %p106, %p107
    %p110 = scmp.ne.s32.totalorder %s93, %s109
    %p111 = scmp.eq.s32.totalorder %s17, 0
    %p112 = por %p110, %p111
    %s113 = ssub.s32 %s11, %s18
    %p114 = scmp.eq.s32.totalorder %s113, 0
    %s116 = sadd.s32 %s115, 1
    %s117 = scalar_select %p114, %s115, %s116
    %p120 = pneg %p114
    %p121 = scmp.eq.s32.totalorder %s11, 1
    %p122 = por %p120, %p121
    %p123 = scmp.ne.s32.totalorder %s115, %s118
    %p124 = scmp.eq.s32.totalorder %s11, 0
    %p125 = por %p123, %p124
    %p126 = scmp.ne.s32.totalorder %s115, %s118
    %p127 = scmp.eq.s32.totalorder %s16, 1
    %p128 = por %p126, %p127
    %p129 = scmp.ne.s32.totalorder %s118, %s119
    %p130 = scmp.eq.s32.totalorder %s16, 0
    %p131 = por %p129, %p130
    %p132 = scmp.ne.s32.totalorder %s118, %s119
    %p133 = scmp.eq.s32.totalorder %s17, 1
    %p134 = por %p132, %p133
    %p136 = scmp.ne.s32.totalorder %s119, %s135
    %p137 = scmp.eq.s32.totalorder %s17, 0
    %p138 = por %p136, %p137
    %p139 = scmp.le.s32.totalorder 1, %s11
    %p140 = scmp.lt.s32.totalorder %s11, 3
    %p141 = pnand %p139, %p140
    %p142 = pneg %p141
    // Predicated region
    $region9: #{unet_block_inner.2} parent=5 // pred_check
      _
    $region10: #{unet_block_inner.2} parent=5 // pred_check_branch
      %144 = sbr.rel (%p141) target = $region12
    $region11: #{unet_block_inner.2} parent=5 // pred_region
      %s145 = ssub.s32 %s11, 1
      // Predicated region
      $region13: #{unet_block_inner.2} parent=11 // pred_check
        %p146 = pneg %p58
      $region14: #{unet_block_inner.2} parent=11 // pred_check_branch
        %148 = sbr.rel (%p146) target = $region16
      $region15: #{unet_block_inner.2} parent=11 // pred_region
        _
      $region16: #{unet_block_inner.2} parent=11 // pred_fallthru
        _
      // Predicated region
      $region17: #{unet_block_inner.2} parent=11 // pred_check
        %p149 = pneg %p79
      $region18: #{unet_block_inner.2} parent=11 // pred_check_branch
        %151 = sbr.rel (%p149) target = $region20
      $region19: #{unet_block_inner.2} parent=11 // pred_region
        _
      $region20: #{unet_block_inner.2} parent=11 // pred_fallthru
        _
    $region12: #{unet_block_inner.2} parent=5 // pred_fallthru
      _
    %p152 = scmp.lt.s32.totalorder %s11, 2
    // Predicated region
    $region21: #{unet_block_inner.2} parent=5 // pred_check
      %p153 = pneg %p152
    $region22: #{unet_block_inner.2} parent=5 // pred_check_branch
      %155 = sbr.rel (%p153) target = $region24
    $region23: #{unet_block_inner.2} parent=5 // pred_region
      // Predicated region
      $region25: #{unet_block_inner.2} parent=23 // pred_check
        %p156 = pneg %p31
      $region26: #{unet_block_inner.2} parent=23 // pred_check_branch
        %158 = sbr.rel (%p156) target = $region28
      $region27: #{unet_block_inner.2} parent=23 // pred_region
        %p159 = scmp.lt.s32.totalorder %s11, 1
        %s160 = scalar_select %p159, %s11, 1
        %s161 = smul.addr %s160, 36
        %s162 = smul.addr %s161, 8
        %s163 = scalar_lea.vmem %s0, %s162
      $region28: #{unet_block_inner.2} parent=23 // pred_fallthru
        _
    $region24: #{unet_block_inner.2} parent=5 // pred_fallthru
      _
    %p164 = scmp.le.s32.totalorder 1, %s11
    %p165 = scmp.lt.s32.totalorder %s11, 3
    %p166 = pnand %p164, %p165
    %p167 = pneg %p166
    // Predicated region
    $region29: #{unet_block_inner.2} parent=5 // pred_check
      _
    $region30: #{unet_block_inner.2} parent=5 // pred_check_branch
      %169 = sbr.rel (%p166) target = $region32
    $region31: #{unet_block_inner.2} parent=5 // pred_region
      %s170 = ssub.s32 %s11, 1
      %p171 = scmp.lt.s32.totalorder %s16, 1
      %s172 = scalar_select %p171, %s16, 1
      %s173 = smul.addr %s172, 36
      %s174 = smul.addr %s173, 8
      %s175 = scalar_lea.vmem %s0, %s174
      %p176 = pneg %p37
      %p177 = pneg %p34
      %p178 = pneg %p58
      %p179 = pneg %p55
      %p180 = pneg %p79
      %p181 = pneg %p76
      %p182 = pneg %p105
      %p183 = pneg %p102
      %p184 = scmp.lt.s32.totalorder %s16, 1
      %s185 = scalar_select %p184, %s16, 1
      %s186 = smul.addr %s185, 32
      %s187 = smul.addr %s186, 8
      %s188 = scalar_lea.vmem %s3, %s187
      %p189 = pneg %p131
      %p190 = pneg %p128
      %p191 = scmp.lt.s32.totalorder %s16, 1
      %s192 = scalar_select %p191, %s16, 1
      %s193 = smul.addr %s192, 2
      %s194 = scalar_lea.vmem %s4, %s193
      %p195 = scmp.lt.s32.totalorder %s16, 1
      %s196 = scalar_select %p195, %s16, 1
      %s197 = smul.addr %s196, 36
      %s198 = smul.addr %s197, 8
      %s199 = scalar_lea.vmem %s0, %s198
      %p200 = scmp.lt.s32.totalorder %s16, 1
      %s201 = scalar_select %p200, %s16, 1
      %s202 = smul.addr %s201, 32
      %s203 = smul.addr %s202, 8
      %s204 = scalar_lea.vmem %s3, %s203
      %p205 = scmp.lt.s32.totalorder %s16, 1
      %s206 = scalar_select %p205, %s16, 1
      %s207 = smul.addr %s206, 2
      %s208 = scalar_lea.vmem %s4, %s207
      %v210 = vld [vmem:[%s199] sm:$0xff]
      %v211 = vld [vmem:[%s199 + $0x8] sm:$0x1]
      %v212 = vld [vmem:[%s199 + $0x10] sm:$0xff]
      %v213 = vld [vmem:[%s199 + $0x18] sm:$0x1]
      %v214 = vld [vmem:[%s199 + $0x20] sm:$0xff]
      %v215 = vld [vmem:[%s199 + $0x28] sm:$0x1]
      %v216 = vld [vmem:[%s199 + $0x30] sm:$0xff]
      %v217 = vld [vmem:[%s199 + $0x38] sm:$0x1]
      %v218 = vld [vmem:[%s199 + $0x40] sm:$0xff]
      %v219 = vld [vmem:[%s199 + $0x48] sm:$0x1]
      %v220 = vld [vmem:[%s199 + $0x50] sm:$0xff]
      %v221 = vld [vmem:[%s199 + $0x58] sm:$0x1]
      %v222 = vld [vmem:[%s199 + $0x60] sm:$0xff]
      %v223 = vld [vmem:[%s199 + $0x68] sm:$0x1]
      %v224 = vld [vmem:[%s199 + $0x70] sm:$0xff]
      %v225 = vld [vmem:[%s199 + $0x78] sm:$0x1]
      %v226 = vld [vmem:[%s199 + $0x80] sm:$0xff]
      %v227 = vld [vmem:[%s199 + $0x88] sm:$0x1]
      %v228 = vld [vmem:[%s199 + $0x90] sm:$0xff]
      %v229 = vld [vmem:[%s199 + $0x98] sm:$0x1]
      %v230 = vld [vmem:[%s199 + $0xa0] sm:$0xff]
      %v231 = vld [vmem:[%s199 + $0xa8] sm:$0x1]
      %v232 = vld [vmem:[%s199 + $0xb0] sm:$0xff]
      %v233 = vld [vmem:[%s199 + $0xb8] sm:$0x1]
      %v234 = vld [vmem:[%s199 + $0xc0] sm:$0xff]
      %v235 = vld [vmem:[%s199 + $0xc8] sm:$0x1]
      %v236 = vld [vmem:[%s199 + $0xd0] sm:$0xff]
      %v237 = vld [vmem:[%s199 + $0xd8] sm:$0x1]
      %v238 = vld [vmem:[%s199 + $0xe0] sm:$0xff]
      %v239 = vld [vmem:[%s199 + $0xe8] sm:$0x1]
      %v240 = vld [vmem:[%s199 + $0xf0] sm:$0xff]
      %v241 = vld [vmem:[%s199 + $0xf8] sm:$0x1]
      %v242 = vld [vmem:[%s199 + $0x100] sm:$0xff]
      %v243 = vld [vmem:[%s199 + $0x108] sm:$0x1]
      %v244 = vld [vmem:[%s199 + $0x110] sm:$0xff]
      %v245 = vld [vmem:[%s199 + $0x118] sm:$0x1]
      %vm246 = vcmp.ge.f32.partialorder %v210, 0.0
      %vm247 = vcmp.ge.f32.partialorder %v211, 0.0
      %vm248 = vcmp.ge.f32.partialorder %v212, 0.0
      %vm249 = vcmp.ge.f32.partialorder %v213, 0.0
      %vm250 = vcmp.ge.f32.partialorder %v214, 0.0
      %vm251 = vcmp.ge.f32.partialorder %v215, 0.0
      %vm252 = vcmp.ge.f32.partialorder %v216, 0.0
      %vm253 = vcmp.ge.f32.partialorder %v217, 0.0
      %vm254 = vcmp.ge.f32.partialorder %v218, 0.0
      %vm255 = vcmp.ge.f32.partialorder %v219, 0.0
      %vm256 = vcmp.ge.f32.partialorder %v220, 0.0
      %vm257 = vcmp.ge.f32.partialorder %v221, 0.0
      %vm258 = vcmp.ge.f32.partialorder %v222, 0.0
      %vm259 = vcmp.ge.f32.partialorder %v223, 0.0
      %vm260 = vcmp.ge.f32.partialorder %v224, 0.0
      %vm261 = vcmp.ge.f32.partialorder %v225, 0.0
      %vm262 = vcmp.ge.f32.partialorder %v226, 0.0
      %vm263 = vcmp.ge.f32.partialorder %v227, 0.0
      %vm264 = vcmp.ge.f32.partialorder %v228, 0.0
      %vm265 = vcmp.ge.f32.partialorder %v229, 0.0
      %vm266 = vcmp.ge.f32.partialorder %v230, 0.0
      %vm267 = vcmp.ge.f32.partialorder %v231, 0.0
      %vm268 = vcmp.ge.f32.partialorder %v232, 0.0
      %vm269 = vcmp.ge.f32.partialorder %v233, 0.0
      %vm270 = vcmp.ge.f32.partialorder %v234, 0.0
      %vm271 = vcmp.ge.f32.partialorder %v235, 0.0
      %vm272 = vcmp.ge.f32.partialorder %v236, 0.0
      %vm273 = vcmp.ge.f32.partialorder %v237, 0.0
      %vm274 = vcmp.ge.f32.partialorder %v238, 0.0
      %vm275 = vcmp.ge.f32.partialorder %v239, 0.0
      %vm276 = vcmp.ge.f32.partialorder %v240, 0.0
      %vm277 = vcmp.ge.f32.partialorder %v241, 0.0
      %vm278 = vcmp.ge.f32.partialorder %v242, 0.0
      %vm279 = vcmp.ge.f32.partialorder %v243, 0.0
      %vm280 = vcmp.ge.f32.partialorder %v244, 0.0
      %vm281 = vcmp.ge.f32.partialorder %v245, 0.0
      %v282 = vmul.f32 %v210, 0.2
      %v283 = vmul.f32 %v211, 0.2
      %v284 = vmul.f32 %v212, 0.2
      %v285 = vmul.f32 %v213, 0.2
      %v286 = vmul.f32 %v214, 0.2
      %v287 = vmul.f32 %v215, 0.2
      %v288 = vmul.f32 %v216, 0.2
      %v289 = vmul.f32 %v217, 0.2
      %v290 = vmul.f32 %v218, 0.2
      %v291 = vmul.f32 %v219, 0.2
      %v292 = vmul.f32 %v220, 0.2
      %v293 = vmul.f32 %v221, 0.2
      %v294 = vmul.f32 %v222, 0.2
      %v295 = vmul.f32 %v223, 0.2
      %v296 = vmul.f32 %v224, 0.2
      %v297 = vmul.f32 %v225, 0.2
      %v298 = vmul.f32 %v226, 0.2
      %v299 = vmul.f32 %v227, 0.2
      %v300 = vmul.f32 %v228, 0.2
      %v301 = vmul.f32 %v229, 0.2
      %v302 = vmul.f32 %v230, 0.2
      %v303 = vmul.f32 %v231, 0.2
      %v304 = vmul.f32 %v232, 0.2
      %v305 = vmul.f32 %v233, 0.2
      %v306 = vmul.f32 %v234, 0.2
      %v307 = vmul.f32 %v235, 0.2
      %v308 = vmul.f32 %v236, 0.2
      %v309 = vmul.f32 %v237, 0.2
      %v310 = vmul.f32 %v238, 0.2
      %v311 = vmul.f32 %v239, 0.2
      %v312 = vmul.f32 %v240, 0.2
      %v313 = vmul.f32 %v241, 0.2
      %v314 = vmul.f32 %v242, 0.2
      %v315 = vmul.f32 %v243, 0.2
      %v316 = vmul.f32 %v244, 0.2
      %v317 = vmul.f32 %v245, 0.2
      %v318 = vsel %vm246, %v210, %v282
      %v319 = vsel %vm247, %v211, %v283
      %v320 = vsel %vm248, %v212, %v284
      %v321 = vsel %vm249, %v213, %v285
      %v322 = vsel %vm250, %v214, %v286
      %v323 = vsel %vm251, %v215, %v287
      %v324 = vsel %vm252, %v216, %v288
      %v325 = vsel %vm253, %v217, %v289
      %v326 = vsel %vm254, %v218, %v290
      %v327 = vsel %vm255, %v219, %v291
      %v328 = vsel %vm256, %v220, %v292
      %v329 = vsel %vm257, %v221, %v293
      %v330 = vsel %vm258, %v222, %v294
      %v331 = vsel %vm259, %v223, %v295
      %v332 = vsel %vm260, %v224, %v296
      %v333 = vsel %vm261, %v225, %v297
      %v334 = vsel %vm262, %v226, %v298
      %v335 = vsel %vm263, %v227, %v299
      %v336 = vsel %vm264, %v228, %v300
      %v337 = vsel %vm265, %v229, %v301
      %v338 = vsel %vm266, %v230, %v302
      %v339 = vsel %vm267, %v231, %v303
      %v340 = vsel %vm268, %v232, %v304
      %v341 = vsel %vm269, %v233, %v305
      %v342 = vsel %vm270, %v234, %v306
      %v343 = vsel %vm271, %v235, %v307
      %v344 = vsel %vm272, %v236, %v308
      %v345 = vsel %vm273, %v237, %v309
      %v346 = vsel %vm274, %v238, %v310
      %v347 = vsel %vm275, %v239, %v311
      %v348 = vsel %vm276, %v240, %v312
      %v349 = vsel %vm277, %v241, %v313
      %v350 = vsel %vm278, %v242, %v314
      %v351 = vsel %vm279, %v243, %v315
      %v352 = vsel %vm280, %v244, %v316
      %v353 = vsel %vm281, %v245, %v317
      %v354 = vpack.c.bf16 %v322, %v318
      %v355 = vpack.c.bf16 %v330, %v326
      %v356 = vpack.c.bf16 %v338, %v334
      %v357 = vpack.c.bf16 %v346, %v342
      %v358 = vld [vmem:[%s1] sm:$0xf]
      %vm375 = vcmask 1046528
      %v376 = vrot.slane %v318, 1
      %v377 = vrot.slane %v319, 1
      %v378 = vsel %vm375, %v376, %v377
      %v379 = vrot.slane %v322, 1
      %v380 = vrot.slane %v323, 1
      %v381 = vsel %vm375, %v379, %v380
      %v382 = vrot.slane %v326, 1
      %v383 = vrot.slane %v327, 1
      %v384 = vsel %vm375, %v382, %v383
      %v385 = vrot.slane %v330, 1
      %v386 = vrot.slane %v331, 1
      %v387 = vsel %vm375, %v385, %v386
      %v388 = vrot.slane %v334, 1
      %v389 = vrot.slane %v335, 1
      %v390 = vsel %vm375, %v388, %v389
      %v391 = vrot.slane %v338, 1
      %v392 = vrot.slane %v339, 1
      %v393 = vsel %vm375, %v391, %v392
      %v394 = vrot.slane %v342, 1
      %v395 = vrot.slane %v343, 1
      %v396 = vsel %vm375, %v394, %v395
      %v397 = vrot.slane %v346, 1
      %v398 = vrot.slane %v347, 1
      %v399 = vsel %vm375, %v397, %v398
      %v408 = vpack.c.bf16 %v381, %v378
      %v409 = vpack.c.bf16 %v387, %v384
      %v410 = vpack.c.bf16 %v393, %v390
      %v411 = vpack.c.bf16 %v399, %v396
      %s412 = scalar_lea.vmem %s1, 4
      %v413 = vld [vmem:[%s412] sm:$0xf]
      %vm414 = vcmask 64512
      %v416 = vsel %vm414, %v408, 0
      %v419 = vsel %vm414, %v409, 0
      %v422 = vsel %vm414, %v410, 0
      %v425 = vsel %vm414, %v411, 0
      %vm427 = vcmask 1043456
      %v429 = vsel %vm427, %v413, 0
      %431 = vmatprep.subr.bf16.mxu0 0
      %432 = vmatpush1.bf16.msra.mxu0 %v429
      %433 = vmatprep.subr.bf16.mxu0 0
      %434 = vmatpush1.bf16.msra.mxu0 0
      %435 = vmatprep.subr.bf16.mxu0 0
      %436 = vmatpush1.bf16.msra.mxu0 0
      %437 = vmatprep.subr.bf16.mxu0 0
      %438 = vmatpush1.bf16.msra.mxu0 0
      %439 = vmatprep.subr.bf16.mxu0 0
      %440 = vmatpush1.bf16.msra.mxu0 0
      %441 = vmatprep.subr.bf16.mxu0 0
      %442 = vmatpush1.bf16.msra.mxu0 0
      %443 = vmatprep.subr.bf16.mxu0 0
      %444 = vmatpush1.bf16.msra.mxu0 0
      %445 = vmatprep.subr.bf16.mxu0 0
      %446 = vmatpush1.bf16.msra.mxu0 0
      %447 = vmatprep.subr.bf16.mxu0 0
      %448 = vmatpush1.bf16.msra.mxu0 0
      %449 = vmatprep.subr.bf16.mxu0 0
      %450 = vmatpush1.bf16.msra.mxu0 0
      %451 = vmatprep.subr.bf16.mxu0 0
      %452 = vmatpush1.bf16.msra.mxu0 0
      %453 = vmatprep.subr.bf16.mxu0 0
      %454 = vmatpush1.bf16.msra.mxu0 0
      %455 = vmatprep.subr.bf16.mxu0 0
      %456 = vmatpush1.bf16.msra.mxu0 0
      %457 = vmatprep.subr.bf16.mxu0 0
      %458 = vmatpush1.bf16.msra.mxu0 0
      %459 = vmatprep.subr.bf16.mxu0 0
      %460 = vmatpush1.bf16.msra.mxu0 0
      %461 = vmatprep.subr.bf16.mxu0 0
      %462 = vmatpush1.bf16.msra.mxu0 0
      %463 = vmatprep.mubr.bf16.mxu0 0
      %464 = vmatmul.mubr.bf16.gmra.mrb[0].mxu0 %v416
      %v465 = vpop.f32.mrb[0].mxu0
      %v466 = vadd.f32 0.0, %v465
      %v467 = vpop.f32.mrb[0].mxu0
      %v468 = vpop.f32.mrb[0].mxu0
      %v469 = vadd.f32 0.0, %v468
      %v470 = vpop.f32.mrb[0].mxu0
      %471 = vmatprep.mubr.bf16.mxu0 0
      %472 = vmatmul.mubr.bf16.gmra.mrb[0].mxu0 %v419
      %v473 = vpop.f32.mrb[0].mxu0
      %v474 = vadd.f32 0.0, %v473
      %v475 = vpop.f32.mrb[0].mxu0
      %v476 = vpop.f32.mrb[0].mxu0
      %v477 = vadd.f32 0.0, %v476
      %v478 = vpop.f32.mrb[0].mxu0
      %479 = vmatprep.mubr.bf16.mxu0 0
      %480 = vmatmul.mubr.bf16.gmra.mrb[0].mxu0 %v422
      %v481 = vpop.f32.mrb[0].mxu0
      %v482 = vadd.f32 0.0, %v481
      %v483 = vpop.f32.mrb[0].mxu0
      %v484 = vpop.f32.mrb[0].mxu0
      %v485 = vadd.f32 0.0, %v484
      %v486 = vpop.f32.mrb[0].mxu0
      %487 = vmatprep.mubr.bf16.mxu0 0
      %488 = vmatmul.mubr.bf16.gmra.mrb[0].mxu0 %v425
      %v489 = vpop.f32.mrb[0].mxu0
      %v490 = vadd.f32 0.0, %v489
      %v491 = vpop.f32.mrb[0].mxu0
      %v492 = vpop.f32.mrb[0].mxu0
      %v493 = vadd.f32 0.0, %v492
      %v494 = vpop.f32.mrb[0].mxu0
      %495 = vdwg.mxu0
      %v497 = vsel %vm414, %v354, 0
      %v500 = vsel %vm414, %v355, 0
      %v503 = vsel %vm414, %v356, 0
      %v506 = vsel %vm414, %v357, 0
      %v509 = vsel %vm427, %v358, 0
      %511 = vmatprep.subr.bf16.mxu0 0
      %512 = vmatpush1.bf16.msra.mxu0 %v509
      %513 = vmatprep.subr.bf16.mxu0 0
      %514 = vmatpush1.bf16.msra.mxu0 0
      %515 = vmatprep.subr.bf16.mxu0 0
      %516 = vmatpush1.bf16.msra.mxu0 0
      %517 = vmatprep.subr.bf16.mxu0 0
      %518 = vmatpush1.bf16.msra.mxu0 0
      %519 = vmatprep.subr.bf16.mxu0 0
      %520 = vmatpush1.bf16.msra.mxu0 0
      %521 = vmatprep.subr.bf16.mxu0 0
      %522 = vmatpush1.bf16.msra.mxu0 0
      %523 = vmatprep.subr.bf16.mxu0 0
      %524 = vmatpush1.bf16.msra.mxu0 0
      %525 = vmatprep.subr.bf16.mxu0 0
      %526 = vmatpush1.bf16.msra.mxu0 0
      %527 = vmatprep.subr.bf16.mxu0 0
      %528 = vmatpush1.bf16.msra.mxu0 0
      %529 = vmatprep.subr.bf16.mxu0 0
      %530 = vmatpush1.bf16.msra.mxu0 0
      %531 = vmatprep.subr.bf16.mxu0 0
      %532 = vmatpush1.bf16.msra.mxu0 0
      %533 = vmatprep.subr.bf16.mxu0 0
      %534 = vmatpush1.bf16.msra.mxu0 0
      %535 = vmatprep.subr.bf16.mxu0 0
      %536 = vmatpush1.bf16.msra.mxu0 0
      %537 = vmatprep.subr.bf16.mxu0 0
      %538 = vmatpush1.bf16.msra.mxu0 0
      %539 = vmatprep.subr.bf16.mxu0 0
      %540 = vmatpush1.bf16.msra.mxu0 0
      %541 = vmatprep.subr.bf16.mxu0 0
      %542 = vmatpush1.bf16.msra.mxu0 0
      %543 = vmatprep.mubr.bf16.mxu0 0
      %544 = vmatmul.mubr.bf16.gmra.mrb[0].mxu0 %v497
      %v545 = vpop.f32.mrb[0].mxu0
      %v546 = vadd.f32 %v466, %v545
      %v547 = vpop.f32.mrb[0].mxu0
      %v548 = vpop.f32.mrb[0].mxu0
      %v549 = vadd.f32 %v469, %v548
      %v550 = vpop.f32.mrb[0].mxu0
      %551 = vmatprep.mubr.bf16.mxu0 0
      %552 = vmatmul.mubr.bf16.gmra.mrb[0].mxu0 %v500
      %v553 = vpop.f32.mrb[0].mxu0
      %v554 = vadd.f32 %v474, %v553
      %v555 = vpop.f32.mrb[0].mxu0
      %v556 = vpop.f32.mrb[0].mxu0
      %v557 = vadd.f32 %v477, %v556
      %v558 = vpop.f32.mrb[0].mxu0
      %559 = vmatprep.mubr.bf16.mxu0 0
      %560 = vmatmul.mubr.bf16.gmra.mrb[0].mxu0 %v503
      %v561 = vpop.f32.mrb[0].mxu0
      %v562 = vadd.f32 %v482, %v561
      %v563 = vpop.f32.mrb[0].mxu0
      %v564 = vpop.f32.mrb[0].mxu0
      %v565 = vadd.f32 %v485, %v564
      %v566 = vpop.f32.mrb[0].mxu0
      %567 = vmatprep.mubr.bf16.mxu0 0
      %568 = vmatmul.mubr.bf16.gmra.mrb[0].mxu0 %v506
      %v569 = vpop.f32.mrb[0].mxu0
      %v570 = vadd.f32 %v490, %v569
      %v571 = vpop.f32.mrb[0].mxu0
      %v572 = vpop.f32.mrb[0].mxu0
      %v573 = vadd.f32 %v493, %v572
      %v574 = vpop.f32.mrb[0].mxu0
      %575 = vdwg.mxu0
      %v576 = vpack.c.bf16 %v324, %v320
      %v577 = vpack.c.bf16 %v332, %v328
      %v578 = vpack.c.bf16 %v340, %v336
      %v579 = vpack.c.bf16 %v348, %v344
      %s580 = scalar_lea.vmem %s1, 8
      %v581 = vld [vmem:[%s580] sm:$0xf]
      %v583 = vsel %vm414, %v576, 0
      %v586 = vsel %vm414, %v577, 0
      %v589 = vsel %vm414, %v578, 0
      %v592 = vsel %vm414, %v579, 0
      %v595 = vsel %vm427, %v581, 0
      %597 = vmatprep.subr.bf16.mxu0 0
      %598 = vmatpush1.bf16.msra.mxu0 %v595
      %599 = vmatprep.subr.bf16.mxu0 0
      %600 = vmatpush1.bf16.msra.mxu0 0
      %601 = vmatprep.subr.bf16.mxu0 0
      %602 = vmatpush1.bf16.msra.mxu0 0
      %603 = vmatprep.subr.bf16.mxu0 0
      %604 = vmatpush1.bf16.msra.mxu0 0
      %605 = vmatprep.subr.bf16.mxu0 0
      %606 = vmatpush1.bf16.msra.mxu0 0
      %607 = vmatprep.subr.bf16.mxu0 0
      %608 = vmatpush1.bf16.msra.mxu0 0
      %609 = vmatprep.subr.bf16.mxu0 0
      %610 = vmatpush1.bf16.msra.mxu0 0
      %611 = vmatprep.subr.bf16.mxu0 0
      %612 = vmatpush1.bf16.msra.mxu0 0
      %613 = vmatprep.subr.bf16.mxu0 0
      %614 = vmatpush1.bf16.msra.mxu0 0
      %615 = vmatprep.subr.bf16.mxu0 0
      %616 = vmatpush1.bf16.msra.mxu0 0
      %617 = vmatprep.subr.bf16.mxu0 0
      %618 = vmatpush1.bf16.msra.mxu0 0
      %619 = vmatprep.subr.bf16.mxu0 0
      %620 = vmatpush1.bf16.msra.mxu0 0
      %621 = vmatprep.subr.bf16.mxu0 0
      %622 = vmatpush1.bf16.msra.mxu0 0
      %623 = vmatprep.subr.bf16.mxu0 0
      %624 = vmatpush1.bf16.msra.mxu0 0
      %625 = vmatprep.subr.bf16.mxu0 0
      %626 = vmatpush1.bf16.msra.mxu0 0
      %627 = vmatprep.subr.bf16.mxu0 0
      %628 = vmatpush1.bf16.msra.mxu0 0
      %629 = vmatprep.mubr.bf16.mxu0 0
      %630 = vmatmul.mubr.bf16.gmra.mrb[0].mxu0 %v583
      %v631 = vpop.f32.mrb[0].mxu0
      %v632 = vadd.f32 0.0, %v631
      %v633 = vpop.f32.mrb[0].mxu0
      %v634 = vpop.f32.mrb[0].mxu0
      %v635 = vadd.f32 0.0, %v634
      %v636 = vpop.f32.mrb[0].mxu0
      %637 = vmatprep.mubr.bf16.mxu0 0
      %638 = vmatmul.mubr.bf16.gmra.mrb[0].mxu0 %v586
      %v639 = vpop.f32.mrb[0].mxu0
      %v640 = vadd.f32 0.0, %v639
      %v641 = vpop.f32.mrb[0].mxu0
      %v642 = vpop.f32.mrb[0].mxu0
      %v643 = vadd.f32 0.0, %v642
      %v644 = vpop.f32.mrb[0].mxu0
      %645 = vmatprep.mubr.bf16.mxu0 0
      %646 = vmatmul.mubr.bf16.gmra.mrb[0].mxu0 %v589
      %v647 = vpop.f32.mrb[0].mxu0
      %v648 = vadd.f32 0.0, %v647
      %v649 = vpop.f32.mrb[0].mxu0
      %v650 = vpop.f32.mrb[0].mxu0
      %v651 = vadd.f32 0.0, %v650
      %v652 = vpop.f32.mrb[0].mxu0
      %653 = vmatprep.mubr.bf16.mxu0 0
      %654 = vmatmul.mubr.bf16.gmra.mrb[0].mxu0 %v592
      %v655 = vpop.f32.mrb[0].mxu0
      %v656 = vadd.f32 0.0, %v655
      %v657 = vpop.f32.mrb[0].mxu0
      %v658 = vpop.f32.mrb[0].mxu0
      %v659 = vadd.f32 0.0, %v658
      %v660 = vpop.f32.mrb[0].mxu0
      %661 = vdwg.mxu0
      %v662 = vadd.f32 %v546, %v632
      %v663 = vadd.f32 %v549, %v635
      %v664 = vadd.f32 %v554, %v640
      %v665 = vadd.f32 %v557, %v643
      %v666 = vadd.f32 %v562, %v648
      %v667 = vadd.f32 %v565, %v651
      %v668 = vadd.f32 %v570, %v656
      %v669 = vadd.f32 %v573, %v659
      %v686 = vrot.slane %v320, 1
      %v687 = vrot.slane %v321, 1
      %v688 = vsel %vm375, %v686, %v687
      %v689 = vrot.slane %v324, 1
      %v690 = vrot.slane %v325, 1
      %v691 = vsel %vm375, %v689, %v690
      %v692 = vrot.slane %v328, 1
      %v693 = vrot.slane %v329, 1
      %v694 = vsel %vm375, %v692, %v693
      %v695 = vrot.slane %v332, 1
      %v696 = vrot.slane %v333, 1
      %v697 = vsel %vm375, %v695, %v696
      %v698 = vrot.slane %v336, 1
      %v699 = vrot.slane %v337, 1
      %v700 = vsel %vm375, %v698, %v699
      %v701 = vrot.slane %v340, 1
      %v702 = vrot.slane %v341, 1
      %v703 = vsel %vm375, %v701, %v702
      %v704 = vrot.slane %v344, 1
      %v705 = vrot.slane %v345, 1
      %v706 = vsel %vm375, %v704, %v705
      %v707 = vrot.slane %v348, 1
      %v708 = vrot.slane %v349, 1
      %v709 = vsel %vm375, %v707, %v708
      %v718 = vpack.c.bf16 %v691, %v688
      %v719 = vpack.c.bf16 %v697, %v694
      %v720 = vpack.c.bf16 %v703, %v700
      %v721 = vpack.c.bf16 %v709, %v706
      %s722 = scalar_lea.vmem %s1, 12
      %v723 = vld [vmem:[%s722] sm:$0xf]
      %v725 = vsel %vm414, %v718, 0
      %v728 = vsel %vm414, %v719, 0
      %v731 = vsel %vm414, %v720, 0
      %v734 = vsel %vm414, %v721, 0
      %v737 = vsel %vm427, %v723, 0
      %739 = vmatprep.subr.bf16.mxu0 0
      %740 = vmatpush1.bf16.msra.mxu0 %v737
      %741 = vmatprep.subr.bf16.mxu0 0
      %742 = vmatpush1.bf16.msra.mxu0 0
      %743 = vmatprep.subr.bf16.mxu0 0
      %744 = vmatpush1.bf16.msra.mxu0 0
      %745 = vmatprep.subr.bf16.mxu0 0
      %746 = vmatpush1.bf16.msra.mxu0 0
      %747 = vmatprep.subr.bf16.mxu0 0
      %748 = vmatpush1.bf16.msra.mxu0 0
      %749 = vmatprep.subr.bf16.mxu0 0
      %750 = vmatpush1.bf16.msra.mxu0 0
      %751 = vmatprep.subr.bf16.mxu0 0
      %752 = vmatpush1.bf16.msra.mxu0 0
      %753 = vmatprep.subr.bf16.mxu0 0
      %754 = vmatpush1.bf16.msra.mxu0 0
      %755 = vmatprep.subr.bf16.mxu0 0
      %756 = vmatpush1.bf16.msra.mxu0 0
      %757 = vmatprep.subr.bf16.mxu0 0
      %758 = vmatpush1.bf16.msra.mxu0 0
      %759 = vmatprep.subr.bf16.mxu0 0
      %760 = vmatpush1.bf16.msra.mxu0 0
      %761 = vmatprep.subr.bf16.mxu0 0
      %762 = vmatpush1.bf16.msra.mxu0 0
      %763 = vmatprep.subr.bf16.mxu0 0
      %764 = vmatpush1.bf16.msra.mxu0 0
      %765 = vmatprep.subr.bf16.mxu0 0
      %766 = vmatpush1.bf16.msra.mxu0 0
      %767 = vmatprep.subr.bf16.mxu0 0
      %768 = vmatpush1.bf16.msra.mxu0 0
      %769 = vmatprep.subr.bf16.mxu0 0
      %770 = vmatpush1.bf16.msra.mxu0 0
      %771 = vmatprep.mubr.bf16.mxu0 0
      %772 = vmatmul.mubr.bf16.gmra.mrb[0].mxu0 %v725
      %v773 = vpop.f32.mrb[0].mxu0
      %v774 = vadd.f32 0.0, %v773
      %v775 = vpop.f32.mrb[0].mxu0
      %v776 = vpop.f32.mrb[0].mxu0
      %v777 = vadd.f32 0.0, %v776
      %v778 = vpop.f32.mrb[0].mxu0
      %779 = vmatprep.mubr.bf16.mxu0 0
      %780 = vmatmul.mubr.bf16.gmra.mrb[0].mxu0 %v728
      %v781 = vpop.f32.mrb[0].mxu0
      %v782 = vadd.f32 0.0, %v781
      %v783 = vpop.f32.mrb[0].mxu0
      %v784 = vpop.f32.mrb[0].mxu0
      %v785 = vadd.f32 0.0, %v784
      %v786 = vpop.f32.mrb[0].mxu0
      %787 = vmatprep.mubr.bf16.mxu0 0
      %788 = vmatmul.mubr.bf16.gmra.mrb[0].mxu0 %v731
      %v789 = vpop.f32.mrb[0].mxu0
      %v790 = vadd.f32 0.0, %v789
      %v791 = vpop.f32.mrb[0].mxu0
      %v792 = vpop.f32.mrb[0].mxu0
      %v793 = vadd.f32 0.0, %v792
      %v794 = vpop.f32.mrb[0].mxu0
      %795 = vmatprep.mubr.bf16.mxu0 0
      %796 = vmatmul.mubr.bf16.gmra.mrb[0].mxu0 %v734
      %v797 = vpop.f32.mrb[0].mxu0
      %v798 = vadd.f32 0.0, %v797
      %v799 = vpop.f32.mrb[0].mxu0
      %v800 = vpop.f32.mrb[0].mxu0
      %v801 = vadd.f32 0.0, %v800
      %v802 = vpop.f32.mrb[0].mxu0
      %803 = vdwg.mxu0
      %v804 = vadd.f32 %v662, %v774
      %v805 = vadd.f32 %v663, %v777
      %v806 = vadd.f32 %v664, %v782
      %v807 = vadd.f32 %v665, %v785
      %v808 = vadd.f32 %v666, %v790
      %v809 = vadd.f32 %v667, %v793
      %v810 = vadd.f32 %v668, %v798
      %v811 = vadd.f32 %v669, %v801
      %v812 = vpack.c.bf16 %v326, %v322
      %v813 = vpack.c.bf16 %v334, %v330
      %v814 = vpack.c.bf16 %v342, %v338
      %v815 = vpack.c.bf16 %v350, %v346
      %s816 = scalar_lea.vmem %s1, 16
      %v817 = vld [vmem:[%s816] sm:$0xf]
      %v819 = vsel %vm414, %v812, 0
      %v822 = vsel %vm414, %v813, 0
      %v825 = vsel %vm414, %v814, 0
      %v828 = vsel %vm414, %v815, 0
      %v831 = vsel %vm427, %v817, 0
      %833 = vmatprep.subr.bf16.mxu0 0
      %834 = vmatpush1.bf16.msra.mxu0 %v831
      %835 = vmatprep.subr.bf16.mxu0 0
      %836 = vmatpush1.bf16.msra.mxu0 0
      %837 = vmatprep.subr.bf16.mxu0 0
      %838 = vmatpush1.bf16.msra.mxu0 0
      %839 = vmatprep.subr.bf16.mxu0 0
      %840 = vmatpush1.bf16.msra.mxu0 0
      %841 = vmatprep.subr.bf16.mxu0 0
      %842 = vmatpush1.bf16.msra.mxu0 0
      %843 = vmatprep.subr.bf16.mxu0 0
      %844 = vmatpush1.bf16.msra.mxu0 0
      %845 = vmatprep.subr.bf16.mxu0 0
      %846 = vmatpush1.bf16.msra.mxu0 0
      %847 = vmatprep.subr.bf16.mxu0 0
      %848 = vmatpush1.bf16.msra.mxu0 0
      %849 = vmatprep.subr.bf16.mxu0 0
      %850 = vmatpush1.bf16.msra.mxu0 0
      %851 = vmatprep.subr.bf16.mxu0 0
      %852 = vmatpush1.bf16.msra.mxu0 0
      %853 = vmatprep.subr.bf16.mxu0 0
      %854 = vmatpush1.bf16.msra.mxu0 0
      %855 = vmatprep.subr.bf16.mxu0 0
      %856 = vmatpush1.bf16.msra.mxu0 0
      %857 = vmatprep.subr.bf16.mxu0 0
      %858 = vmatpush1.bf16.msra.mxu0 0
      %859 = vmatprep.subr.bf16.mxu0 0
      %860 = vmatpush1.bf16.msra.mxu0 0
      %861 = vmatprep.subr.bf16.mxu0 0
      %862 = vmatpush1.bf16.msra.mxu0 0
      %863 = vmatprep.subr.bf16.mxu0 0
      %864 = vmatpush1.bf16.msra.mxu0 0
      %865 = vmatprep.mubr.bf16.mxu0 0
      %866 = vmatmul.mubr.bf16.gmra.mrb[0].mxu0 %v819
      %v867 = vpop.f32.mrb[0].mxu0
      %v868 = vadd.f32 0.0, %v867
      %v869 = vpop.f32.mrb[0].mxu0
      %v870 = vpop.f32.mrb[0].mxu0
      %v871 = vadd.f32 0.0, %v870
      %v872 = vpop.f32.mrb[0].mxu0
      %873 = vmatprep.mubr.bf16.mxu0 0
      %874 = vmatmul.mubr.bf16.gmra.mrb[0].mxu0 %v822
      %v875 = vpop.f32.mrb[0].mxu0
      %v876 = vadd.f32 0.0, %v875
      %v877 = vpop.f32.mrb[0].mxu0
      %v878 = vpop.f32.mrb[0].mxu0
      %v879 = vadd.f32 0.0, %v878
      %v880 = vpop.f32.mrb[0].mxu0
      %881 = vmatprep.mubr.bf16.mxu0 0
      %882 = vmatmul.mubr.bf16.gmra.mrb[0].mxu0 %v825
      %v883 = vpop.f32.mrb[0].mxu0
      %v884 = vadd.f32 0.0, %v883
      %v885 = vpop.f32.mrb[0].mxu0
      %v886 = vpop.f32.mrb[0].mxu0
      %v887 = vadd.f32 0.0, %v886
      %v888 = vpop.f32.mrb[0].mxu0
      %889 = vmatprep.mubr.bf16.mxu0 0
      %890 = vmatmul.mubr.bf16.gmra.mrb[0].mxu0 %v828
      %v891 = vpop.f32.mrb[0].mxu0
      %v892 = vadd.f32 0.0, %v891
      %v893 = vpop.f32.mrb[0].mxu0
      %v894 = vpop.f32.mrb[0].mxu0
      %v895 = vadd.f32 0.0, %v894
      %v896 = vpop.f32.mrb[0].mxu0
      %897 = vdwg.mxu0
      %v898 = vadd.f32 %v804, %v868
      %v899 = vadd.f32 %v805, %v871
      %v900 = vadd.f32 %v806, %v876
      %v901 = vadd.f32 %v807, %v879
      %v902 = vadd.f32 %v808, %v884
      %v903 = vadd.f32 %v809, %v887
      %v904 = vadd.f32 %v810, %v892
      %v905 = vadd.f32 %v811, %v895
      %v908 = vrot.slane %v350, 1
      %v909 = vrot.slane %v351, 1
      %v910 = vsel %vm375, %v908, %v909
      %v912 = vpack.c.bf16 %v384, %v381
      %v913 = vpack.c.bf16 %v390, %v387
      %v914 = vpack.c.bf16 %v396, %v393
      %v915 = vpack.c.bf16 %v910, %v399
      %s916 = scalar_lea.vmem %s1, 20
      %v917 = vld [vmem:[%s916] sm:$0xf]
      %v919 = vsel %vm414, %v912, 0
      %v922 = vsel %vm414, %v913, 0
      %v925 = vsel %vm414, %v914, 0
      %v928 = vsel %vm414, %v915, 0
      %v931 = vsel %vm427, %v917, 0
      %933 = vmatprep.subr.bf16.mxu0 0
      %934 = vmatpush1.bf16.msra.mxu0 %v931
      %935 = vmatprep.subr.bf16.mxu0 0
      %936 = vmatpush1.bf16.msra.mxu0 0
      %937 = vmatprep.subr.bf16.mxu0 0
      %938 = vmatpush1.bf16.msra.mxu0 0
      %939 = vmatprep.subr.bf16.mxu0 0
      %940 = vmatpush1.bf16.msra.mxu0 0
      %941 = vmatprep.subr.bf16.mxu0 0
      %942 = vmatpush1.bf16.msra.mxu0 0
      %943 = vmatprep.subr.bf16.mxu0 0
      %944 = vmatpush1.bf16.msra.mxu0 0
      %945 = vmatprep.subr.bf16.mxu0 0
      %946 = vmatpush1.bf16.msra.mxu0 0
      %947 = vmatprep.subr.bf16.mxu0 0
      %948 = vmatpush1.bf16.msra.mxu0 0
      %949 = vmatprep.subr.bf16.mxu0 0
      %950 = vmatpush1.bf16.msra.mxu0 0
      %951 = vmatprep.subr.bf16.mxu0 0
      %952 = vmatpush1.bf16.msra.mxu0 0
      %953 = vmatprep.subr.bf16.mxu0 0
      %954 = vmatpush1.bf16.msra.mxu0 0
      %955 = vmatprep.subr.bf16.mxu0 0
      %956 = vmatpush1.bf16.msra.mxu0 0
      %957 = vmatprep.subr.bf16.mxu0 0
      %958 = vmatpush1.bf16.msra.mxu0 0
      %959 = vmatprep.subr.bf16.mxu0 0
      %960 = vmatpush1.bf16.msra.mxu0 0
      %961 = vmatprep.subr.bf16.mxu0 0
      %962 = vmatpush1.bf16.msra.mxu0 0
      %963 = vmatprep.subr.bf16.mxu0 0
      %964 = vmatpush1.bf16.msra.mxu0 0
      %965 = vmatprep.mubr.bf16.mxu0 0
      %966 = vmatmul.mubr.bf16.gmra.mrb[0].mxu0 %v919
      %v967 = vpop.f32.mrb[0].mxu0
      %v968 = vadd.f32 0.0, %v967
      %v969 = vpop.f32.mrb[0].mxu0
      %v970 = vpop.f32.mrb[0].mxu0
      %v971 = vadd.f32 0.0, %v970
      %v972 = vpop.f32.mrb[0].mxu0
      %973 = vmatprep.mubr.bf16.mxu0 0
      %974 = vmatmul.mubr.bf16.gmra.mrb[0].mxu0 %v922
      %v975 = vpop.f32.mrb[0].mxu0
      %v976 = vadd.f32 0.0, %v975
      %v977 = vpop.f32.mrb[0].mxu0
      %v978 = vpop.f32.mrb[0].mxu0
      %v979 = vadd.f32 0.0, %v978
      %v980 = vpop.f32.mrb[0].mxu0
      %981 = vmatprep.mubr.bf16.mxu0 0
      %982 = vmatmul.mubr.bf16.gmra.mrb[0].mxu0 %v925
      %v983 = vpop.f32.mrb[0].mxu0
      %v984 = vadd.f32 0.0, %v983
      %v985 = vpop.f32.mrb[0].mxu0
      %v986 = vpop.f32.mrb[0].mxu0
      %v987 = vadd.f32 0.0, %v986
      %v988 = vpop.f32.mrb[0].mxu0
      %989 = vmatprep.mubr.bf16.mxu0 0
      %990 = vmatmul.mubr.bf16.gmra.mrb[0].mxu0 %v928
      %v991 = vpop.f32.mrb[0].mxu0
      %v992 = vadd.f32 0.0, %v991
      %v993 = vpop.f32.mrb[0].mxu0
      %v994 = vpop.f32.mrb[0].mxu0
      %v995 = vadd.f32 0.0, %v994
      %v996 = vpop.f32.mrb[0].mxu0
      %997 = vdwg.mxu0
      %v998 = vadd.f32 %v898, %v968
      %v999 = vadd.f32 %v899, %v971
      %v1000 = vadd.f32 %v900, %v976
      %v1001 = vadd.f32 %v901, %v979
      %v1002 = vadd.f32 %v902, %v984
      %v1003 = vadd.f32 %v903, %v987
      %v1004 = vadd.f32 %v904, %v992
      %v1005 = vadd.f32 %v905, %v995
      %v1006 = vpack.c.bf16 %v328, %v324
      %v1007 = vpack.c.bf16 %v336, %v332
      %v1008 = vpack.c.bf16 %v344, %v340
      %v1009 = vpack.c.bf16 %v352, %v348
      %s1010 = scalar_lea.vmem %s1, 24
      %v1011 = vld [vmem:[%s1010] sm:$0xf]
      %v1013 = vsel %vm414, %v1006, 0
      %v1016 = vsel %vm414, %v1007, 0
      %v1019 = vsel %vm414, %v1008, 0
      %v1022 = vsel %vm414, %v1009, 0
      %v1025 = vsel %vm427, %v1011, 0
      %1027 = vmatprep.subr.bf16.mxu0 0
      %1028 = vmatpush1.bf16.msra.mxu0 %v1025
      %1029 = vmatprep.subr.bf16.mxu0 0
      %1030 = vmatpush1.bf16.msra.mxu0 0
      %1031 = vmatprep.subr.bf16.mxu0 0
      %1032 = vmatpush1.bf16.msra.mxu0 0
      %1033 = vmatprep.subr.bf16.mxu0 0
      %1034 = vmatpush1.bf16.msra.mxu0 0
      %1035 = vmatprep.subr.bf16.mxu0 0
      %1036 = vmatpush1.bf16.msra.mxu0 0
      %1037 = vmatprep.subr.bf16.mxu0 0
      %1038 = vmatpush1.bf16.msra.mxu0 0
      %1039 = vmatprep.subr.bf16.mxu0 0
      %1040 = vmatpush1.bf16.msra.mxu0 0
      %1041 = vmatprep.subr.bf16.mxu0 0
      %1042 = vmatpush1.bf16.msra.mxu0 0
      %1043 = vmatprep.subr.bf16.mxu0 0
      %1044 = vmatpush1.bf16.msra.mxu0 0
      %1045 = vmatprep.subr.bf16.mxu0 0
      %1046 = vmatpush1.bf16.msra.mxu0 0
      %1047 = vmatprep.subr.bf16.mxu0 0
      %1048 = vmatpush1.bf16.msra.mxu0 0
      %1049 = vmatprep.subr.bf16.mxu0 0
      %1050 = vmatpush1.bf16.msra.mxu0 0
      %1051 = vmatprep.subr.bf16.mxu0 0
      %1052 = vmatpush1.bf16.msra.mxu0 0
      %1053 = vmatprep.subr.bf16.mxu0 0
      %1054 = vmatpush1.bf16.msra.mxu0 0
      %1055 = vmatprep.subr.bf16.mxu0 0
      %1056 = vmatpush1.bf16.msra.mxu0 0
      %1057 = vmatprep.subr.bf16.mxu0 0
      %1058 = vmatpush1.bf16.msra.mxu0 0
      %1059 = vmatprep.mubr.bf16.mxu0 0
      %1060 = vmatmul.mubr.bf16.gmra.mrb[0].mxu0 %v1013
      %v1061 = vpop.f32.mrb[0].mxu0
      %v1062 = vadd.f32 0.0, %v1061
      %v1063 = vpop.f32.mrb[0].mxu0
      %v1064 = vpop.f32.mrb[0].mxu0
      %v1065 = vadd.f32 0.0, %v1064
      %v1066 = vpop.f32.mrb[0].mxu0
      %1067 = vmatprep.mubr.bf16.mxu0 0
      %1068 = vmatmul.mubr.bf16.gmra.mrb[0].mxu0 %v1016
      %v1069 = vpop.f32.mrb[0].mxu0
      %v1070 = vadd.f32 0.0, %v1069
      %v1071 = vpop.f32.mrb[0].mxu0
      %v1072 = vpop.f32.mrb[0].mxu0
      %v1073 = vadd.f32 0.0, %v1072
      %v1074 = vpop.f32.mrb[0].mxu0
      %1075 = vmatprep.mubr.bf16.mxu0 0
      %1076 = vmatmul.mubr.bf16.gmra.mrb[0].mxu0 %v1019
      %v1077 = vpop.f32.mrb[0].mxu0
      %v1078 = vadd.f32 0.0, %v1077
      %v1079 = vpop.f32.mrb[0].mxu0
      %v1080 = vpop.f32.mrb[0].mxu0
      %v1081 = vadd.f32 0.0, %v1080
      %v1082 = vpop.f32.mrb[0].mxu0
      %1083 = vmatprep.mubr.bf16.mxu0 0
      %1084 = vmatmul.mubr.bf16.gmra.mrb[0].mxu0 %v1022
      %v1085 = vpop.f32.mrb[0].mxu0
      %v1086 = vadd.f32 0.0, %v1085
      %v1087 = vpop.f32.mrb[0].mxu0
      %v1088 = vpop.f32.mrb[0].mxu0
      %v1089 = vadd.f32 0.0, %v1088
      %v1090 = vpop.f32.mrb[0].mxu0
      %1091 = vdwg.mxu0
      %v1092 = vadd.f32 %v998, %v1062
      %v1093 = vadd.f32 %v999, %v1065
      %v1094 = vadd.f32 %v1000, %v1070
      %v1095 = vadd.f32 %v1001, %v1073
      %v1096 = vadd.f32 %v1002, %v1078
      %v1097 = vadd.f32 %v1003, %v1081
      %v1098 = vadd.f32 %v1004, %v1086
      %v1099 = vadd.f32 %v1005, %v1089
      %v1102 = vrot.slane %v352, 1
      %v1103 = vrot.slane %v353, 1
      %v1104 = vsel %vm375, %v1102, %v1103
      %v1106 = vpack.c.bf16 %v694, %v691
      %v1107 = vpack.c.bf16 %v700, %v697
      %v1108 = vpack.c.bf16 %v706, %v703
      %v1109 = vpack.c.bf16 %v1104, %v709
      %s1110 = scalar_lea.vmem %s1, 28
      %v1111 = vld [vmem:[%s1110] sm:$0xf]
      %v1113 = vsel %vm414, %v1106, 0
      %v1116 = vsel %vm414, %v1107, 0
      %v1119 = vsel %vm414, %v1108, 0
      %v1122 = vsel %vm414, %v1109, 0
      %v1125 = vsel %vm427, %v1111, 0
      %1127 = vmatprep.subr.bf16.mxu0 0
      %1128 = vmatpush1.bf16.msra.mxu0 %v1125
      %1129 = vmatprep.subr.bf16.mxu0 0
      %1130 = vmatpush1.bf16.msra.mxu0 0
      %1131 = vmatprep.subr.bf16.mxu0 0
      %1132 = vmatpush1.bf16.msra.mxu0 0
      %1133 = vmatprep.subr.bf16.mxu0 0
      %1134 = vmatpush1.bf16.msra.mxu0 0
      %1135 = vmatprep.subr.bf16.mxu0 0
      %1136 = vmatpush1.bf16.msra.mxu0 0
      %1137 = vmatprep.subr.bf16.mxu0 0
      %1138 = vmatpush1.bf16.msra.mxu0 0
      %1139 = vmatprep.subr.bf16.mxu0 0
      %1140 = vmatpush1.bf16.msra.mxu0 0
      %1141 = vmatprep.subr.bf16.mxu0 0
      %1142 = vmatpush1.bf16.msra.mxu0 0
      %1143 = vmatprep.subr.bf16.mxu0 0
      %1144 = vmatpush1.bf16.msra.mxu0 0
      %1145 = vmatprep.subr.bf16.mxu0 0
      %1146 = vmatpush1.bf16.msra.mxu0 0
      %1147 = vmatprep.subr.bf16.mxu0 0
      %1148 = vmatpush1.bf16.msra.mxu0 0
      %1149 = vmatprep.subr.bf16.mxu0 0
      %1150 = vmatpush1.bf16.msra.mxu0 0
      %1151 = vmatprep.subr.bf16.mxu0 0
      %1152 = vmatpush1.bf16.msra.mxu0 0
      %1153 = vmatprep.subr.bf16.mxu0 0
      %1154 = vmatpush1.bf16.msra.mxu0 0
      %1155 = vmatprep.subr.bf16.mxu0 0
      %1156 = vmatpush1.bf16.msra.mxu0 0
      %1157 = vmatprep.subr.bf16.mxu0 0
      %1158 = vmatpush1.bf16.msra.mxu0 0
      %1159 = vmatprep.mubr.bf16.mxu0 0
      %1160 = vmatmul.mubr.bf16.gmra.mrb[0].mxu0 %v1113
      %v1161 = vpop.f32.mrb[0].mxu0
      %v1162 = vadd.f32 0.0, %v1161
      %v1163 = vpop.f32.mrb[0].mxu0
      %v1164 = vpop.f32.mrb[0].mxu0
      %v1165 = vadd.f32 0.0, %v1164
      %v1166 = vpop.f32.mrb[0].mxu0
      %1167 = vmatprep.mubr.bf16.mxu0 0
      %1168 = vmatmul.mubr.bf16.gmra.mrb[0].mxu0 %v1116
      %v1169 = vpop.f32.mrb[0].mxu0
      %v1170 = vadd.f32 0.0, %v1169
      %v1171 = vpop.f32.mrb[0].mxu0
      %v1172 = vpop.f32.mrb[0].mxu0
      %v1173 = vadd.f32 0.0, %v1172
      %v1174 = vpop.f32.mrb[0].mxu0
      %1175 = vmatprep.mubr.bf16.mxu0 0
      %1176 = vmatmul.mubr.bf16.gmra.mrb[0].mxu0 %v1119
      %v1177 = vpop.f32.mrb[0].mxu0
      %v1178 = vadd.f32 0.0, %v1177
      %v1179 = vpop.f32.mrb[0].mxu0
      %v1180 = vpop.f32.mrb[0].mxu0
      %v1181 = vadd.f32 0.0, %v1180
      %v1182 = vpop.f32.mrb[0].mxu0
      %1183 = vmatprep.mubr.bf16.mxu0 0
      %1184 = vmatmul.mubr.bf16.gmra.mrb[0].mxu0 %v1122
      %v1185 = vpop.f32.mrb[0].mxu0
      %v1186 = vadd.f32 0.0, %v1185
      %v1187 = vpop.f32.mrb[0].mxu0
      %v1188 = vpop.f32.mrb[0].mxu0
      %v1189 = vadd.f32 0.0, %v1188
      %v1190 = vpop.f32.mrb[0].mxu0
      %1191 = vdwg.mxu0
      %v1192 = vadd.f32 %v1092, %v1162
      %v1193 = vadd.f32 %v1093, %v1165
      %v1194 = vadd.f32 %v1094, %v1170
      %v1195 = vadd.f32 %v1095, %v1173
      %v1196 = vadd.f32 %v1096, %v1178
      %v1197 = vadd.f32 %v1097, %v1181
      %v1198 = vadd.f32 %v1098, %v1186
      %v1199 = vadd.f32 %v1099, %v1189
      %v1200 = vmax.f32 %v1192, 0.0
      %v1201 = vmax.f32 %v1193, 0.0
      %v1202 = vmax.f32 %v1194, 0.0
      %v1203 = vmax.f32 %v1195, 0.0
      %v1204 = vmax.f32 %v1196, 0.0
      %v1205 = vmax.f32 %v1197, 0.0
      %v1206 = vmax.f32 %v1198, 0.0
      %v1207 = vmax.f32 %v1199, 0.0
      %1208 = vst [vmem:[#allocation2] sm:$0xff] 0.0
      %1209 = vst [vmem:[#allocation2 + $0x8] sm:$0x3] 0.0
      %1210 = vst [vmem:[#allocation2 + $0x10] sm:$0xff] 0.0
      %1211 = vst [vmem:[#allocation2 + $0x18] sm:$0x3] 0.0
      %1212 = vst [vmem:[#allocation2 + $0x20] sm:$0xff] 0.0
      %1213 = vst [vmem:[#allocation2 + $0x28] sm:$0x3] 0.0
      %1214 = vst [vmem:[#allocation2 + $0x30] sm:$0xff] 0.0
      %1215 = vst [vmem:[#allocation2 + $0x38] sm:$0x3] 0.0
      %1216 = vst [vmem:[#allocation2 + $0x40] sm:$0xff] 0.0
      %1217 = vst [vmem:[#allocation2 + $0x48] sm:$0x3] 0.0
      %1218 = vst [vmem:[#allocation2 + $0x50] sm:$0xff] 0.0
      %1219 = vst [vmem:[#allocation2 + $0x58] sm:$0x3] 0.0
      %1220 = vst [vmem:[#allocation2 + $0x60] sm:$0xff] 0.0
      %1221 = vst [vmem:[#allocation2 + $0x68] sm:$0x3] 0.0
      %1222 = vst [vmem:[#allocation2 + $0x70] sm:$0xff] 0.0
      %1223 = vst [vmem:[#allocation2 + $0x78] sm:$0x3] 0.0
      %1224 = vst [vmem:[#allocation2 + $0x80] sm:$0xff] 0.0
      %1225 = vst [vmem:[#allocation2 + $0x88] sm:$0x3] 0.0
      %1226 = vst [vmem:[#allocation2 + $0x90] sm:$0xff] 0.0
      %1227 = vst [vmem:[#allocation2 + $0x98] sm:$0x3] 0.0
      %s1228 = scalar_lea.vmem [#allocation2], 16
      %1229 = vst [vmem:[%s1228 + $0x1] sm:$0xff] %v1200
      %1230 = vst [vmem:[%s1228 + $0x11] sm:$0xff] %v1201
      %1231 = vst [vmem:[%s1228 + $0x21] sm:$0xff] %v1202
      %1232 = vst [vmem:[%s1228 + $0x31] sm:$0xff] %v1203
      %1233 = vst [vmem:[%s1228 + $0x41] sm:$0xff] %v1204
      %1234 = vst [vmem:[%s1228 + $0x51] sm:$0xff] %v1205
      %1235 = vst [vmem:[%s1228 + $0x61] sm:$0xff] %v1206
      %1236 = vst [vmem:[%s1228 + $0x71] sm:$0xff] %v1207
      %v1237 = vld [vmem:[#allocation2] sm:$0xff]
      %v1238 = vld [vmem:[#allocation2 + $0x10] sm:$0xff]
      %v1239 = vld [vmem:[#allocation2 + $0x20] sm:$0xff]
      %v1240 = vld [vmem:[#allocation2 + $0x30] sm:$0xff]
      %v1241 = vld [vmem:[#allocation2 + $0x40] sm:$0xff]
      %v1242 = vld [vmem:[#allocation2 + $0x50] sm:$0xff]
      %v1243 = vld [vmem:[#allocation2 + $0x60] sm:$0xff]
      %v1244 = vld [vmem:[#allocation2 + $0x70] sm:$0xff]
      %v1245 = vpack.c.bf16 %v1238, %v1237
      %v1246 = vpack.c.bf16 %v1240, %v1239
      %v1247 = vpack.c.bf16 %v1242, %v1241
      %v1248 = vpack.c.bf16 %v1244, %v1243
      %s1249 = scalar_lea.vmem %s2, 960
      %v1250 = vld [vmem:[%s1249] sm:$0xf]
      %v1251 = vld [vmem:[%s1249 + $0x4] sm:$0xf]
      %v1252 = vld [vmem:[%s1249 + $0x8] sm:$0xf]
      %v1253 = vld [vmem:[%s1249 + $0xc] sm:$0xf]
      %v1254 = vld [vmem:[%s1249 + $0x10] sm:$0xf]
      %v1255 = vld [vmem:[%s1249 + $0x14] sm:$0xf]
      %v1256 = vld [vmem:[%s1249 + $0x18] sm:$0xf]
      %v1257 = vld [vmem:[%s1249 + $0x1c] sm:$0xf]
      %v1258 = vld [vmem:[%s1249 + $0x20] sm:$0xf]
      %v1259 = vld [vmem:[%s1249 + $0x24] sm:$0xf]
      %v1260 = vld [vmem:[%s1249 + $0x28] sm:$0xf]
      %v1261 = vld [vmem:[%s1249 + $0x2c] sm:$0xf]
      %v1262 = vld [vmem:[%s1249 + $0x30] sm:$0xf]
      %v1263 = vld [vmem:[%s1249 + $0x34] sm:$0xf]
      %v1264 = vld [vmem:[%s1249 + $0x38] sm:$0xf]
      %v1265 = vld [vmem:[%s1249 + $0x3c] sm:$0xf]
      %v1266 = vld [vmem:[#allocation2 + $0x1] sm:$0xff]
      %v1267 = vld [vmem:[#allocation2 + $0x11] sm:$0xff]
      %v1268 = vld [vmem:[#allocation2 + $0x21] sm:$0xff]
      %v1269 = vld [vmem:[#allocation2 + $0x31] sm:$0xff]
      %v1270 = vld [vmem:[#allocation2 + $0x41] sm:$0xff]
      %v1271 = vld [vmem:[#allocation2 + $0x51] sm:$0xff]
      %v1272 = vld [vmem:[#allocation2 + $0x61] sm:$0xff]
      %v1273 = vld [vmem:[#allocation2 + $0x71] sm:$0xff]
      %v1274 = vpack.c.bf16 %v1267, %v1266
      %v1275 = vpack.c.bf16 %v1269, %v1268
      %v1276 = vpack.c.bf16 %v1271, %v1270
      %v1277 = vpack.c.bf16 %v1273, %v1272
      %s1278 = scalar_lea.vmem %s2, 832
      %v1279 = vld [vmem:[%s1278] sm:$0xf]
      %v1280 = vld [vmem:[%s1278 + $0x4] sm:$0xf]
      %v1281 = vld [vmem:[%s1278 + $0x8] sm:$0xf]
      %v1282 = vld [vmem:[%s1278 + $0xc] sm:$0xf]
      %v1283 = vld [vmem:[%s1278 + $0x10] sm:$0xf]
      %v1284 = vld [vmem:[%s1278 + $0x14] sm:$0xf]
      %v1285 = vld [vmem:[%s1278 + $0x18] sm:$0xf]
      %v1286 = vld [vmem:[%s1278 + $0x1c] sm:$0xf]
      %v1287 = vld [vmem:[%s1278 + $0x20] sm:$0xf]
      %v1288 = vld [vmem:[%s1278 + $0x24] sm:$0xf]
      %v1289 = vld [vmem:[%s1278 + $0x28] sm:$0xf]
      %v1290 = vld [vmem:[%s1278 + $0x2c] sm:$0xf]
      %v1291 = vld [vmem:[%s1278 + $0x30] sm:$0xf]
      %v1292 = vld [vmem:[%s1278 + $0x34] sm:$0xf]
      %v1293 = vld [vmem:[%s1278 + $0x38] sm:$0xf]
      %v1294 = vld [vmem:[%s1278 + $0x3c] sm:$0xf]
      %v1311 = vunpack.c.l.b16 %v1279
      %v1312 = vunpack.c.l.b16 %v1280
      %v1313 = vunpack.c.l.b16 %v1281
      %v1314 = vunpack.c.l.b16 %v1282
      %v1315 = vunpack.c.l.b16 %v1283
      %v1316 = vunpack.c.l.b16 %v1284
      %v1317 = vunpack.c.l.b16 %v1285
      %v1318 = vunpack.c.l.b16 %v1286
      %v1319 = vunpack.c.l.b16 %v1287
      %v1320 = vunpack.c.l.b16 %v1288
      %v1321 = vunpack.c.l.b16 %v1289
      %v1322 = vunpack.c.l.b16 %v1290
      %v1323 = vunpack.c.l.b16 %v1291
      %v1324 = vunpack.c.l.b16 %v1292
      %v1325 = vunpack.c.l.b16 %v1293
      %v1326 = vunpack.c.l.b16 %v1294
      %v1327 = vpack.c.b16 %v1312, %v1311
      %v1328 = vpack.c.b16 %v1314, %v1313
      %v1329 = vpack.c.b16 %v1316, %v1315
      %v1330 = vpack.c.b16 %v1318, %v1317
      %v1331 = vpack.c.b16 %v1320, %v1319
      %v1332 = vpack.c.b16 %v1322, %v1321
      %v1333 = vpack.c.b16 %v1324, %v1323
      %v1334 = vpack.c.b16 %v1326, %v1325
      %1343 = vmatprep.subr.bf16.mxu0 0
      %1344 = vmatpush1.bf16.msra.mxu0 %v1327
      %1345 = vmatprep.subr.bf16.mxu0 0
      %1346 = vmatpush1.bf16.msra.mxu0 %v1328
      %1347 = vmatprep.subr.bf16.mxu0 0
      %1348 = vmatpush1.bf16.msra.mxu0 %v1329
      %1349 = vmatprep.subr.bf16.mxu0 0
      %1350 = vmatpush1.bf16.msra.mxu0 %v1330
      %1351 = vmatprep.subr.bf16.mxu0 0
      %1352 = vmatpush1.bf16.msra.mxu0 %v1331
      %1353 = vmatprep.subr.bf16.mxu0 0
      %1354 = vmatpush1.bf16.msra.mxu0 %v1332
      %1355 = vmatprep.subr.bf16.mxu0 0
      %1356 = vmatpush1.bf16.msra.mxu0 %v1333
      %1357 = vmatprep.subr.bf16.mxu0 0
      %1358 = vmatpush1.bf16.msra.mxu0 %v1334
      %1359 = vmatprep.subr.bf16.mxu0 0
      %1360 = vmatpush1.bf16.msra.mxu0 0
      %1361 = vmatprep.subr.bf16.mxu0 0
      %1362 = vmatpush1.bf16.msra.mxu0 0
      %1363 = vmatprep.subr.bf16.mxu0 0
      %1364 = vmatpush1.bf16.msra.mxu0 0
      %1365 = vmatprep.subr.bf16.mxu0 0
      %1366 = vmatpush1.bf16.msra.mxu0 0
      %1367 = vmatprep.subr.bf16.mxu0 0
      %1368 = vmatpush1.bf16.msra.mxu0 0
      %1369 = vmatprep.subr.bf16.mxu0 0
      %1370 = vmatpush1.bf16.msra.mxu0 0
      %1371 = vmatprep.subr.bf16.mxu0 0
      %1372 = vmatpush1.bf16.msra.mxu0 0
      %1373 = vmatprep.subr.bf16.mxu0 0
      %1374 = vmatpush1.bf16.msra.mxu0 0
      %1375 = vmatprep.mubr.bf16.mxu0 0
      %1376 = vmatmul.mubr.bf16.gmra.mrb[0].mxu0 %v1274
      %v1377 = vpop.f32.mrb[0].mxu0
      %v1378 = vadd.f32 0.0, %v1377
      %v1379 = vpop.f32.mrb[0].mxu0
      %v1380 = vpop.f32.mrb[0].mxu0
      %v1381 = vadd.f32 0.0, %v1380
      %v1382 = vpop.f32.mrb[0].mxu0
      %1383 = vmatprep.mubr.bf16.mxu0 0
      %1384 = vmatmul.mubr.bf16.gmra.mrb[0].mxu0 %v1275
      %v1385 = vpop.f32.mrb[0].mxu0
      %v1386 = vadd.f32 0.0, %v1385
      %v1387 = vpop.f32.mrb[0].mxu0
      %v1388 = vpop.f32.mrb[0].mxu0
      %v1389 = vadd.f32 0.0, %v1388
      %v1390 = vpop.f32.mrb[0].mxu0
      %1391 = vmatprep.mubr.bf16.mxu0 0
      %1392 = vmatmul.mubr.bf16.gmra.mrb[0].mxu0 %v1276
      %v1393 = vpop.f32.mrb[0].mxu0
      %v1394 = vadd.f32 0.0, %v1393
      %v1395 = vpop.f32.mrb[0].mxu0
      %v1396 = vpop.f32.mrb[0].mxu0
      %v1397 = vadd.f32 0.0, %v1396
      %v1398 = vpop.f32.mrb[0].mxu0
      %1399 = vmatprep.mubr.bf16.mxu0 0
      %1400 = vmatmul.mubr.bf16.gmra.mrb[0].mxu0 %v1277
      %v1401 = vpop.f32.mrb[0].mxu0
      %v1402 = vadd.f32 0.0, %v1401
      %v1403 = vpop.f32.mrb[0].mxu0
      %v1404 = vpop.f32.mrb[0].mxu0
      %v1405 = vadd.f32 0.0, %v1404
      %v1406 = vpop.f32.mrb[0].mxu0
      %1407 = vdwg.mxu0
      %v1424 = vunpack.c.l.b16 %v1250
      %v1425 = vunpack.c.l.b16 %v1251
      %v1426 = vunpack.c.l.b16 %v1252
      %v1427 = vunpack.c.l.b16 %v1253
      %v1428 = vunpack.c.l.b16 %v1254
      %v1429 = vunpack.c.l.b16 %v1255
      %v1430 = vunpack.c.l.b16 %v1256
      %v1431 = vunpack.c.l.b16 %v1257
      %v1432 = vunpack.c.l.b16 %v1258
      %v1433 = vunpack.c.l.b16 %v1259
      %v1434 = vunpack.c.l.b16 %v1260
      %v1435 = vunpack.c.l.b16 %v1261
      %v1436 = vunpack.c.l.b16 %v1262
      %v1437 = vunpack.c.l.b16 %v1263
      %v1438 = vunpack.c.l.b16 %v1264
      %v1439 = vunpack.c.l.b16 %v1265
      %v1440 = vpack.c.b16 %v1425, %v1424
      %v1441 = vpack.c.b16 %v1427, %v1426
      %v1442 = vpack.c.b16 %v1429, %v1428
      %v1443 = vpack.c.b16 %v1431, %v1430
      %v1444 = vpack.c.b16 %v1433, %v1432
      %v1445 = vpack.c.b16 %v1435, %v1434
      %v1446 = vpack.c.b16 %v1437, %v1436
      %v1447 = vpack.c.b16 %v1439, %v1438
      %1456 = vmatprep.subr.bf16.mxu0 0
      %1457 = vmatpush1.bf16.msra.mxu0 %v1440
      %1458 = vmatprep.subr.bf16.mxu0 0
      %1459 = vmatpush1.bf16.msra.mxu0 %v1441
      %1460 = vmatprep.subr.bf16.mxu0 0
      %1461 = vmatpush1.bf16.msra.mxu0 %v1442
      %1462 = vmatprep.subr.bf16.mxu0 0
      %1463 = vmatpush1.bf16.msra.mxu0 %v1443
      %1464 = vmatprep.subr.bf16.mxu0 0
      %1465 = vmatpush1.bf16.msra.mxu0 %v1444
      %1466 = vmatprep.subr.bf16.mxu0 0
      %1467 = vmatpush1.bf16.msra.mxu0 %v1445
      %1468 = vmatprep.subr.bf16.mxu0 0
      %1469 = vmatpush1.bf16.msra.mxu0 %v1446
      %1470 = vmatprep.subr.bf16.mxu0 0
      %1471 = vmatpush1.bf16.msra.mxu0 %v1447
      %1472 = vmatprep.subr.bf16.mxu0 0
      %1473 = vmatpush1.bf16.msra.mxu0 0
      %1474 = vmatprep.subr.bf16.mxu0 0
      %1475 = vmatpush1.bf16.msra.mxu0 0
      %1476 = vmatprep.subr.bf16.mxu0 0
      %1477 = vmatpush1.bf16.msra.mxu0 0
      %1478 = vmatprep.subr.bf16.mxu0 0
      %1479 = vmatpush1.bf16.msra.mxu0 0
      %1480 = vmatprep.subr.bf16.mxu0 0
      %1481 = vmatpush1.bf16.msra.mxu0 0
      %1482 = vmatprep.subr.bf16.mxu0 0
      %1483 = vmatpush1.bf16.msra.mxu0 0
      %1484 = vmatprep.subr.bf16.mxu0 0
      %1485 = vmatpush1.bf16.msra.mxu0 0
      %1486 = vmatprep.subr.bf16.mxu0 0
      %1487 = vmatpush1.bf16.msra.mxu0 0
      %1488 = vmatprep.mubr.bf16.mxu0 0
      %1489 = vmatmul.mubr.bf16.gmra.mrb[0].mxu0 %v1245
      %v1490 = vpop.f32.mrb[0].mxu0
      %v1491 = vadd.f32 %v1378, %v1490
      %v1492 = vpop.f32.mrb[0].mxu0
      %v1493 = vpop.f32.mrb[0].mxu0
      %v1494 = vadd.f32 %v1381, %v1493
      %v1495 = vpop.f32.mrb[0].mxu0
      %1496 = vmatprep.mubr.bf16.mxu0 0
      %1497 = vmatmul.mubr.bf16.gmra.mrb[0].mxu0 %v1246
      %v1498 = vpop.f32.mrb[0].mxu0
      %v1499 = vadd.f32 %v1386, %v1498
      %v1500 = vpop.f32.mrb[0].mxu0
      %v1501 = vpop.f32.mrb[0].mxu0
      %v1502 = vadd.f32 %v1389, %v1501
      %v1503 = vpop.f32.mrb[0].mxu0
      %1504 = vmatprep.mubr.bf16.mxu0 0
      %1505 = vmatmul.mubr.bf16.gmra.mrb[0].mxu0 %v1247
      %v1506 = vpop.f32.mrb[0].mxu0
      %v1507 = vadd.f32 %v1394, %v1506
      %v1508 = vpop.f32.mrb[0].mxu0
      %v1509 = vpop.f32.mrb[0].mxu0
      %v1510 = vadd.f32 %v1397, %v1509
      %v1511 = vpop.f32.mrb[0].mxu0
      %1512 = vmatprep.mubr.bf16.mxu0 0
      %1513 = vmatmul.mubr.bf16.gmra.mrb[0].mxu0 %v1248
      %v1514 = vpop.f32.mrb[0].mxu0
      %v1515 = vadd.f32 %v1402, %v1514
      %v1516 = vpop.f32.mrb[0].mxu0
      %v1517 = vpop.f32.mrb[0].mxu0
      %v1518 = vadd.f32 %v1405, %v1517
      %v1519 = vpop.f32.mrb[0].mxu0
      %1520 = vdwg.mxu0
      %v1521 = vld [vmem:[%s1228] sm:$0xff]
      %v1522 = vld [vmem:[%s1228 + $0x10] sm:$0xff]
      %v1523 = vld [vmem:[%s1228 + $0x20] sm:$0xff]
      %v1524 = vld [vmem:[%s1228 + $0x30] sm:$0xff]
      %v1525 = vld [vmem:[%s1228 + $0x40] sm:$0xff]
      %v1526 = vld [vmem:[%s1228 + $0x50] sm:$0xff]
      %v1527 = vld [vmem:[%s1228 + $0x60] sm:$0xff]
      %v1528 = vld [vmem:[%s1228 + $0x70] sm:$0xff]
      %v1529 = vpack.c.bf16 %v1522, %v1521
      %v1530 = vpack.c.bf16 %v1524, %v1523
      %v1531 = vpack.c.bf16 %v1526, %v1525
      %v1532 = vpack.c.bf16 %v1528, %v1527
      %s1533 = scalar_lea.vmem %s2, 448
      %v1534 = vld [vmem:[%s1533] sm:$0xf]
      %v1535 = vld [vmem:[%s1533 + $0x4] sm:$0xf]
      %v1536 = vld [vmem:[%s1533 + $0x8] sm:$0xf]
      %v1537 = vld [vmem:[%s1533 + $0xc] sm:$0xf]
      %v1538 = vld [vmem:[%s1533 + $0x10] sm:$0xf]
      %v1539 = vld [vmem:[%s1533 + $0x14] sm:$0xf]
      %v1540 = vld [vmem:[%s1533 + $0x18] sm:$0xf]
      %v1541 = vld [vmem:[%s1533 + $0x1c] sm:$0xf]
      %v1542 = vld [vmem:[%s1533 + $0x20] sm:$0xf]
      %v1543 = vld [vmem:[%s1533 + $0x24] sm:$0xf]
      %v1544 = vld [vmem:[%s1533 + $0x28] sm:$0xf]
      %v1545 = vld [vmem:[%s1533 + $0x2c] sm:$0xf]
      %v1546 = vld [vmem:[%s1533 + $0x30] sm:$0xf]
      %v1547 = vld [vmem:[%s1533 + $0x34] sm:$0xf]
      %v1548 = vld [vmem:[%s1533 + $0x38] sm:$0xf]
      %v1549 = vld [vmem:[%s1533 + $0x3c] sm:$0xf]
      %v1566 = vunpack.c.l.b16 %v1534
      %v1567 = vunpack.c.l.b16 %v1535
      %v1568 = vunpack.c.l.b16 %v1536
      %v1569 = vunpack.c.l.b16 %v1537
      %v1570 = vunpack.c.l.b16 %v1538
      %v1571 = vunpack.c.l.b16 %v1539
      %v1572 = vunpack.c.l.b16 %v1540
      %v1573 = vunpack.c.l.b16 %v1541
      %v1574 = vunpack.c.l.b16 %v1542
      %v1575 = vunpack.c.l.b16 %v1543
      %v1576 = vunpack.c.l.b16 %v1544
      %v1577 = vunpack.c.l.b16 %v1545
      %v1578 = vunpack.c.l.b16 %v1546
      %v1579 = vunpack.c.l.b16 %v1547
      %v1580 = vunpack.c.l.b16 %v1548
      %v1581 = vunpack.c.l.b16 %v1549
      %v1582 = vpack.c.b16 %v1567, %v1566
      %v1583 = vpack.c.b16 %v1569, %v1568
      %v1584 = vpack.c.b16 %v1571, %v1570
      %v1585 = vpack.c.b16 %v1573, %v1572
      %v1586 = vpack.c.b16 %v1575, %v1574
      %v1587 = vpack.c.b16 %v1577, %v1576
      %v1588 = vpack.c.b16 %v1579, %v1578
      %v1589 = vpack.c.b16 %v1581, %v1580
      %1598 = vmatprep.subr.bf16.mxu0 0
      %1599 = vmatpush1.bf16.msra.mxu0 %v1582
      %1600 = vmatprep.subr.bf16.mxu0 0
      %1601 = vmatpush1.bf16.msra.mxu0 %v1583
      %1602 = vmatprep.subr.bf16.mxu0 0
      %1603 = vmatpush1.bf16.msra.mxu0 %v1584
      %1604 = vmatprep.subr.bf16.mxu0 0
      %1605 = vmatpush1.bf16.msra.mxu0 %v1585
      %1606 = vmatprep.subr.bf16.mxu0 0
      %1607 = vmatpush1.bf16.msra.mxu0 %v1586
      %1608 = vmatprep.subr.bf16.mxu0 0
      %1609 = vmatpush1.bf16.msra.mxu0 %v1587
      %1610 = vmatprep.subr.bf16.mxu0 0
      %1611 = vmatpush1.bf16.msra.mxu0 %v1588
      %1612 = vmatprep.subr.bf16.mxu0 0
      %1613 = vmatpush1.bf16.msra.mxu0 %v1589
      %1614 = vmatprep.subr.bf16.mxu0 0
      %1615 = vmatpush1.bf16.msra.mxu0 0
      %1616 = vmatprep.subr.bf16.mxu0 0
      %1617 = vmatpush1.bf16.msra.mxu0 0
      %1618 = vmatprep.subr.bf16.mxu0 0
      %1619 = vmatpush1.bf16.msra.mxu0 0
      %1620 = vmatprep.subr.bf16.mxu0 0
      %1621 = vmatpush1.bf16.msra.mxu0 0
      %1622 = vmatprep.subr.bf16.mxu0 0
      %1623 = vmatpush1.bf16.msra.mxu0 0
      %1624 = vmatprep.subr.bf16.mxu0 0
      %1625 = vmatpush1.bf16.msra.mxu0 0
      %1626 = vmatprep.subr.bf16.mxu0 0
      %1627 = vmatpush1.bf16.msra.mxu0 0
      %1628 = vmatprep.subr.bf16.mxu0 0
      %1629 = vmatpush1.bf16.msra.mxu0 0
      %1630 = vmatprep.mubr.bf16.mxu0 0
      %1631 = vmatmul.mubr.bf16.gmra.mrb[0].mxu0 %v1529
      %v1632 = vpop.f32.mrb[0].mxu0
      %v1633 = vadd.f32 0.0, %v1632
      %v1634 = vpop.f32.mrb[0].mxu0
      %v1635 = vpop.f32.mrb[0].mxu0
      %v1636 = vadd.f32 0.0, %v1635
      %v1637 = vpop.f32.mrb[0].mxu0
      %1638 = vmatprep.mubr.bf16.mxu0 0
      %1639 = vmatmul.mubr.bf16.gmra.mrb[0].mxu0 %v1530
      %v1640 = vpop.f32.mrb[0].mxu0
      %v1641 = vadd.f32 0.0, %v1640
      %v1642 = vpop.f32.mrb[0].mxu0
      %v1643 = vpop.f32.mrb[0].mxu0
      %v1644 = vadd.f32 0.0, %v1643
      %v1645 = vpop.f32.mrb[0].mxu0
      %1646 = vmatprep.mubr.bf16.mxu0 0
      %1647 = vmatmul.mubr.bf16.gmra.mrb[0].mxu0 %v1531
      %v1648 = vpop.f32.mrb[0].mxu0
      %v1649 = vadd.f32 0.0, %v1648
      %v1650 = vpop.f32.mrb[0].mxu0
      %v1651 = vpop.f32.mrb[0].mxu0
      %v1652 = vadd.f32 0.0, %v1651
      %v1653 = vpop.f32.mrb[0].mxu0
      %1654 = vmatprep.mubr.bf16.mxu0 0
      %1655 = vmatmul.mubr.bf16.gmra.mrb[0].mxu0 %v1532
      %v1656 = vpop.f32.mrb[0].mxu0
      %v1657 = vadd.f32 0.0, %v1656
      %v1658 = vpop.f32.mrb[0].mxu0
      %v1659 = vpop.f32.mrb[0].mxu0
      %v1660 = vadd.f32 0.0, %v1659
      %v1661 = vpop.f32.mrb[0].mxu0
      %1662 = vdwg.mxu0
      %v1663 = vadd.f32 %v1491, %v1633
      %v1664 = vadd.f32 %v1494, %v1636
      %v1665 = vadd.f32 %v1499, %v1641
      %v1666 = vadd.f32 %v1502, %v1644
      %v1667 = vadd.f32 %v1507, %v1649
      %v1668 = vadd.f32 %v1510, %v1652
      %v1669 = vadd.f32 %v1515, %v1657
      %v1670 = vadd.f32 %v1518, %v1660
      %v1671 = vld [vmem:[%s1228 + $0x1] sm:$0xff]
      %v1672 = vld [vmem:[%s1228 + $0x11] sm:$0xff]
      %v1673 = vld [vmem:[%s1228 + $0x21] sm:$0xff]
      %v1674 = vld [vmem:[%s1228 + $0x31] sm:$0xff]
      %v1675 = vld [vmem:[%s1228 + $0x41] sm:$0xff]
      %v1676 = vld [vmem:[%s1228 + $0x51] sm:$0xff]
      %v1677 = vld [vmem:[%s1228 + $0x61] sm:$0xff]
      %v1678 = vld [vmem:[%s1228 + $0x71] sm:$0xff]
      %v1679 = vpack.c.bf16 %v1672, %v1671
      %v1680 = vpack.c.bf16 %v1674, %v1673
      %v1681 = vpack.c.bf16 %v1676, %v1675
      %v1682 = vpack.c.bf16 %v1678, %v1677
      %s1683 = scalar_lea.vmem %s2, 320
      %v1684 = vld [vmem:[%s1683] sm:$0xf]
      %v1685 = vld [vmem:[%s1683 + $0x4] sm:$0xf]
      %v1686 = vld [vmem:[%s1683 + $0x8] sm:$0xf]
      %v1687 = vld [vmem:[%s1683 + $0xc] sm:$0xf]
      %v1688 = vld [vmem:[%s1683 + $0x10] sm:$0xf]
      %v1689 = vld [vmem:[%s1683 + $0x14] sm:$0xf]
      %v1690 = vld [vmem:[%s1683 + $0x18] sm:$0xf]
      %v1691 = vld [vmem:[%s1683 + $0x1c] sm:$0xf]
      %v1692 = vld [vmem:[%s1683 + $0x20] sm:$0xf]
      %v1693 = vld [vmem:[%s1683 + $0x24] sm:$0xf]
      %v1694 = vld [vmem:[%s1683 + $0x28] sm:$0xf]
      %v1695 = vld [vmem:[%s1683 + $0x2c] sm:$0xf]
      %v1696 = vld [vmem:[%s1683 + $0x30] sm:$0xf]
      %v1697 = vld [vmem:[%s1683 + $0x34] sm:$0xf]
      %v1698 = vld [vmem:[%s1683 + $0x38] sm:$0xf]
      %v1699 = vld [vmem:[%s1683 + $0x3c] sm:$0xf]
      %v1716 = vunpack.c.l.b16 %v1684
      %v1717 = vunpack.c.l.b16 %v1685
      %v1718 = vunpack.c.l.b16 %v1686
      %v1719 = vunpack.c.l.b16 %v1687
      %v1720 = vunpack.c.l.b16 %v1688
      %v1721 = vunpack.c.l.b16 %v1689
      %v1722 = vunpack.c.l.b16 %v1690
      %v1723 = vunpack.c.l.b16 %v1691
      %v1724 = vunpack.c.l.b16 %v1692
      %v1725 = vunpack.c.l.b16 %v1693
      %v1726 = vunpack.c.l.b16 %v1694
      %v1727 = vunpack.c.l.b16 %v1695
      %v1728 = vunpack.c.l.b16 %v1696
      %v1729 = vunpack.c.l.b16 %v1697
      %v1730 = vunpack.c.l.b16 %v1698
      %v1731 = vunpack.c.l.b16 %v1699
      %v1732 = vpack.c.b16 %v1717, %v1716
      %v1733 = vpack.c.b16 %v1719, %v1718
      %v1734 = vpack.c.b16 %v1721, %v1720
      %v1735 = vpack.c.b16 %v1723, %v1722
      %v1736 = vpack.c.b16 %v1725, %v1724
      %v1737 = vpack.c.b16 %v1727, %v1726
      %v1738 = vpack.c.b16 %v1729, %v1728
      %v1739 = vpack.c.b16 %v1731, %v1730
      %1748 = vmatprep.subr.bf16.mxu0 0
      %1749 = vmatpush1.bf16.msra.mxu0 %v1732
      %1750 = vmatprep.subr.bf16.mxu0 0
      %1751 = vmatpush1.bf16.msra.mxu0 %v1733
      %1752 = vmatprep.subr.bf16.mxu0 0
      %1753 = vmatpush1.bf16.msra.mxu0 %v1734
      %1754 = vmatprep.subr.bf16.mxu0 0
      %1755 = vmatpush1.bf16.msra.mxu0 %v1735
      %1756 = vmatprep.subr.bf16.mxu0 0
      %1757 = vmatpush1.bf16.msra.mxu0 %v1736
      %1758 = vmatprep.subr.bf16.mxu0 0
      %1759 = vmatpush1.bf16.msra.mxu0 %v1737
      %1760 = vmatprep.subr.bf16.mxu0 0
      %1761 = vmatpush1.bf16.msra.mxu0 %v1738
      %1762 = vmatprep.subr.bf16.mxu0 0
      %1763 = vmatpush1.bf16.msra.mxu0 %v1739
      %1764 = vmatprep.subr.bf16.mxu0 0
      %1765 = vmatpush1.bf16.msra.mxu0 0
      %1766 = vmatprep.subr.bf16.mxu0 0
      %1767 = vmatpush1.bf16.msra.mxu0 0
      %1768 = vmatprep.subr.bf16.mxu0 0
      %1769 = vmatpush1.bf16.msra.mxu0 0
      %1770 = vmatprep.subr.bf16.mxu0 0
      %1771 = vmatpush1.bf16.msra.mxu0 0
      %1772 = vmatprep.subr.bf16.mxu0 0
      %1773 = vmatpush1.bf16.msra.mxu0 0
      %1774 = vmatprep.subr.bf16.mxu0 0
      %1775 = vmatpush1.bf16.msra.mxu0 0
      %1776 = vmatprep.subr.bf16.mxu0 0
      %1777 = vmatpush1.bf16.msra.mxu0 0
      %1778 = vmatprep.subr.bf16.mxu0 0
      %1779 = vmatpush1.bf16.msra.mxu0 0
      %1780 = vmatprep.mubr.bf16.mxu0 0
      %1781 = vmatmul.mubr.bf16.gmra.mrb[0].mxu0 %v1679
      %v1782 = vpop.f32.mrb[0].mxu0
      %v1783 = vadd.f32 0.0, %v1782
      %v1784 = vpop.f32.mrb[0].mxu0
      %v1785 = vpop.f32.mrb[0].mxu0
      %v1786 = vadd.f32 0.0, %v1785
      %v1787 = vpop.f32.mrb[0].mxu0
      %1788 = vmatprep.mubr.bf16.mxu0 0
      %1789 = vmatmul.mubr.bf16.gmra.mrb[0].mxu0 %v1680
      %v1790 = vpop.f32.mrb[0].mxu0
      %v1791 = vadd.f32 0.0, %v1790
      %v1792 = vpop.f32.mrb[0].mxu0
      %v1793 = vpop.f32.mrb[0].mxu0
      %v1794 = vadd.f32 0.0, %v1793
      %v1795 = vpop.f32.mrb[0].mxu0
      %1796 = vmatprep.mubr.bf16.mxu0 0
      %1797 = vmatmul.mubr.bf16.gmra.mrb[0].mxu0 %v1681
      %v1798 = vpop.f32.mrb[0].mxu0
      %v1799 = vadd.f32 0.0, %v1798
      %v1800 = vpop.f32.mrb[0].mxu0
      %v1801 = vpop.f32.mrb[0].mxu0
      %v1802 = vadd.f32 0.0, %v1801
      %v1803 = vpop.f32.mrb[0].mxu0
      %1804 = vmatprep.mubr.bf16.mxu0 0
      %1805 = vmatmul.mubr.bf16.gmra.mrb[0].mxu0 %v1682
      %v1806 = vpop.f32.mrb[0].mxu0
      %v1807 = vadd.f32 0.0, %v1806
      %v1808 = vpop.f32.mrb[0].mxu0
      %v1809 = vpop.f32.mrb[0].mxu0
      %v1810 = vadd.f32 0.0, %v1809
      %v1811 = vpop.f32.mrb[0].mxu0
      %1812 = vdwg.mxu0
      %v1813 = vadd.f32 %v1663, %v1783
      %v1814 = vadd.f32 %v1664, %v1786
      %v1815 = vadd.f32 %v1665, %v1791
      %v1816 = vadd.f32 %v1666, %v1794
      %v1817 = vadd.f32 %v1667, %v1799
      %v1818 = vadd.f32 %v1668, %v1802
      %v1819 = vadd.f32 %v1669, %v1807
      %v1820 = vadd.f32 %v1670, %v1810
      %1821 = vst [vmem:[%s204] sm:$0xff] %v1813
      %1822 = vst [vmem:[%s204 + $0x8] sm:$0xff] %v1814
      %1823 = vst [vmem:[%s204 + $0x10] sm:$0xff] %v1815
      %1824 = vst [vmem:[%s204 + $0x18] sm:$0xff] %v1816
      %1825 = vst [vmem:[%s204 + $0x20] sm:$0xff] %v1817
      %1826 = vst [vmem:[%s204 + $0x28] sm:$0xff] %v1818
      %1827 = vst [vmem:[%s204 + $0x30] sm:$0xff] %v1819
      %1828 = vst [vmem:[%s204 + $0x38] sm:$0xff] %v1820
      %v1829 = vadd.f32 %v1813, %v1814
      %v1830 = vadd.f32 %v1829, %v1815
      %v1831 = vadd.f32 %v1830, %v1816
      %v1832 = vadd.f32 %v1831, %v1817
      %v1833 = vadd.f32 %v1832, %v1818
      %v1834 = vadd.f32 %v1833, %v1819
      %v1835 = vadd.f32 %v1834, %v1820
      %v1836 = vrot.slane %v1835, 4
      %v1837 = vadd.f32 %v1835, %v1836
      %v1838 = vrot.slane %v1837, 2
      %v1839 = vadd.f32 %v1837, %v1838
      %v1840 = vrot.slane %v1839, 1
      %v1841 = vadd.f32 %v1839, %v1840
      %v1842 = vadd.f32 %v1841, 0.0
      %v1843 = vmul.f32 %v1813, %v1813
      %v1844 = vmul.f32 %v1814, %v1814
      %v1845 = vmul.f32 %v1815, %v1815
      %v1846 = vmul.f32 %v1816, %v1816
      %v1847 = vmul.f32 %v1817, %v1817
      %v1848 = vmul.f32 %v1818, %v1818
      %v1849 = vmul.f32 %v1819, %v1819
      %v1850 = vmul.f32 %v1820, %v1820
      %v1851 = vadd.f32 %v1843, %v1844
      %v1852 = vadd.f32 %v1851, %v1845
      %v1853 = vadd.f32 %v1852, %v1846
      %v1854 = vadd.f32 %v1853, %v1847
      %v1855 = vadd.f32 %v1854, %v1848
      %v1856 = vadd.f32 %v1855, %v1849
      %v1857 = vadd.f32 %v1856, %v1850
      %v1858 = vrot.slane %v1857, 4
      %v1859 = vadd.f32 %v1857, %v1858
      %v1860 = vrot.slane %v1859, 2
      %v1861 = vadd.f32 %v1859, %v1860
      %v1862 = vrot.slane %v1861, 1
      %v1863 = vadd.f32 %v1861, %v1862
      %v1864 = vadd.f32 %v1863, 0.0
      %v1865 = vld [vmem:[#allocation2 + $0x1] sm:$0xff]
      %v1866 = vld [vmem:[#allocation2 + $0x11] sm:$0xff]
      %v1867 = vld [vmem:[#allocation2 + $0x21] sm:$0xff]
      %v1868 = vld [vmem:[#allocation2 + $0x31] sm:$0xff]
      %v1869 = vld [vmem:[#allocation2 + $0x41] sm:$0xff]
      %v1870 = vld [vmem:[#allocation2 + $0x51] sm:$0xff]
      %v1871 = vld [vmem:[#allocation2 + $0x61] sm:$0xff]
      %v1872 = vld [vmem:[#allocation2 + $0x71] sm:$0xff]
      %v1873 = vpack.c.bf16 %v1866, %v1865
      %v1874 = vpack.c.bf16 %v1868, %v1867
      %v1875 = vpack.c.bf16 %v1870, %v1869
      %v1876 = vpack.c.bf16 %v1872, %v1871
      %s1877 = scalar_lea.vmem %s2, 896
      %v1878 = vld [vmem:[%s1877] sm:$0xf]
      %v1879 = vld [vmem:[%s1877 + $0x4] sm:$0xf]
      %v1880 = vld [vmem:[%s1877 + $0x8] sm:$0xf]
      %v1881 = vld [vmem:[%s1877 + $0xc] sm:$0xf]
      %v1882 = vld [vmem:[%s1877 + $0x10] sm:$0xf]
      %v1883 = vld [vmem:[%s1877 + $0x14] sm:$0xf]
      %v1884 = vld [vmem:[%s1877 + $0x18] sm:$0xf]
      %v1885 = vld [vmem:[%s1877 + $0x1c] sm:$0xf]
      %v1886 = vld [vmem:[%s1877 + $0x20] sm:$0xf]
      %v1887 = vld [vmem:[%s1877 + $0x24] sm:$0xf]
      %v1888 = vld [vmem:[%s1877 + $0x28] sm:$0xf]
      %v1889 = vld [vmem:[%s1877 + $0x2c] sm:$0xf]
      %v1890 = vld [vmem:[%s1877 + $0x30] sm:$0xf]
      %v1891 = vld [vmem:[%s1877 + $0x34] sm:$0xf]
      %v1892 = vld [vmem:[%s1877 + $0x38] sm:$0xf]
      %v1893 = vld [vmem:[%s1877 + $0x3c] sm:$0xf]
      %v1894 = vld [vmem:[#allocation2 + $0x2] sm:$0xff]
      %v1895 = vld [vmem:[#allocation2 + $0x12] sm:$0xff]
      %v1896 = vld [vmem:[#allocation2 + $0x22] sm:$0xff]
      %v1897 = vld [vmem:[#allocation2 + $0x32] sm:$0xff]
      %v1898 = vld [vmem:[#allocation2 + $0x42] sm:$0xff]
      %v1899 = vld [vmem:[#allocation2 + $0x52] sm:$0xff]
      %v1900 = vld [vmem:[#allocation2 + $0x62] sm:$0xff]
      %v1901 = vld [vmem:[#allocation2 + $0x72] sm:$0xff]
      %v1902 = vpack.c.bf16 %v1895, %v1894
      %v1903 = vpack.c.bf16 %v1897, %v1896
      %v1904 = vpack.c.bf16 %v1899, %v1898
      %v1905 = vpack.c.bf16 %v1901, %v1900
      %s1906 = scalar_lea.vmem %s2, 768
      %v1907 = vld [vmem:[%s1906] sm:$0xf]
      %v1908 = vld [vmem:[%s1906 + $0x4] sm:$0xf]
      %v1909 = vld [vmem:[%s1906 + $0x8] sm:$0xf]
      %v1910 = vld [vmem:[%s1906 + $0xc] sm:$0xf]
      %v1911 = vld [vmem:[%s1906 + $0x10] sm:$0xf]
      %v1912 = vld [vmem:[%s1906 + $0x14] sm:$0xf]
      %v1913 = vld [vmem:[%s1906 + $0x18] sm:$0xf]
      %v1914 = vld [vmem:[%s1906 + $0x1c] sm:$0xf]
      %v1915 = vld [vmem:[%s1906 + $0x20] sm:$0xf]
      %v1916 = vld [vmem:[%s1906 + $0x24] sm:$0xf]
      %v1917 = vld [vmem:[%s1906 + $0x28] sm:$0xf]
      %v1918 = vld [vmem:[%s1906 + $0x2c] sm:$0xf]
      %v1919 = vld [vmem:[%s1906 + $0x30] sm:$0xf]
      %v1920 = vld [vmem:[%s1906 + $0x34] sm:$0xf]
      %v1921 = vld [vmem:[%s1906 + $0x38] sm:$0xf]
      %v1922 = vld [vmem:[%s1906 + $0x3c] sm:$0xf]
      %v1939 = vunpack.c.l.b16 %v1907
      %v1940 = vunpack.c.l.b16 %v1908
      %v1941 = vunpack.c.l.b16 %v1909
      %v1942 = vunpack.c.l.b16 %v1910
      %v1943 = vunpack.c.l.b16 %v1911
      %v1944 = vunpack.c.l.b16 %v1912
      %v1945 = vunpack.c.l.b16 %v1913
      %v1946 = vunpack.c.l.b16 %v1914
      %v1947 = vunpack.c.l.b16 %v1915
      %v1948 = vunpack.c.l.b16 %v1916
      %v1949 = vunpack.c.l.b16 %v1917
      %v1950 = vunpack.c.l.b16 %v1918
      %v1951 = vunpack.c.l.b16 %v1919
      %v1952 = vunpack.c.l.b16 %v1920
      %v1953 = vunpack.c.l.b16 %v1921
      %v1954 = vunpack.c.l.b16 %v1922
      %v1955 = vpack.c.b16 %v1940, %v1939
      %v1956 = vpack.c.b16 %v1942, %v1941
      %v1957 = vpack.c.b16 %v1944, %v1943
      %v1958 = vpack.c.b16 %v1946, %v1945
      %v1959 = vpack.c.b16 %v1948, %v1947
      %v1960 = vpack.c.b16 %v1950, %v1949
      %v1961 = vpack.c.b16 %v1952, %v1951
      %v1962 = vpack.c.b16 %v1954, %v1953
      %1971 = vmatprep.subr.bf16.mxu0 0
      %1972 = vmatpush1.bf16.msra.mxu0 %v1955
      %1973 = vmatprep.subr.bf16.mxu0 0
      %1974 = vmatpush1.bf16.msra.mxu0 %v1956
      %1975 = vmatprep.subr.bf16.mxu0 0
      %1976 = vmatpush1.bf16.msra.mxu0 %v1957
      %1977 = vmatprep.subr.bf16.mxu0 0
      %1978 = vmatpush1.bf16.msra.mxu0 %v1958
      %1979 = vmatprep.subr.bf16.mxu0 0
      %1980 = vmatpush1.bf16.msra.mxu0 %v1959
      %1981 = vmatprep.subr.bf16.mxu0 0
      %1982 = vmatpush1.bf16.msra.mxu0 %v1960
      %1983 = vmatprep.subr.bf16.mxu0 0
      %1984 = vmatpush1.bf16.msra.mxu0 %v1961
      %1985 = vmatprep.subr.bf16.mxu0 0
      %1986 = vmatpush1.bf16.msra.mxu0 %v1962
      %1987 = vmatprep.subr.bf16.mxu0 0
      %1988 = vmatpush1.bf16.msra.mxu0 0
      %1989 = vmatprep.subr.bf16.mxu0 0
      %1990 = vmatpush1.bf16.msra.mxu0 0
      %1991 = vmatprep.subr.bf16.mxu0 0
      %1992 = vmatpush1.bf16.msra.mxu0 0
      %1993 = vmatprep.subr.bf16.mxu0 0
      %1994 = vmatpush1.bf16.msra.mxu0 0
      %1995 = vmatprep.subr.bf16.mxu0 0
      %1996 = vmatpush1.bf16.msra.mxu0 0
      %1997 = vmatprep.subr.bf16.mxu0 0
      %1998 = vmatpush1.bf16.msra.mxu0 0
      %1999 = vmatprep.subr.bf16.mxu0 0
      %2000 = vmatpush1.bf16.msra.mxu0 0
      %2001 = vmatprep.subr.bf16.mxu0 0
      %2002 = vmatpush1.bf16.msra.mxu0 0
      %2003 = vmatprep.mubr.bf16.mxu0 0
      %2004 = vmatmul.mubr.bf16.gmra.mrb[0].mxu0 %v1902
      %v2005 = vpop.f32.mrb[0].mxu0
      %v2006 = vadd.f32 0.0, %v2005
      %v2007 = vpop.f32.mrb[0].mxu0
      %v2008 = vpop.f32.mrb[0].mxu0
      %v2009 = vadd.f32 0.0, %v2008
      %v2010 = vpop.f32.mrb[0].mxu0
      %2011 = vmatprep.mubr.bf16.mxu0 0
      %2012 = vmatmul.mubr.bf16.gmra.mrb[0].mxu0 %v1903
      %v2013 = vpop.f32.mrb[0].mxu0
      %v2014 = vadd.f32 0.0, %v2013
      %v2015 = vpop.f32.mrb[0].mxu0
      %v2016 = vpop.f32.mrb[0].mxu0
      %v2017 = vadd.f32 0.0, %v2016
      %v2018 = vpop.f32.mrb[0].mxu0
      %2019 = vmatprep.mubr.bf16.mxu0 0
      %2020 = vmatmul.mubr.bf16.gmra.mrb[0].mxu0 %v1904
      %v2021 = vpop.f32.mrb[0].mxu0
      %v2022 = vadd.f32 0.0, %v2021
      %v2023 = vpop.f32.mrb[0].mxu0
      %v2024 = vpop.f32.mrb[0].mxu0
      %v2025 = vadd.f32 0.0, %v2024
      %v2026 = vpop.f32.mrb[0].mxu0
      %2027 = vmatprep.mubr.bf16.mxu0 0
      %2028 = vmatmul.mubr.bf16.gmra.mrb[0].mxu0 %v1905
      %v2029 = vpop.f32.mrb[0].mxu0
      %v2030 = vadd.f32 0.0, %v2029
      %v2031 = vpop.f32.mrb[0].mxu0
      %v2032 = vpop.f32.mrb[0].mxu0
      %v2033 = vadd.f32 0.0, %v2032
      %v2034 = vpop.f32.mrb[0].mxu0
      %2035 = vdwg.mxu0
      %v2052 = vunpack.c.l.b16 %v1878
      %v2053 = vunpack.c.l.b16 %v1879
      %v2054 = vunpack.c.l.b16 %v1880
      %v2055 = vunpack.c.l.b16 %v1881
      %v2056 = vunpack.c.l.b16 %v1882
      %v2057 = vunpack.c.l.b16 %v1883
      %v2058 = vunpack.c.l.b16 %v1884
      %v2059 = vunpack.c.l.b16 %v1885
      %v2060 = vunpack.c.l.b16 %v1886
      %v2061 = vunpack.c.l.b16 %v1887
      %v2062 = vunpack.c.l.b16 %v1888
      %v2063 = vunpack.c.l.b16 %v1889
      %v2064 = vunpack.c.l.b16 %v1890
      %v2065 = vunpack.c.l.b16 %v1891
      %v2066 = vunpack.c.l.b16 %v1892
      %v2067 = vunpack.c.l.b16 %v1893
      %v2068 = vpack.c.b16 %v2053, %v2052
      %v2069 = vpack.c.b16 %v2055, %v2054
      %v2070 = vpack.c.b16 %v2057, %v2056
      %v2071 = vpack.c.b16 %v2059, %v2058
      %v2072 = vpack.c.b16 %v2061, %v2060
      %v2073 = vpack.c.b16 %v2063, %v2062
      %v2074 = vpack.c.b16 %v2065, %v2064
      %v2075 = vpack.c.b16 %v2067, %v2066
      %2084 = vmatprep.subr.bf16.mxu0 0
      %2085 = vmatpush1.bf16.msra.mxu0 %v2068
      %2086 = vmatprep.subr.bf16.mxu0 0
      %2087 = vmatpush1.bf16.msra.mxu0 %v2069
      %2088 = vmatprep.subr.bf16.mxu0 0
      %2089 = vmatpush1.bf16.msra.mxu0 %v2070
      %2090 = vmatprep.subr.bf16.mxu0 0
      %2091 = vmatpush1.bf16.msra.mxu0 %v2071
      %2092 = vmatprep.subr.bf16.mxu0 0
      %2093 = vmatpush1.bf16.msra.mxu0 %v2072
      %2094 = vmatprep.subr.bf16.mxu0 0
      %2095 = vmatpush1.bf16.msra.mxu0 %v2073
      %2096 = vmatprep.subr.bf16.mxu0 0
      %2097 = vmatpush1.bf16.msra.mxu0 %v2074
      %2098 = vmatprep.subr.bf16.mxu0 0
      %2099 = vmatpush1.bf16.msra.mxu0 %v2075
      %2100 = vmatprep.subr.bf16.mxu0 0
      %2101 = vmatpush1.bf16.msra.mxu0 0
      %2102 = vmatprep.subr.bf16.mxu0 0
      %2103 = vmatpush1.bf16.msra.mxu0 0
      %2104 = vmatprep.subr.bf16.mxu0 0
      %2105 = vmatpush1.bf16.msra.mxu0 0
      %2106 = vmatprep.subr.bf16.mxu0 0
      %2107 = vmatpush1.bf16.msra.mxu0 0
      %2108 = vmatprep.subr.bf16.mxu0 0
      %2109 = vmatpush1.bf16.msra.mxu0 0
      %2110 = vmatprep.subr.bf16.mxu0 0
      %2111 = vmatpush1.bf16.msra.mxu0 0
      %2112 = vmatprep.subr.bf16.mxu0 0
      %2113 = vmatpush1.bf16.msra.mxu0 0
      %2114 = vmatprep.subr.bf16.mxu0 0
      %2115 = vmatpush1.bf16.msra.mxu0 0
      %2116 = vmatprep.mubr.bf16.mxu0 0
      %2117 = vmatmul.mubr.bf16.gmra.mrb[0].mxu0 %v1873
      %v2118 = vpop.f32.mrb[0].mxu0
      %v2119 = vadd.f32 %v2006, %v2118
      %v2120 = vpop.f32.mrb[0].mxu0
      %v2121 = vpop.f32.mrb[0].mxu0
      %v2122 = vadd.f32 %v2009, %v2121
      %v2123 = vpop.f32.mrb[0].mxu0
      %2124 = vmatprep.mubr.bf16.mxu0 0
      %2125 = vmatmul.mubr.bf16.gmra.mrb[0].mxu0 %v1874
      %v2126 = vpop.f32.mrb[0].mxu0
      %v2127 = vadd.f32 %v2014, %v2126
      %v2128 = vpop.f32.mrb[0].mxu0
      %v2129 = vpop.f32.mrb[0].mxu0
      %v2130 = vadd.f32 %v2017, %v2129
      %v2131 = vpop.f32.mrb[0].mxu0
      %2132 = vmatprep.mubr.bf16.mxu0 0
      %2133 = vmatmul.mubr.bf16.gmra.mrb[0].mxu0 %v1875
      %v2134 = vpop.f32.mrb[0].mxu0
      %v2135 = vadd.f32 %v2022, %v2134
      %v2136 = vpop.f32.mrb[0].mxu0
      %v2137 = vpop.f32.mrb[0].mxu0
      %v2138 = vadd.f32 %v2025, %v2137
      %v2139 = vpop.f32.mrb[0].mxu0
      %2140 = vmatprep.mubr.bf16.mxu0 0
      %2141 = vmatmul.mubr.bf16.gmra.mrb[0].mxu0 %v1876
      %v2142 = vpop.f32.mrb[0].mxu0
      %v2143 = vadd.f32 %v2030, %v2142
      %v2144 = vpop.f32.mrb[0].mxu0
      %v2145 = vpop.f32.mrb[0].mxu0
      %v2146 = vadd.f32 %v2033, %v2145
      %v2147 = vpop.f32.mrb[0].mxu0
      %2148 = vdwg.mxu0
      %v2149 = vld [vmem:[%s1228 + $0x1] sm:$0xff]
      %v2150 = vld [vmem:[%s1228 + $0x11] sm:$0xff]
      %v2151 = vld [vmem:[%s1228 + $0x21] sm:$0xff]
      %v2152 = vld [vmem:[%s1228 + $0x31] sm:$0xff]
      %v2153 = vld [vmem:[%s1228 + $0x41] sm:$0xff]
      %v2154 = vld [vmem:[%s1228 + $0x51] sm:$0xff]
      %v2155 = vld [vmem:[%s1228 + $0x61] sm:$0xff]
      %v2156 = vld [vmem:[%s1228 + $0x71] sm:$0xff]
      %v2157 = vpack.c.bf16 %v2150, %v2149
      %v2158 = vpack.c.bf16 %v2152, %v2151
      %v2159 = vpack.c.bf16 %v2154, %v2153
      %v2160 = vpack.c.bf16 %v2156, %v2155
      %s2161 = scalar_lea.vmem %s2, 384
      %v2162 = vld [vmem:[%s2161] sm:$0xf]
      %v2163 = vld [vmem:[%s2161 + $0x4] sm:$0xf]
      %v2164 = vld [vmem:[%s2161 + $0x8] sm:$0xf]
      %v2165 = vld [vmem:[%s2161 + $0xc] sm:$0xf]
      %v2166 = vld [vmem:[%s2161 + $0x10] sm:$0xf]
      %v2167 = vld [vmem:[%s2161 + $0x14] sm:$0xf]
      %v2168 = vld [vmem:[%s2161 + $0x18] sm:$0xf]
      %v2169 = vld [vmem:[%s2161 + $0x1c] sm:$0xf]
      %v2170 = vld [vmem:[%s2161 + $0x20] sm:$0xf]
      %v2171 = vld [vmem:[%s2161 + $0x24] sm:$0xf]
      %v2172 = vld [vmem:[%s2161 + $0x28] sm:$0xf]
      %v2173 = vld [vmem:[%s2161 + $0x2c] sm:$0xf]
      %v2174 = vld [vmem:[%s2161 + $0x30] sm:$0xf]
      %v2175 = vld [vmem:[%s2161 + $0x34] sm:$0xf]
      %v2176 = vld [vmem:[%s2161 + $0x38] sm:$0xf]
      %v2177 = vld [vmem:[%s2161 + $0x3c] sm:$0xf]
      %v2194 = vunpack.c.l.b16 %v2162
      %v2195 = vunpack.c.l.b16 %v2163
      %v2196 = vunpack.c.l.b16 %v2164
      %v2197 = vunpack.c.l.b16 %v2165
      %v2198 = vunpack.c.l.b16 %v2166
      %v2199 = vunpack.c.l.b16 %v2167
      %v2200 = vunpack.c.l.b16 %v2168
      %v2201 = vunpack.c.l.b16 %v2169
      %v2202 = vunpack.c.l.b16 %v2170
      %v2203 = vunpack.c.l.b16 %v2171
      %v2204 = vunpack.c.l.b16 %v2172
      %v2205 = vunpack.c.l.b16 %v2173
      %v2206 = vunpack.c.l.b16 %v2174
      %v2207 = vunpack.c.l.b16 %v2175
      %v2208 = vunpack.c.l.b16 %v2176
      %v2209 = vunpack.c.l.b16 %v2177
      %v2210 = vpack.c.b16 %v2195, %v2194
      %v2211 = vpack.c.b16 %v2197, %v2196
      %v2212 = vpack.c.b16 %v2199, %v2198
      %v2213 = vpack.c.b16 %v2201, %v2200
      %v2214 = vpack.c.b16 %v2203, %v2202
      %v2215 = vpack.c.b16 %v2205, %v2204
      %v2216 = vpack.c.b16 %v2207, %v2206
      %v2217 = vpack.c.b16 %v2209, %v2208
      %2226 = vmatprep.subr.bf16.mxu0 0
      %2227 = vmatpush1.bf16.msra.mxu0 %v2210
      %2228 = vmatprep.subr.bf16.mxu0 0
      %2229 = vmatpush1.bf16.msra.mxu0 %v2211
      %2230 = vmatprep.subr.bf16.mxu0 0
      %2231 = vmatpush1.bf16.msra.mxu0 %v2212
      %2232 = vmatprep.subr.bf16.mxu0 0
      %2233 = vmatpush1.bf16.msra.mxu0 %v2213
      %2234 = vmatprep.subr.bf16.mxu0 0
      %2235 = vmatpush1.bf16.msra.mxu0 %v2214
      %2236 = vmatprep.subr.bf16.mxu0 0
      %2237 = vmatpush1.bf16.msra.mxu0 %v2215
      %2238 = vmatprep.subr.bf16.mxu0 0
      %2239 = vmatpush1.bf16.msra.mxu0 %v2216
      %2240 = vmatprep.subr.bf16.mxu0 0
      %2241 = vmatpush1.bf16.msra.mxu0 %v2217
      %2242 = vmatprep.subr.bf16.mxu0 0
      %2243 = vmatpush1.bf16.msra.mxu0 0
      %2244 = vmatprep.subr.bf16.mxu0 0
      %2245 = vmatpush1.bf16.msra.mxu0 0
      %2246 = vmatprep.subr.bf16.mxu0 0
      %2247 = vmatpush1.bf16.msra.mxu0 0
      %2248 = vmatprep.subr.bf16.mxu0 0
      %2249 = vmatpush1.bf16.msra.mxu0 0
      %2250 = vmatprep.subr.bf16.mxu0 0
      %2251 = vmatpush1.bf16.msra.mxu0 0
      %2252 = vmatprep.subr.bf16.mxu0 0
      %2253 = vmatpush1.bf16.msra.mxu0 0
      %2254 = vmatprep.subr.bf16.mxu0 0
      %2255 = vmatpush1.bf16.msra.mxu0 0
      %2256 = vmatprep.subr.bf16.mxu0 0
      %2257 = vmatpush1.bf16.msra.mxu0 0
      %2258 = vmatprep.mubr.bf16.mxu0 0
      %2259 = vmatmul.mubr.bf16.gmra.mrb[0].mxu0 %v2157
      %v2260 = vpop.f32.mrb[0].mxu0
      %v2261 = vadd.f32 0.0, %v2260
      %v2262 = vpop.f32.mrb[0].mxu0
      %v2263 = vpop.f32.mrb[0].mxu0
      %v2264 = vadd.f32 0.0, %v2263
      %v2265 = vpop.f32.mrb[0].mxu0
      %2266 = vmatprep.mubr.bf16.mxu0 0
      %2267 = vmatmul.mubr.bf16.gmra.mrb[0].mxu0 %v2158
      %v2268 = vpop.f32.mrb[0].mxu0
      %v2269 = vadd.f32 0.0, %v2268
      %v2270 = vpop.f32.mrb[0].mxu0
      %v2271 = vpop.f32.mrb[0].mxu0
      %v2272 = vadd.f32 0.0, %v2271
      %v2273 = vpop.f32.mrb[0].mxu0
      %2274 = vmatprep.mubr.bf16.mxu0 0
      %2275 = vmatmul.mubr.bf16.gmra.mrb[0].mxu0 %v2159
      %v2276 = vpop.f32.mrb[0].mxu0
      %v2277 = vadd.f32 0.0, %v2276
      %v2278 = vpop.f32.mrb[0].mxu0
      %v2279 = vpop.f32.mrb[0].mxu0
      %v2280 = vadd.f32 0.0, %v2279
      %v2281 = vpop.f32.mrb[0].mxu0
      %2282 = vmatprep.mubr.bf16.mxu0 0
      %2283 = vmatmul.mubr.bf16.gmra.mrb[0].mxu0 %v2160
      %v2284 = vpop.f32.mrb[0].mxu0
      %v2285 = vadd.f32 0.0, %v2284
      %v2286 = vpop.f32.mrb[0].mxu0
      %v2287 = vpop.f32.mrb[0].mxu0
      %v2288 = vadd.f32 0.0, %v2287
      %v2289 = vpop.f32.mrb[0].mxu0
      %2290 = vdwg.mxu0
      %v2291 = vadd.f32 %v2119, %v2261
      %v2292 = vadd.f32 %v2122, %v2264
      %v2293 = vadd.f32 %v2127, %v2269
      %v2294 = vadd.f32 %v2130, %v2272
      %v2295 = vadd.f32 %v2135, %v2277
      %v2296 = vadd.f32 %v2138, %v2280
      %v2297 = vadd.f32 %v2143, %v2285
      %v2298 = vadd.f32 %v2146, %v2288
      %v2299 = vld [vmem:[%s1228 + $0x2] sm:$0xff]
      %v2300 = vld [vmem:[%s1228 + $0x12] sm:$0xff]
      %v2301 = vld [vmem:[%s1228 + $0x22] sm:$0xff]
      %v2302 = vld [vmem:[%s1228 + $0x32] sm:$0xff]
      %v2303 = vld [vmem:[%s1228 + $0x42] sm:$0xff]
      %v2304 = vld [vmem:[%s1228 + $0x52] sm:$0xff]
      %v2305 = vld [vmem:[%s1228 + $0x62] sm:$0xff]
      %v2306 = vld [vmem:[%s1228 + $0x72] sm:$0xff]
      %v2307 = vpack.c.bf16 %v2300, %v2299
      %v2308 = vpack.c.bf16 %v2302, %v2301
      %v2309 = vpack.c.bf16 %v2304, %v2303
      %v2310 = vpack.c.bf16 %v2306, %v2305
      %s2311 = scalar_lea.vmem %s2, 256
      %v2312 = vld [vmem:[%s2311] sm:$0xf]
      %v2313 = vld [vmem:[%s2311 + $0x4] sm:$0xf]
      %v2314 = vld [vmem:[%s2311 + $0x8] sm:$0xf]
      %v2315 = vld [vmem:[%s2311 + $0xc] sm:$0xf]
      %v2316 = vld [vmem:[%s2311 + $0x10] sm:$0xf]
      %v2317 = vld [vmem:[%s2311 + $0x14] sm:$0xf]
      %v2318 = vld [vmem:[%s2311 + $0x18] sm:$0xf]
      %v2319 = vld [vmem:[%s2311 + $0x1c] sm:$0xf]
      %v2320 = vld [vmem:[%s2311 + $0x20] sm:$0xf]
      %v2321 = vld [vmem:[%s2311 + $0x24] sm:$0xf]
      %v2322 = vld [vmem:[%s2311 + $0x28] sm:$0xf]
      %v2323 = vld [vmem:[%s2311 + $0x2c] sm:$0xf]
      %v2324 = vld [vmem:[%s2311 + $0x30] sm:$0xf]
      %v2325 = vld [vmem:[%s2311 + $0x34] sm:$0xf]
      %v2326 = vld [vmem:[%s2311 + $0x38] sm:$0xf]
      %v2327 = vld [vmem:[%s2311 + $0x3c] sm:$0xf]
      %v2344 = vunpack.c.l.b16 %v2312
      %v2345 = vunpack.c.l.b16 %v2313
      %v2346 = vunpack.c.l.b16 %v2314
      %v2347 = vunpack.c.l.b16 %v2315
      %v2348 = vunpack.c.l.b16 %v2316
      %v2349 = vunpack.c.l.b16 %v2317
      %v2350 = vunpack.c.l.b16 %v2318
      %v2351 = vunpack.c.l.b16 %v2319
      %v2352 = vunpack.c.l.b16 %v2320
      %v2353 = vunpack.c.l.b16 %v2321
      %v2354 = vunpack.c.l.b16 %v2322
      %v2355 = vunpack.c.l.b16 %v2323
      %v2356 = vunpack.c.l.b16 %v2324
      %v2357 = vunpack.c.l.b16 %v2325
      %v2358 = vunpack.c.l.b16 %v2326
      %v2359 = vunpack.c.l.b16 %v2327
      %v2360 = vpack.c.b16 %v2345, %v2344
      %v2361 = vpack.c.b16 %v2347, %v2346
      %v2362 = vpack.c.b16 %v2349, %v2348
      %v2363 = vpack.c.b16 %v2351, %v2350
      %v2364 = vpack.c.b16 %v2353, %v2352
      %v2365 = vpack.c.b16 %v2355, %v2354
      %v2366 = vpack.c.b16 %v2357, %v2356
      %v2367 = vpack.c.b16 %v2359, %v2358
      %2376 = vmatprep.subr.bf16.mxu0 0
      %2377 = vmatpush1.bf16.msra.mxu0 %v2360
      %2378 = vmatprep.subr.bf16.mxu0 0
      %2379 = vmatpush1.bf16.msra.mxu0 %v2361
      %2380 = vmatprep.subr.bf16.mxu0 0
      %2381 = vmatpush1.bf16.msra.mxu0 %v2362
      %2382 = vmatprep.subr.bf16.mxu0 0
      %2383 = vmatpush1.bf16.msra.mxu0 %v2363
      %2384 = vmatprep.subr.bf16.mxu0 0
      %2385 = vmatpush1.bf16.msra.mxu0 %v2364
      %2386 = vmatprep.subr.bf16.mxu0 0
      %2387 = vmatpush1.bf16.msra.mxu0 %v2365
      %2388 = vmatprep.subr.bf16.mxu0 0
      %2389 = vmatpush1.bf16.msra.mxu0 %v2366
      %2390 = vmatprep.subr.bf16.mxu0 0
      %2391 = vmatpush1.bf16.msra.mxu0 %v2367
      %2392 = vmatprep.subr.bf16.mxu0 0
      %2393 = vmatpush1.bf16.msra.mxu0 0
      %2394 = vmatprep.subr.bf16.mxu0 0
      %2395 = vmatpush1.bf16.msra.mxu0 0
      %2396 = vmatprep.subr.bf16.mxu0 0
      %2397 = vmatpush1.bf16.msra.mxu0 0
      %2398 = vmatprep.subr.bf16.mxu0 0
      %2399 = vmatpush1.bf16.msra.mxu0 0
      %2400 = vmatprep.subr.bf16.mxu0 0
      %2401 = vmatpush1.bf16.msra.mxu0 0
      %2402 = vmatprep.subr.bf16.mxu0 0
      %2403 = vmatpush1.bf16.msra.mxu0 0
      %2404 = vmatprep.subr.bf16.mxu0 0
      %2405 = vmatpush1.bf16.msra.mxu0 0
      %2406 = vmatprep.subr.bf16.mxu0 0
      %2407 = vmatpush1.bf16.msra.mxu0 0
      %2408 = vmatprep.mubr.bf16.mxu0 0
      %2409 = vmatmul.mubr.bf16.gmra.mrb[0].mxu0 %v2307
      %v2410 = vpop.f32.mrb[0].mxu0
      %v2411 = vadd.f32 0.0, %v2410
      %v2412 = vpop.f32.mrb[0].mxu0
      %v2413 = vpop.f32.mrb[0].mxu0
      %v2414 = vadd.f32 0.0, %v2413
      %v2415 = vpop.f32.mrb[0].mxu0
      %2416 = vmatprep.mubr.bf16.mxu0 0
      %2417 = vmatmul.mubr.bf16.gmra.mrb[0].mxu0 %v2308
      %v2418 = vpop.f32.mrb[0].mxu0
      %v2419 = vadd.f32 0.0, %v2418
      %v2420 = vpop.f32.mrb[0].mxu0
      %v2421 = vpop.f32.mrb[0].mxu0
      %v2422 = vadd.f32 0.0, %v2421
      %v2423 = vpop.f32.mrb[0].mxu0
      %2424 = vmatprep.mubr.bf16.mxu0 0
      %2425 = vmatmul.mubr.bf16.gmra.mrb[0].mxu0 %v2309
      %v2426 = vpop.f32.mrb[0].mxu0
      %v2427 = vadd.f32 0.0, %v2426
      %v2428 = vpop.f32.mrb[0].mxu0
      %v2429 = vpop.f32.mrb[0].mxu0
      %v2430 = vadd.f32 0.0, %v2429
      %v2431 = vpop.f32.mrb[0].mxu0
      %2432 = vmatprep.mubr.bf16.mxu0 0
      %2433 = vmatmul.mubr.bf16.gmra.mrb[0].mxu0 %v2310
      %v2434 = vpop.f32.mrb[0].mxu0
      %v2435 = vadd.f32 0.0, %v2434
      %v2436 = vpop.f32.mrb[0].mxu0
      %v2437 = vpop.f32.mrb[0].mxu0
      %v2438 = vadd.f32 0.0, %v2437
      %v2439 = vpop.f32.mrb[0].mxu0
      %2440 = vdwg.mxu0
      %v2441 = vadd.f32 %v2291, %v2411
      %v2442 = vadd.f32 %v2292, %v2414
      %v2443 = vadd.f32 %v2293, %v2419
      %v2444 = vadd.f32 %v2294, %v2422
      %v2445 = vadd.f32 %v2295, %v2427
      %v2446 = vadd.f32 %v2296, %v2430
      %v2447 = vadd.f32 %v2297, %v2435
      %v2448 = vadd.f32 %v2298, %v2438
      %s2449 = scalar_lea.vmem %s204, 64
      %2450 = vst [vmem:[%s2449] sm:$0xff] %v2441
      %2451 = vst [vmem:[%s2449 + $0x8] sm:$0xff] %v2442
      %2452 = vst [vmem:[%s2449 + $0x10] sm:$0xff] %v2443
      %2453 = vst [vmem:[%s2449 + $0x18] sm:$0xff] %v2444
      %2454 = vst [vmem:[%s2449 + $0x20] sm:$0xff] %v2445
      %2455 = vst [vmem:[%s2449 + $0x28] sm:$0xff] %v2446
      %2456 = vst [vmem:[%s2449 + $0x30] sm:$0xff] %v2447
      %2457 = vst [vmem:[%s2449 + $0x38] sm:$0xff] %v2448
      %v2458 = vadd.f32 %v2441, %v2442
      %v2459 = vadd.f32 %v2458, %v2443
      %v2460 = vadd.f32 %v2459, %v2444
      %v2461 = vadd.f32 %v2460, %v2445
      %v2462 = vadd.f32 %v2461, %v2446
      %v2463 = vadd.f32 %v2462, %v2447
      %v2464 = vadd.f32 %v2463, %v2448
      %v2465 = vrot.slane %v2464, 4
      %v2466 = vadd.f32 %v2464, %v2465
      %v2467 = vrot.slane %v2466, 2
      %v2468 = vadd.f32 %v2466, %v2467
      %v2469 = vrot.slane %v2468, 1
      %v2470 = vadd.f32 %v2468, %v2469
      %v2471 = vadd.f32 %v1842, %v2470
      %v2472 = vmul.f32 %v2441, %v2441
      %v2473 = vmul.f32 %v2442, %v2442
      %v2474 = vmul.f32 %v2443, %v2443
      %v2475 = vmul.f32 %v2444, %v2444
      %v2476 = vmul.f32 %v2445, %v2445
      %v2477 = vmul.f32 %v2446, %v2446
      %v2478 = vmul.f32 %v2447, %v2447
      %v2479 = vmul.f32 %v2448, %v2448
      %v2480 = vadd.f32 %v2472, %v2473
      %v2481 = vadd.f32 %v2480, %v2474
      %v2482 = vadd.f32 %v2481, %v2475
      %v2483 = vadd.f32 %v2482, %v2476
      %v2484 = vadd.f32 %v2483, %v2477
      %v2485 = vadd.f32 %v2484, %v2478
      %v2486 = vadd.f32 %v2485, %v2479
      %v2487 = vrot.slane %v2486, 4
      %v2488 = vadd.f32 %v2486, %v2487
      %v2489 = vrot.slane %v2488, 2
      %v2490 = vadd.f32 %v2488, %v2489
      %v2491 = vrot.slane %v2490, 1
      %v2492 = vadd.f32 %v2490, %v2491
      %v2493 = vadd.f32 %v1864, %v2492
      %v2494 = vld [vmem:[%s1228] sm:$0xff]
      %v2495 = vld [vmem:[%s1228 + $0x10] sm:$0xff]
      %v2496 = vld [vmem:[%s1228 + $0x20] sm:$0xff]
      %v2497 = vld [vmem:[%s1228 + $0x30] sm:$0xff]
      %v2498 = vld [vmem:[%s1228 + $0x40] sm:$0xff]
      %v2499 = vld [vmem:[%s1228 + $0x50] sm:$0xff]
      %v2500 = vld [vmem:[%s1228 + $0x60] sm:$0xff]
      %v2501 = vld [vmem:[%s1228 + $0x70] sm:$0xff]
      %v2502 = vpack.c.bf16 %v2495, %v2494
      %v2503 = vpack.c.bf16 %v2497, %v2496
      %v2504 = vpack.c.bf16 %v2499, %v2498
      %v2505 = vpack.c.bf16 %v2501, %v2500
      %s2506 = scalar_lea.vmem %s2, 704
      %v2507 = vld [vmem:[%s2506] sm:$0xf]
      %v2508 = vld [vmem:[%s2506 + $0x4] sm:$0xf]
      %v2509 = vld [vmem:[%s2506 + $0x8] sm:$0xf]
      %v2510 = vld [vmem:[%s2506 + $0xc] sm:$0xf]
      %v2511 = vld [vmem:[%s2506 + $0x10] sm:$0xf]
      %v2512 = vld [vmem:[%s2506 + $0x14] sm:$0xf]
      %v2513 = vld [vmem:[%s2506 + $0x18] sm:$0xf]
      %v2514 = vld [vmem:[%s2506 + $0x1c] sm:$0xf]
      %v2515 = vld [vmem:[%s2506 + $0x20] sm:$0xf]
      %v2516 = vld [vmem:[%s2506 + $0x24] sm:$0xf]
      %v2517 = vld [vmem:[%s2506 + $0x28] sm:$0xf]
      %v2518 = vld [vmem:[%s2506 + $0x2c] sm:$0xf]
      %v2519 = vld [vmem:[%s2506 + $0x30] sm:$0xf]
      %v2520 = vld [vmem:[%s2506 + $0x34] sm:$0xf]
      %v2521 = vld [vmem:[%s2506 + $0x38] sm:$0xf]
      %v2522 = vld [vmem:[%s2506 + $0x3c] sm:$0xf]
      %v2523 = vld [vmem:[%s1228 + $0x1] sm:$0xff]
      %v2524 = vld [vmem:[%s1228 + $0x11] sm:$0xff]
      %v2525 = vld [vmem:[%s1228 + $0x21] sm:$0xff]
      %v2526 = vld [vmem:[%s1228 + $0x31] sm:$0xff]
      %v2527 = vld [vmem:[%s1228 + $0x41] sm:$0xff]
      %v2528 = vld [vmem:[%s1228 + $0x51] sm:$0xff]
      %v2529 = vld [vmem:[%s1228 + $0x61] sm:$0xff]
      %v2530 = vld [vmem:[%s1228 + $0x71] sm:$0xff]
      %v2531 = vpack.c.bf16 %v2524, %v2523
      %v2532 = vpack.c.bf16 %v2526, %v2525
      %v2533 = vpack.c.bf16 %v2528, %v2527
      %v2534 = vpack.c.bf16 %v2530, %v2529
      %s2535 = scalar_lea.vmem %s2, 576
      %v2536 = vld [vmem:[%s2535] sm:$0xf]
      %v2537 = vld [vmem:[%s2535 + $0x4] sm:$0xf]
      %v2538 = vld [vmem:[%s2535 + $0x8] sm:$0xf]
      %v2539 = vld [vmem:[%s2535 + $0xc] sm:$0xf]
      %v2540 = vld [vmem:[%s2535 + $0x10] sm:$0xf]
      %v2541 = vld [vmem:[%s2535 + $0x14] sm:$0xf]
      %v2542 = vld [vmem:[%s2535 + $0x18] sm:$0xf]
      %v2543 = vld [vmem:[%s2535 + $0x1c] sm:$0xf]
      %v2544 = vld [vmem:[%s2535 + $0x20] sm:$0xf]
      %v2545 = vld [vmem:[%s2535 + $0x24] sm:$0xf]
      %v2546 = vld [vmem:[%s2535 + $0x28] sm:$0xf]
      %v2547 = vld [vmem:[%s2535 + $0x2c] sm:$0xf]
      %v2548 = vld [vmem:[%s2535 + $0x30] sm:$0xf]
      %v2549 = vld [vmem:[%s2535 + $0x34] sm:$0xf]
      %v2550 = vld [vmem:[%s2535 + $0x38] sm:$0xf]
      %v2551 = vld [vmem:[%s2535 + $0x3c] sm:$0xf]
      %v2568 = vunpack.c.l.b16 %v2536
      %v2569 = vunpack.c.l.b16 %v2537
      %v2570 = vunpack.c.l.b16 %v2538
      %v2571 = vunpack.c.l.b16 %v2539
      %v2572 = vunpack.c.l.b16 %v2540
      %v2573 = vunpack.c.l.b16 %v2541
      %v2574 = vunpack.c.l.b16 %v2542
      %v2575 = vunpack.c.l.b16 %v2543
      %v2576 = vunpack.c.l.b16 %v2544
      %v2577 = vunpack.c.l.b16 %v2545
      %v2578 = vunpack.c.l.b16 %v2546
      %v2579 = vunpack.c.l.b16 %v2547
      %v2580 = vunpack.c.l.b16 %v2548
      %v2581 = vunpack.c.l.b16 %v2549
      %v2582 = vunpack.c.l.b16 %v2550
      %v2583 = vunpack.c.l.b16 %v2551
      %v2584 = vpack.c.b16 %v2569, %v2568
      %v2585 = vpack.c.b16 %v2571, %v2570
      %v2586 = vpack.c.b16 %v2573, %v2572
      %v2587 = vpack.c.b16 %v2575, %v2574
      %v2588 = vpack.c.b16 %v2577, %v2576
      %v2589 = vpack.c.b16 %v2579, %v2578
      %v2590 = vpack.c.b16 %v2581, %v2580
      %v2591 = vpack.c.b16 %v2583, %v2582
      %2600 = vmatprep.subr.bf16.mxu0 0
      %2601 = vmatpush1.bf16.msra.mxu0 %v2584
      %2602 = vmatprep.subr.bf16.mxu0 0
      %2603 = vmatpush1.bf16.msra.mxu0 %v2585
      %2604 = vmatprep.subr.bf16.mxu0 0
      %2605 = vmatpush1.bf16.msra.mxu0 %v2586
      %2606 = vmatprep.subr.bf16.mxu0 0
      %2607 = vmatpush1.bf16.msra.mxu0 %v2587
      %2608 = vmatprep.subr.bf16.mxu0 0
      %2609 = vmatpush1.bf16.msra.mxu0 %v2588
      %2610 = vmatprep.subr.bf16.mxu0 0
      %2611 = vmatpush1.bf16.msra.mxu0 %v2589
      %2612 = vmatprep.subr.bf16.mxu0 0
      %2613 = vmatpush1.bf16.msra.mxu0 %v2590
      %2614 = vmatprep.subr.bf16.mxu0 0
      %2615 = vmatpush1.bf16.msra.mxu0 %v2591
      %2616 = vmatprep.subr.bf16.mxu0 0
      %2617 = vmatpush1.bf16.msra.mxu0 0
      %2618 = vmatprep.subr.bf16.mxu0 0
      %2619 = vmatpush1.bf16.msra.mxu0 0
      %2620 = vmatprep.subr.bf16.mxu0 0
      %2621 = vmatpush1.bf16.msra.mxu0 0
      %2622 = vmatprep.subr.bf16.mxu0 0
      %2623 = vmatpush1.bf16.msra.mxu0 0
      %2624 = vmatprep.subr.bf16.mxu0 0
      %2625 = vmatpush1.bf16.msra.mxu0 0
      %2626 = vmatprep.subr.bf16.mxu0 0
      %2627 = vmatpush1.bf16.msra.mxu0 0
      %2628 = vmatprep.subr.bf16.mxu0 0
      %2629 = vmatpush1.bf16.msra.mxu0 0
      %2630 = vmatprep.subr.bf16.mxu0 0
      %2631 = vmatpush1.bf16.msra.mxu0 0
      %2632 = vmatprep.mubr.bf16.mxu0 0
      %2633 = vmatmul.mubr.bf16.gmra.mrb[0].mxu0 %v2531
      %v2634 = vpop.f32.mrb[0].mxu0
      %v2635 = vadd.f32 0.0, %v2634
      %v2636 = vpop.f32.mrb[0].mxu0
      %v2637 = vpop.f32.mrb[0].mxu0
      %v2638 = vadd.f32 0.0, %v2637
      %v2639 = vpop.f32.mrb[0].mxu0
      %2640 = vmatprep.mubr.bf16.mxu0 0
      %2641 = vmatmul.mubr.bf16.gmra.mrb[0].mxu0 %v2532
      %v2642 = vpop.f32.mrb[0].mxu0
      %v2643 = vadd.f32 0.0, %v2642
      %v2644 = vpop.f32.mrb[0].mxu0
      %v2645 = vpop.f32.mrb[0].mxu0
      %v2646 = vadd.f32 0.0, %v2645
      %v2647 = vpop.f32.mrb[0].mxu0
      %2648 = vmatprep.mubr.bf16.mxu0 0
      %2649 = vmatmul.mubr.bf16.gmra.mrb[0].mxu0 %v2533
      %v2650 = vpop.f32.mrb[0].mxu0
      %v2651 = vadd.f32 0.0, %v2650
      %v2652 = vpop.f32.mrb[0].mxu0
      %v2653 = vpop.f32.mrb[0].mxu0
      %v2654 = vadd.f32 0.0, %v2653
      %v2655 = vpop.f32.mrb[0].mxu0
      %2656 = vmatprep.mubr.bf16.mxu0 0
      %2657 = vmatmul.mubr.bf16.gmra.mrb[0].mxu0 %v2534
      %v2658 = vpop.f32.mrb[0].mxu0
      %v2659 = vadd.f32 0.0, %v2658
      %v2660 = vpop.f32.mrb[0].mxu0
      %v2661 = vpop.f32.mrb[0].mxu0
      %v2662 = vadd.f32 0.0, %v2661
      %v2663 = vpop.f32.mrb[0].mxu0
      %2664 = vdwg.mxu0
      %v2681 = vunpack.c.l.b16 %v2507
      %v2682 = vunpack.c.l.b16 %v2508
      %v2683 = vunpack.c.l.b16 %v2509
      %v2684 = vunpack.c.l.b16 %v2510
      %v2685 = vunpack.c.l.b16 %v2511
      %v2686 = vunpack.c.l.b16 %v2512
      %v2687 = vunpack.c.l.b16 %v2513
      %v2688 = vunpack.c.l.b16 %v2514
      %v2689 = vunpack.c.l.b16 %v2515
      %v2690 = vunpack.c.l.b16 %v2516
      %v2691 = vunpack.c.l.b16 %v2517
      %v2692 = vunpack.c.l.b16 %v2518
      %v2693 = vunpack.c.l.b16 %v2519
      %v2694 = vunpack.c.l.b16 %v2520
      %v2695 = vunpack.c.l.b16 %v2521
      %v2696 = vunpack.c.l.b16 %v2522
      %v2697 = vpack.c.b16 %v2682, %v2681
      %v2698 = vpack.c.b16 %v2684, %v2683
      %v2699 = vpack.c.b16 %v2686, %v2685
      %v2700 = vpack.c.b16 %v2688, %v2687
      %v2701 = vpack.c.b16 %v2690, %v2689
      %v2702 = vpack.c.b16 %v2692, %v2691
      %v2703 = vpack.c.b16 %v2694, %v2693
      %v2704 = vpack.c.b16 %v2696, %v2695
      %2713 = vmatprep.subr.bf16.mxu0 0
      %2714 = vmatpush1.bf16.msra.mxu0 %v2697
      %2715 = vmatprep.subr.bf16.mxu0 0
      %2716 = vmatpush1.bf16.msra.mxu0 %v2698
      %2717 = vmatprep.subr.bf16.mxu0 0
      %2718 = vmatpush1.bf16.msra.mxu0 %v2699
      %2719 = vmatprep.subr.bf16.mxu0 0
      %2720 = vmatpush1.bf16.msra.mxu0 %v2700
      %2721 = vmatprep.subr.bf16.mxu0 0
      %2722 = vmatpush1.bf16.msra.mxu0 %v2701
      %2723 = vmatprep.subr.bf16.mxu0 0
      %2724 = vmatpush1.bf16.msra.mxu0 %v2702
      %2725 = vmatprep.subr.bf16.mxu0 0
      %2726 = vmatpush1.bf16.msra.mxu0 %v2703
      %2727 = vmatprep.subr.bf16.mxu0 0
      %2728 = vmatpush1.bf16.msra.mxu0 %v2704
      %2729 = vmatprep.subr.bf16.mxu0 0
      %2730 = vmatpush1.bf16.msra.mxu0 0
      %2731 = vmatprep.subr.bf16.mxu0 0
      %2732 = vmatpush1.bf16.msra.mxu0 0
      %2733 = vmatprep.subr.bf16.mxu0 0
      %2734 = vmatpush1.bf16.msra.mxu0 0
      %2735 = vmatprep.subr.bf16.mxu0 0
      %2736 = vmatpush1.bf16.msra.mxu0 0
      %2737 = vmatprep.subr.bf16.mxu0 0
      %2738 = vmatpush1.bf16.msra.mxu0 0
      %2739 = vmatprep.subr.bf16.mxu0 0
      %2740 = vmatpush1.bf16.msra.mxu0 0
      %2741 = vmatprep.subr.bf16.mxu0 0
      %2742 = vmatpush1.bf16.msra.mxu0 0
      %2743 = vmatprep.subr.bf16.mxu0 0
      %2744 = vmatpush1.bf16.msra.mxu0 0
      %2745 = vmatprep.mubr.bf16.mxu0 0
      %2746 = vmatmul.mubr.bf16.gmra.mrb[0].mxu0 %v2502
      %v2747 = vpop.f32.mrb[0].mxu0
      %v2748 = vadd.f32 %v2635, %v2747
      %v2749 = vpop.f32.mrb[0].mxu0
      %v2750 = vpop.f32.mrb[0].mxu0
      %v2751 = vadd.f32 %v2638, %v2750
      %v2752 = vpop.f32.mrb[0].mxu0
      %2753 = vmatprep.mubr.bf16.mxu0 0
      %2754 = vmatmul.mubr.bf16.gmra.mrb[0].mxu0 %v2503
      %v2755 = vpop.f32.mrb[0].mxu0
      %v2756 = vadd.f32 %v2643, %v2755
      %v2757 = vpop.f32.mrb[0].mxu0
      %v2758 = vpop.f32.mrb[0].mxu0
      %v2759 = vadd.f32 %v2646, %v2758
      %v2760 = vpop.f32.mrb[0].mxu0
      %2761 = vmatprep.mubr.bf16.mxu0 0
      %2762 = vmatmul.mubr.bf16.gmra.mrb[0].mxu0 %v2504
      %v2763 = vpop.f32.mrb[0].mxu0
      %v2764 = vadd.f32 %v2651, %v2763
      %v2765 = vpop.f32.mrb[0].mxu0
      %v2766 = vpop.f32.mrb[0].mxu0
      %v2767 = vadd.f32 %v2654, %v2766
      %v2768 = vpop.f32.mrb[0].mxu0
      %2769 = vmatprep.mubr.bf16.mxu0 0
      %2770 = vmatmul.mubr.bf16.gmra.mrb[0].mxu0 %v2505
      %v2771 = vpop.f32.mrb[0].mxu0
      %v2772 = vadd.f32 %v2659, %v2771
      %v2773 = vpop.f32.mrb[0].mxu0
      %v2774 = vpop.f32.mrb[0].mxu0
      %v2775 = vadd.f32 %v2662, %v2774
      %v2776 = vpop.f32.mrb[0].mxu0
      %2777 = vdwg.mxu0
      %s2778 = scalar_lea.vmem [#allocation2], 32
      %v2779 = vld [vmem:[%s2778] sm:$0xff]
      %v2780 = vld [vmem:[%s2778 + $0x10] sm:$0xff]
      %v2781 = vld [vmem:[%s2778 + $0x20] sm:$0xff]
      %v2782 = vld [vmem:[%s2778 + $0x30] sm:$0xff]
      %v2783 = vld [vmem:[%s2778 + $0x40] sm:$0xff]
      %v2784 = vld [vmem:[%s2778 + $0x50] sm:$0xff]
      %v2785 = vld [vmem:[%s2778 + $0x60] sm:$0xff]
      %v2786 = vld [vmem:[%s2778 + $0x70] sm:$0xff]
      %v2787 = vpack.c.bf16 %v2780, %v2779
      %v2788 = vpack.c.bf16 %v2782, %v2781
      %v2789 = vpack.c.bf16 %v2784, %v2783
      %v2790 = vpack.c.bf16 %v2786, %v2785
      %s2791 = scalar_lea.vmem %s2, 192
      %v2792 = vld [vmem:[%s2791] sm:$0xf]
      %v2793 = vld [vmem:[%s2791 + $0x4] sm:$0xf]
      %v2794 = vld [vmem:[%s2791 + $0x8] sm:$0xf]
      %v2795 = vld [vmem:[%s2791 + $0xc] sm:$0xf]
      %v2796 = vld [vmem:[%s2791 + $0x10] sm:$0xf]
      %v2797 = vld [vmem:[%s2791 + $0x14] sm:$0xf]
      %v2798 = vld [vmem:[%s2791 + $0x18] sm:$0xf]
      %v2799 = vld [vmem:[%s2791 + $0x1c] sm:$0xf]
      %v2800 = vld [vmem:[%s2791 + $0x20] sm:$0xf]
      %v2801 = vld [vmem:[%s2791 + $0x24] sm:$0xf]
      %v2802 = vld [vmem:[%s2791 + $0x28] sm:$0xf]
      %v2803 = vld [vmem:[%s2791 + $0x2c] sm:$0xf]
      %v2804 = vld [vmem:[%s2791 + $0x30] sm:$0xf]
      %v2805 = vld [vmem:[%s2791 + $0x34] sm:$0xf]
      %v2806 = vld [vmem:[%s2791 + $0x38] sm:$0xf]
      %v2807 = vld [vmem:[%s2791 + $0x3c] sm:$0xf]
      %v2824 = vunpack.c.l.b16 %v2792
      %v2825 = vunpack.c.l.b16 %v2793
      %v2826 = vunpack.c.l.b16 %v2794
      %v2827 = vunpack.c.l.b16 %v2795
      %v2828 = vunpack.c.l.b16 %v2796
      %v2829 = vunpack.c.l.b16 %v2797
      %v2830 = vunpack.c.l.b16 %v2798
      %v2831 = vunpack.c.l.b16 %v2799
      %v2832 = vunpack.c.l.b16 %v2800
      %v2833 = vunpack.c.l.b16 %v2801
      %v2834 = vunpack.c.l.b16 %v2802
      %v2835 = vunpack.c.l.b16 %v2803
      %v2836 = vunpack.c.l.b16 %v2804
      %v2837 = vunpack.c.l.b16 %v2805
      %v2838 = vunpack.c.l.b16 %v2806
      %v2839 = vunpack.c.l.b16 %v2807
      %v2840 = vpack.c.b16 %v2825, %v2824
      %v2841 = vpack.c.b16 %v2827, %v2826
      %v2842 = vpack.c.b16 %v2829, %v2828
      %v2843 = vpack.c.b16 %v2831, %v2830
      %v2844 = vpack.c.b16 %v2833, %v2832
      %v2845 = vpack.c.b16 %v2835, %v2834
      %v2846 = vpack.c.b16 %v2837, %v2836
      %v2847 = vpack.c.b16 %v2839, %v2838
      %2856 = vmatprep.subr.bf16.mxu0 0
      %2857 = vmatpush1.bf16.msra.mxu0 %v2840
      %2858 = vmatprep.subr.bf16.mxu0 0
      %2859 = vmatpush1.bf16.msra.mxu0 %v2841
      %2860 = vmatprep.subr.bf16.mxu0 0
      %2861 = vmatpush1.bf16.msra.mxu0 %v2842
      %2862 = vmatprep.subr.bf16.mxu0 0
      %2863 = vmatpush1.bf16.msra.mxu0 %v2843
      %2864 = vmatprep.subr.bf16.mxu0 0
      %2865 = vmatpush1.bf16.msra.mxu0 %v2844
      %2866 = vmatprep.subr.bf16.mxu0 0
      %2867 = vmatpush1.bf16.msra.mxu0 %v2845
      %2868 = vmatprep.subr.bf16.mxu0 0
      %2869 = vmatpush1.bf16.msra.mxu0 %v2846
      %2870 = vmatprep.subr.bf16.mxu0 0
      %2871 = vmatpush1.bf16.msra.mxu0 %v2847
      %2872 = vmatprep.subr.bf16.mxu0 0
      %2873 = vmatpush1.bf16.msra.mxu0 0
      %2874 = vmatprep.subr.bf16.mxu0 0
      %2875 = vmatpush1.bf16.msra.mxu0 0
      %2876 = vmatprep.subr.bf16.mxu0 0
      %2877 = vmatpush1.bf16.msra.mxu0 0
      %2878 = vmatprep.subr.bf16.mxu0 0
      %2879 = vmatpush1.bf16.msra.mxu0 0
      %2880 = vmatprep.subr.bf16.mxu0 0
      %2881 = vmatpush1.bf16.msra.mxu0 0
      %2882 = vmatprep.subr.bf16.mxu0 0
      %2883 = vmatpush1.bf16.msra.mxu0 0
      %2884 = vmatprep.subr.bf16.mxu0 0
      %2885 = vmatpush1.bf16.msra.mxu0 0
      %2886 = vmatprep.subr.bf16.mxu0 0
      %2887 = vmatpush1.bf16.msra.mxu0 0
      %2888 = vmatprep.mubr.bf16.mxu0 0
      %2889 = vmatmul.mubr.bf16.gmra.mrb[0].mxu0 %v2787
      %v2890 = vpop.f32.mrb[0].mxu0
      %v2891 = vadd.f32 0.0, %v2890
      %v2892 = vpop.f32.mrb[0].mxu0
      %v2893 = vpop.f32.mrb[0].mxu0
      %v2894 = vadd.f32 0.0, %v2893
      %v2895 = vpop.f32.mrb[0].mxu0
      %2896 = vmatprep.mubr.bf16.mxu0 0
      %2897 = vmatmul.mubr.bf16.gmra.mrb[0].mxu0 %v2788
      %v2898 = vpop.f32.mrb[0].mxu0
      %v2899 = vadd.f32 0.0, %v2898
      %v2900 = vpop.f32.mrb[0].mxu0
      %v2901 = vpop.f32.mrb[0].mxu0
      %v2902 = vadd.f32 0.0, %v2901
      %v2903 = vpop.f32.mrb[0].mxu0
      %2904 = vmatprep.mubr.bf16.mxu0 0
      %2905 = vmatmul.mubr.bf16.gmra.mrb[0].mxu0 %v2789
      %v2906 = vpop.f32.mrb[0].mxu0
      %v2907 = vadd.f32 0.0, %v2906
      %v2908 = vpop.f32.mrb[0].mxu0
      %v2909 = vpop.f32.mrb[0].mxu0
      %v2910 = vadd.f32 0.0, %v2909
      %v2911 = vpop.f32.mrb[0].mxu0
      %2912 = vmatprep.mubr.bf16.mxu0 0
      %2913 = vmatmul.mubr.bf16.gmra.mrb[0].mxu0 %v2790
      %v2914 = vpop.f32.mrb[0].mxu0
      %v2915 = vadd.f32 0.0, %v2914
      %v2916 = vpop.f32.mrb[0].mxu0
      %v2917 = vpop.f32.mrb[0].mxu0
      %v2918 = vadd.f32 0.0, %v2917
      %v2919 = vpop.f32.mrb[0].mxu0
      %2920 = vdwg.mxu0
      %v2921 = vadd.f32 %v2748, %v2891
      %v2922 = vadd.f32 %v2751, %v2894
      %v2923 = vadd.f32 %v2756, %v2899
      %v2924 = vadd.f32 %v2759, %v2902
      %v2925 = vadd.f32 %v2764, %v2907
      %v2926 = vadd.f32 %v2767, %v2910
      %v2927 = vadd.f32 %v2772, %v2915
      %v2928 = vadd.f32 %v2775, %v2918
      %v2929 = vld [vmem:[%s2778 + $0x1] sm:$0xff]
      %v2930 = vld [vmem:[%s2778 + $0x11] sm:$0xff]
      %v2931 = vld [vmem:[%s2778 + $0x21] sm:$0xff]
      %v2932 = vld [vmem:[%s2778 + $0x31] sm:$0xff]
      %v2933 = vld [vmem:[%s2778 + $0x41] sm:$0xff]
      %v2934 = vld [vmem:[%s2778 + $0x51] sm:$0xff]
      %v2935 = vld [vmem:[%s2778 + $0x61] sm:$0xff]
      %v2936 = vld [vmem:[%s2778 + $0x71] sm:$0xff]
      %v2937 = vpack.c.bf16 %v2930, %v2929
      %v2938 = vpack.c.bf16 %v2932, %v2931
      %v2939 = vpack.c.bf16 %v2934, %v2933
      %v2940 = vpack.c.bf16 %v2936, %v2935
      %s2941 = scalar_lea.vmem %s2, 64
      %v2942 = vld [vmem:[%s2941] sm:$0xf]
      %v2943 = vld [vmem:[%s2941 + $0x4] sm:$0xf]
      %v2944 = vld [vmem:[%s2941 + $0x8] sm:$0xf]
      %v2945 = vld [vmem:[%s2941 + $0xc] sm:$0xf]
      %v2946 = vld [vmem:[%s2941 + $0x10] sm:$0xf]
      %v2947 = vld [vmem:[%s2941 + $0x14] sm:$0xf]
      %v2948 = vld [vmem:[%s2941 + $0x18] sm:$0xf]
      %v2949 = vld [vmem:[%s2941 + $0x1c] sm:$0xf]
      %v2950 = vld [vmem:[%s2941 + $0x20] sm:$0xf]
      %v2951 = vld [vmem:[%s2941 + $0x24] sm:$0xf]
      %v2952 = vld [vmem:[%s2941 + $0x28] sm:$0xf]
      %v2953 = vld [vmem:[%s2941 + $0x2c] sm:$0xf]
      %v2954 = vld [vmem:[%s2941 + $0x30] sm:$0xf]
      %v2955 = vld [vmem:[%s2941 + $0x34] sm:$0xf]
      %v2956 = vld [vmem:[%s2941 + $0x38] sm:$0xf]
      %v2957 = vld [vmem:[%s2941 + $0x3c] sm:$0xf]
      %v2974 = vunpack.c.l.b16 %v2942
      %v2975 = vunpack.c.l.b16 %v2943
      %v2976 = vunpack.c.l.b16 %v2944
      %v2977 = vunpack.c.l.b16 %v2945
      %v2978 = vunpack.c.l.b16 %v2946
      %v2979 = vunpack.c.l.b16 %v2947
      %v2980 = vunpack.c.l.b16 %v2948
      %v2981 = vunpack.c.l.b16 %v2949
      %v2982 = vunpack.c.l.b16 %v2950
      %v2983 = vunpack.c.l.b16 %v2951
      %v2984 = vunpack.c.l.b16 %v2952
      %v2985 = vunpack.c.l.b16 %v2953
      %v2986 = vunpack.c.l.b16 %v2954
      %v2987 = vunpack.c.l.b16 %v2955
      %v2988 = vunpack.c.l.b16 %v2956
      %v2989 = vunpack.c.l.b16 %v2957
      %v2990 = vpack.c.b16 %v2975, %v2974
      %v2991 = vpack.c.b16 %v2977, %v2976
      %v2992 = vpack.c.b16 %v2979, %v2978
      %v2993 = vpack.c.b16 %v2981, %v2980
      %v2994 = vpack.c.b16 %v2983, %v2982
      %v2995 = vpack.c.b16 %v2985, %v2984
      %v2996 = vpack.c.b16 %v2987, %v2986
      %v2997 = vpack.c.b16 %v2989, %v2988
      %3006 = vmatprep.subr.bf16.mxu0 0
      %3007 = vmatpush1.bf16.msra.mxu0 %v2990
      %3008 = vmatprep.subr.bf16.mxu0 0
      %3009 = vmatpush1.bf16.msra.mxu0 %v2991
      %3010 = vmatprep.subr.bf16.mxu0 0
      %3011 = vmatpush1.bf16.msra.mxu0 %v2992
      %3012 = vmatprep.subr.bf16.mxu0 0
      %3013 = vmatpush1.bf16.msra.mxu0 %v2993
      %3014 = vmatprep.subr.bf16.mxu0 0
      %3015 = vmatpush1.bf16.msra.mxu0 %v2994
      %3016 = vmatprep.subr.bf16.mxu0 0
      %3017 = vmatpush1.bf16.msra.mxu0 %v2995
      %3018 = vmatprep.subr.bf16.mxu0 0
      %3019 = vmatpush1.bf16.msra.mxu0 %v2996
      %3020 = vmatprep.subr.bf16.mxu0 0
      %3021 = vmatpush1.bf16.msra.mxu0 %v2997
      %3022 = vmatprep.subr.bf16.mxu0 0
      %3023 = vmatpush1.bf16.msra.mxu0 0
      %3024 = vmatprep.subr.bf16.mxu0 0
      %3025 = vmatpush1.bf16.msra.mxu0 0
      %3026 = vmatprep.subr.bf16.mxu0 0
      %3027 = vmatpush1.bf16.msra.mxu0 0
      %3028 = vmatprep.subr.bf16.mxu0 0
      %3029 = vmatpush1.bf16.msra.mxu0 0
      %3030 = vmatprep.subr.bf16.mxu0 0
      %3031 = vmatpush1.bf16.msra.mxu0 0
      %3032 = vmatprep.subr.bf16.mxu0 0
      %3033 = vmatpush1.bf16.msra.mxu0 0
      %3034 = vmatprep.subr.bf16.mxu0 0
      %3035 = vmatpush1.bf16.msra.mxu0 0
      %3036 = vmatprep.subr.bf16.mxu0 0
      %3037 = vmatpush1.bf16.msra.mxu0 0
      %3038 = vmatprep.mubr.bf16.mxu0 0
      %3039 = vmatmul.mubr.bf16.gmra.mrb[0].mxu0 %v2937
      %v3040 = vpop.f32.mrb[0].mxu0
      %v3041 = vadd.f32 0.0, %v3040
      %v3042 = vpop.f32.mrb[0].mxu0
      %v3043 = vpop.f32.mrb[0].mxu0
      %v3044 = vadd.f32 0.0, %v3043
      %v3045 = vpop.f32.mrb[0].mxu0
      %3046 = vmatprep.mubr.bf16.mxu0 0
      %3047 = vmatmul.mubr.bf16.gmra.mrb[0].mxu0 %v2938
      %v3048 = vpop.f32.mrb[0].mxu0
      %v3049 = vadd.f32 0.0, %v3048
      %v3050 = vpop.f32.mrb[0].mxu0
      %v3051 = vpop.f32.mrb[0].mxu0
      %v3052 = vadd.f32 0.0, %v3051
      %v3053 = vpop.f32.mrb[0].mxu0
      %3054 = vmatprep.mubr.bf16.mxu0 0
      %3055 = vmatmul.mubr.bf16.gmra.mrb[0].mxu0 %v2939
      %v3056 = vpop.f32.mrb[0].mxu0
      %v3057 = vadd.f32 0.0, %v3056
      %v3058 = vpop.f32.mrb[0].mxu0
      %v3059 = vpop.f32.mrb[0].mxu0
      %v3060 = vadd.f32 0.0, %v3059
      %v3061 = vpop.f32.mrb[0].mxu0
      %3062 = vmatprep.mubr.bf16.mxu0 0
      %3063 = vmatmul.mubr.bf16.gmra.mrb[0].mxu0 %v2940
      %v3064 = vpop.f32.mrb[0].mxu0
      %v3065 = vadd.f32 0.0, %v3064
      %v3066 = vpop.f32.mrb[0].mxu0
      %v3067 = vpop.f32.mrb[0].mxu0
      %v3068 = vadd.f32 0.0, %v3067
      %v3069 = vpop.f32.mrb[0].mxu0
      %3070 = vdwg.mxu0
      %v3071 = vadd.f32 %v2921, %v3041
      %v3072 = vadd.f32 %v2922, %v3044
      %v3073 = vadd.f32 %v2923, %v3049
      %v3074 = vadd.f32 %v2924, %v3052
      %v3075 = vadd.f32 %v2925, %v3057
      %v3076 = vadd.f32 %v2926, %v3060
      %v3077 = vadd.f32 %v2927, %v3065
      %v3078 = vadd.f32 %v2928, %v3068
      %s3079 = scalar_lea.vmem %s204, 128
      %3080 = vst [vmem:[%s3079] sm:$0xff] %v3071
      %3081 = vst [vmem:[%s3079 + $0x8] sm:$0xff] %v3072
      %3082 = vst [vmem:[%s3079 + $0x10] sm:$0xff] %v3073
      %3083 = vst [vmem:[%s3079 + $0x18] sm:$0xff] %v3074
      %3084 = vst [vmem:[%s3079 + $0x20] sm:$0xff] %v3075
      %3085 = vst [vmem:[%s3079 + $0x28] sm:$0xff] %v3076
      %3086 = vst [vmem:[%s3079 + $0x30] sm:$0xff] %v3077
      %3087 = vst [vmem:[%s3079 + $0x38] sm:$0xff] %v3078
      %v3088 = vadd.f32 %v3071, %v3072
      %v3089 = vadd.f32 %v3088, %v3073
      %v3090 = vadd.f32 %v3089, %v3074
      %v3091 = vadd.f32 %v3090, %v3075
      %v3092 = vadd.f32 %v3091, %v3076
      %v3093 = vadd.f32 %v3092, %v3077
      %v3094 = vadd.f32 %v3093, %v3078
      %v3095 = vrot.slane %v3094, 4
      %v3096 = vadd.f32 %v3094, %v3095
      %v3097 = vrot.slane %v3096, 2
      %v3098 = vadd.f32 %v3096, %v3097
      %v3099 = vrot.slane %v3098, 1
      %v3100 = vadd.f32 %v3098, %v3099
      %v3101 = vadd.f32 %v2471, %v3100
      %v3102 = vmul.f32 %v3071, %v3071
      %v3103 = vmul.f32 %v3072, %v3072
      %v3104 = vmul.f32 %v3073, %v3073
      %v3105 = vmul.f32 %v3074, %v3074
      %v3106 = vmul.f32 %v3075, %v3075
      %v3107 = vmul.f32 %v3076, %v3076
      %v3108 = vmul.f32 %v3077, %v3077
      %v3109 = vmul.f32 %v3078, %v3078
      %v3110 = vadd.f32 %v3102, %v3103
      %v3111 = vadd.f32 %v3110, %v3104
      %v3112 = vadd.f32 %v3111, %v3105
      %v3113 = vadd.f32 %v3112, %v3106
      %v3114 = vadd.f32 %v3113, %v3107
      %v3115 = vadd.f32 %v3114, %v3108
      %v3116 = vadd.f32 %v3115, %v3109
      %v3117 = vrot.slane %v3116, 4
      %v3118 = vadd.f32 %v3116, %v3117
      %v3119 = vrot.slane %v3118, 2
      %v3120 = vadd.f32 %v3118, %v3119
      %v3121 = vrot.slane %v3120, 1
      %v3122 = vadd.f32 %v3120, %v3121
      %v3123 = vadd.f32 %v2493, %v3122
      %v3124 = vld [vmem:[%s1228 + $0x1] sm:$0xff]
      %v3125 = vld [vmem:[%s1228 + $0x11] sm:$0xff]
      %v3126 = vld [vmem:[%s1228 + $0x21] sm:$0xff]
      %v3127 = vld [vmem:[%s1228 + $0x31] sm:$0xff]
      %v3128 = vld [vmem:[%s1228 + $0x41] sm:$0xff]
      %v3129 = vld [vmem:[%s1228 + $0x51] sm:$0xff]
      %v3130 = vld [vmem:[%s1228 + $0x61] sm:$0xff]
      %v3131 = vld [vmem:[%s1228 + $0x71] sm:$0xff]
      %v3132 = vpack.c.bf16 %v3125, %v3124
      %v3133 = vpack.c.bf16 %v3127, %v3126
      %v3134 = vpack.c.bf16 %v3129, %v3128
      %v3135 = vpack.c.bf16 %v3131, %v3130
      %s3136 = scalar_lea.vmem %s2, 640
      %v3137 = vld [vmem:[%s3136] sm:$0xf]
      %v3138 = vld [vmem:[%s3136 + $0x4] sm:$0xf]
      %v3139 = vld [vmem:[%s3136 + $0x8] sm:$0xf]
      %v3140 = vld [vmem:[%s3136 + $0xc] sm:$0xf]
      %v3141 = vld [vmem:[%s3136 + $0x10] sm:$0xf]
      %v3142 = vld [vmem:[%s3136 + $0x14] sm:$0xf]
      %v3143 = vld [vmem:[%s3136 + $0x18] sm:$0xf]
      %v3144 = vld [vmem:[%s3136 + $0x1c] sm:$0xf]
      %v3145 = vld [vmem:[%s3136 + $0x20] sm:$0xf]
      %v3146 = vld [vmem:[%s3136 + $0x24] sm:$0xf]
      %v3147 = vld [vmem:[%s3136 + $0x28] sm:$0xf]
      %v3148 = vld [vmem:[%s3136 + $0x2c] sm:$0xf]
      %v3149 = vld [vmem:[%s3136 + $0x30] sm:$0xf]
      %v3150 = vld [vmem:[%s3136 + $0x34] sm:$0xf]
      %v3151 = vld [vmem:[%s3136 + $0x38] sm:$0xf]
      %v3152 = vld [vmem:[%s3136 + $0x3c] sm:$0xf]
      %v3153 = vld [vmem:[%s1228 + $0x2] sm:$0xff]
      %v3154 = vld [vmem:[%s1228 + $0x12] sm:$0xff]
      %v3155 = vld [vmem:[%s1228 + $0x22] sm:$0xff]
      %v3156 = vld [vmem:[%s1228 + $0x32] sm:$0xff]
      %v3157 = vld [vmem:[%s1228 + $0x42] sm:$0xff]
      %v3158 = vld [vmem:[%s1228 + $0x52] sm:$0xff]
      %v3159 = vld [vmem:[%s1228 + $0x62] sm:$0xff]
      %v3160 = vld [vmem:[%s1228 + $0x72] sm:$0xff]
      %v3161 = vpack.c.bf16 %v3154, %v3153
      %v3162 = vpack.c.bf16 %v3156, %v3155
      %v3163 = vpack.c.bf16 %v3158, %v3157
      %v3164 = vpack.c.bf16 %v3160, %v3159
      %s3165 = scalar_lea.vmem %s2, 512
      %v3166 = vld [vmem:[%s3165] sm:$0xf]
      %v3167 = vld [vmem:[%s3165 + $0x4] sm:$0xf]
      %v3168 = vld [vmem:[%s3165 + $0x8] sm:$0xf]
      %v3169 = vld [vmem:[%s3165 + $0xc] sm:$0xf]
      %v3170 = vld [vmem:[%s3165 + $0x10] sm:$0xf]
      %v3171 = vld [vmem:[%s3165 + $0x14] sm:$0xf]
      %v3172 = vld [vmem:[%s3165 + $0x18] sm:$0xf]
      %v3173 = vld [vmem:[%s3165 + $0x1c] sm:$0xf]
      %v3174 = vld [vmem:[%s3165 + $0x20] sm:$0xf]
      %v3175 = vld [vmem:[%s3165 + $0x24] sm:$0xf]
      %v3176 = vld [vmem:[%s3165 + $0x28] sm:$0xf]
      %v3177 = vld [vmem:[%s3165 + $0x2c] sm:$0xf]
      %v3178 = vld [vmem:[%s3165 + $0x30] sm:$0xf]
      %v3179 = vld [vmem:[%s3165 + $0x34] sm:$0xf]
      %v3180 = vld [vmem:[%s3165 + $0x38] sm:$0xf]
      %v3181 = vld [vmem:[%s3165 + $0x3c] sm:$0xf]
      %v3198 = vunpack.c.l.b16 %v3166
      %v3199 = vunpack.c.l.b16 %v3167
      %v3200 = vunpack.c.l.b16 %v3168
      %v3201 = vunpack.c.l.b16 %v3169
      %v3202 = vunpack.c.l.b16 %v3170
      %v3203 = vunpack.c.l.b16 %v3171
      %v3204 = vunpack.c.l.b16 %v3172
      %v3205 = vunpack.c.l.b16 %v3173
      %v3206 = vunpack.c.l.b16 %v3174
      %v3207 = vunpack.c.l.b16 %v3175
      %v3208 = vunpack.c.l.b16 %v3176
      %v3209 = vunpack.c.l.b16 %v3177
      %v3210 = vunpack.c.l.b16 %v3178
      %v3211 = vunpack.c.l.b16 %v3179
      %v3212 = vunpack.c.l.b16 %v3180
      %v3213 = vunpack.c.l.b16 %v3181
      %v3214 = vpack.c.b16 %v3199, %v3198
      %v3215 = vpack.c.b16 %v3201, %v3200
      %v3216 = vpack.c.b16 %v3203, %v3202
      %v3217 = vpack.c.b16 %v3205, %v3204
      %v3218 = vpack.c.b16 %v3207, %v3206
      %v3219 = vpack.c.b16 %v3209, %v3208
      %v3220 = vpack.c.b16 %v3211, %v3210
      %v3221 = vpack.c.b16 %v3213, %v3212
      %3230 = vmatprep.subr.bf16.mxu0 0
      %3231 = vmatpush1.bf16.msra.mxu0 %v3214
      %3232 = vmatprep.subr.bf16.mxu0 0
      %3233 = vmatpush1.bf16.msra.mxu0 %v3215
      %3234 = vmatprep.subr.bf16.mxu0 0
      %3235 = vmatpush1.bf16.msra.mxu0 %v3216
      %3236 = vmatprep.subr.bf16.mxu0 0
      %3237 = vmatpush1.bf16.msra.mxu0 %v3217
      %3238 = vmatprep.subr.bf16.mxu0 0
      %3239 = vmatpush1.bf16.msra.mxu0 %v3218
      %3240 = vmatprep.subr.bf16.mxu0 0
      %3241 = vmatpush1.bf16.msra.mxu0 %v3219
      %3242 = vmatprep.subr.bf16.mxu0 0
      %3243 = vmatpush1.bf16.msra.mxu0 %v3220
      %3244 = vmatprep.subr.bf16.mxu0 0
      %3245 = vmatpush1.bf16.msra.mxu0 %v3221
      %3246 = vmatprep.subr.bf16.mxu0 0
      %3247 = vmatpush1.bf16.msra.mxu0 0
      %3248 = vmatprep.subr.bf16.mxu0 0
      %3249 = vmatpush1.bf16.msra.mxu0 0
      %3250 = vmatprep.subr.bf16.mxu0 0
      %3251 = vmatpush1.bf16.msra.mxu0 0
      %3252 = vmatprep.subr.bf16.mxu0 0
      %3253 = vmatpush1.bf16.msra.mxu0 0
      %3254 = vmatprep.subr.bf16.mxu0 0
      %3255 = vmatpush1.bf16.msra.mxu0 0
      %3256 = vmatprep.subr.bf16.mxu0 0
      %3257 = vmatpush1.bf16.msra.mxu0 0
      %3258 = vmatprep.subr.bf16.mxu0 0
      %3259 = vmatpush1.bf16.msra.mxu0 0
      %3260 = vmatprep.subr.bf16.mxu0 0
      %3261 = vmatpush1.bf16.msra.mxu0 0
      %3262 = vmatprep.mubr.bf16.mxu0 0
      %3263 = vmatmul.mubr.bf16.gmra.mrb[0].mxu0 %v3161
      %v3264 = vpop.f32.mrb[0].mxu0
      %v3265 = vadd.f32 0.0, %v3264
      %v3266 = vpop.f32.mrb[0].mxu0
      %v3267 = vpop.f32.mrb[0].mxu0
      %v3268 = vadd.f32 0.0, %v3267
      %v3269 = vpop.f32.mrb[0].mxu0
      %3270 = vmatprep.mubr.bf16.mxu0 0
      %3271 = vmatmul.mubr.bf16.gmra.mrb[0].mxu0 %v3162
      %v3272 = vpop.f32.mrb[0].mxu0
      %v3273 = vadd.f32 0.0, %v3272
      %v3274 = vpop.f32.mrb[0].mxu0
      %v3275 = vpop.f32.mrb[0].mxu0
      %v3276 = vadd.f32 0.0, %v3275
      %v3277 = vpop.f32.mrb[0].mxu0
      %3278 = vmatprep.mubr.bf16.mxu0 0
      %3279 = vmatmul.mubr.bf16.gmra.mrb[0].mxu0 %v3163
      %v3280 = vpop.f32.mrb[0].mxu0
      %v3281 = vadd.f32 0.0, %v3280
      %v3282 = vpop.f32.mrb[0].mxu0
      %v3283 = vpop.f32.mrb[0].mxu0
      %v3284 = vadd.f32 0.0, %v3283
      %v3285 = vpop.f32.mrb[0].mxu0
      %3286 = vmatprep.mubr.bf16.mxu0 0
      %3287 = vmatmul.mubr.bf16.gmra.mrb[0].mxu0 %v3164
      %v3288 = vpop.f32.mrb[0].mxu0
      %v3289 = vadd.f32 0.0, %v3288
      %v3290 = vpop.f32.mrb[0].mxu0
      %v3291 = vpop.f32.mrb[0].mxu0
      %v3292 = vadd.f32 0.0, %v3291
      %v3293 = vpop.f32.mrb[0].mxu0
      %3294 = vdwg.mxu0
      %v3311 = vunpack.c.l.b16 %v3137
      %v3312 = vunpack.c.l.b16 %v3138
      %v3313 = vunpack.c.l.b16 %v3139
      %v3314 = vunpack.c.l.b16 %v3140
      %v3315 = vunpack.c.l.b16 %v3141
      %v3316 = vunpack.c.l.b16 %v3142
      %v3317 = vunpack.c.l.b16 %v3143
      %v3318 = vunpack.c.l.b16 %v3144
      %v3319 = vunpack.c.l.b16 %v3145
      %v3320 = vunpack.c.l.b16 %v3146
      %v3321 = vunpack.c.l.b16 %v3147
      %v3322 = vunpack.c.l.b16 %v3148
      %v3323 = vunpack.c.l.b16 %v3149
      %v3324 = vunpack.c.l.b16 %v3150
      %v3325 = vunpack.c.l.b16 %v3151
      %v3326 = vunpack.c.l.b16 %v3152
      %v3327 = vpack.c.b16 %v3312, %v3311
      %v3328 = vpack.c.b16 %v3314, %v3313
      %v3329 = vpack.c.b16 %v3316, %v3315
      %v3330 = vpack.c.b16 %v3318, %v3317
      %v3331 = vpack.c.b16 %v3320, %v3319
      %v3332 = vpack.c.b16 %v3322, %v3321
      %v3333 = vpack.c.b16 %v3324, %v3323
      %v3334 = vpack.c.b16 %v3326, %v3325
      %3343 = vmatprep.subr.bf16.mxu0 0
      %3344 = vmatpush1.bf16.msra.mxu0 %v3327
      %3345 = vmatprep.subr.bf16.mxu0 0
      %3346 = vmatpush1.bf16.msra.mxu0 %v3328
      %3347 = vmatprep.subr.bf16.mxu0 0
      %3348 = vmatpush1.bf16.msra.mxu0 %v3329
      %3349 = vmatprep.subr.bf16.mxu0 0
      %3350 = vmatpush1.bf16.msra.mxu0 %v3330
      %3351 = vmatprep.subr.bf16.mxu0 0
      %3352 = vmatpush1.bf16.msra.mxu0 %v3331
      %3353 = vmatprep.subr.bf16.mxu0 0
      %3354 = vmatpush1.bf16.msra.mxu0 %v3332
      %3355 = vmatprep.subr.bf16.mxu0 0
      %3356 = vmatpush1.bf16.msra.mxu0 %v3333
      %3357 = vmatprep.subr.bf16.mxu0 0
      %3358 = vmatpush1.bf16.msra.mxu0 %v3334
      %3359 = vmatprep.subr.bf16.mxu0 0
      %3360 = vmatpush1.bf16.msra.mxu0 0
      %3361 = vmatprep.subr.bf16.mxu0 0
      %3362 = vmatpush1.bf16.msra.mxu0 0
      %3363 = vmatprep.subr.bf16.mxu0 0
      %3364 = vmatpush1.bf16.msra.mxu0 0
      %3365 = vmatprep.subr.bf16.mxu0 0
      %3366 = vmatpush1.bf16.msra.mxu0 0
      %3367 = vmatprep.subr.bf16.mxu0 0
      %3368 = vmatpush1.bf16.msra.mxu0 0
      %3369 = vmatprep.subr.bf16.mxu0 0
      %3370 = vmatpush1.bf16.msra.mxu0 0
      %3371 = vmatprep.subr.bf16.mxu0 0
      %3372 = vmatpush1.bf16.msra.mxu0 0
      %3373 = vmatprep.subr.bf16.mxu0 0
      %3374 = vmatpush1.bf16.msra.mxu0 0
      %3375 = vmatprep.mubr.bf16.mxu0 0
      %3376 = vmatmul.mubr.bf16.gmra.mrb[0].mxu0 %v3132
      %v3377 = vpop.f32.mrb[0].mxu0
      %v3378 = vadd.f32 %v3265, %v3377
      %v3379 = vpop.f32.mrb[0].mxu0
      %v3380 = vpop.f32.mrb[0].mxu0
      %v3381 = vadd.f32 %v3268, %v3380
      %v3382 = vpop.f32.mrb[0].mxu0
      %3383 = vmatprep.mubr.bf16.mxu0 0
      %3384 = vmatmul.mubr.bf16.gmra.mrb[0].mxu0 %v3133
      %v3385 = vpop.f32.mrb[0].mxu0
      %v3386 = vadd.f32 %v3273, %v3385
      %v3387 = vpop.f32.mrb[0].mxu0
      %v3388 = vpop.f32.mrb[0].mxu0
      %v3389 = vadd.f32 %v3276, %v3388
      %v3390 = vpop.f32.mrb[0].mxu0
      %3391 = vmatprep.mubr.bf16.mxu0 0
      %3392 = vmatmul.mubr.bf16.gmra.mrb[0].mxu0 %v3134
      %v3393 = vpop.f32.mrb[0].mxu0
      %v3394 = vadd.f32 %v3281, %v3393
      %v3395 = vpop.f32.mrb[0].mxu0
      %v3396 = vpop.f32.mrb[0].mxu0
      %v3397 = vadd.f32 %v3284, %v3396
      %v3398 = vpop.f32.mrb[0].mxu0
      %3399 = vmatprep.mubr.bf16.mxu0 0
      %3400 = vmatmul.mubr.bf16.gmra.mrb[0].mxu0 %v3135
      %v3401 = vpop.f32.mrb[0].mxu0
      %v3402 = vadd.f32 %v3289, %v3401
      %v3403 = vpop.f32.mrb[0].mxu0
      %v3404 = vpop.f32.mrb[0].mxu0
      %v3405 = vadd.f32 %v3292, %v3404
      %v3406 = vpop.f32.mrb[0].mxu0
      %3407 = vdwg.mxu0
      %v3408 = vld [vmem:[%s2778 + $0x1] sm:$0xff]
      %v3409 = vld [vmem:[%s2778 + $0x11] sm:$0xff]
      %v3410 = vld [vmem:[%s2778 + $0x21] sm:$0xff]
      %v3411 = vld [vmem:[%s2778 + $0x31] sm:$0xff]
      %v3412 = vld [vmem:[%s2778 + $0x41] sm:$0xff]
      %v3413 = vld [vmem:[%s2778 + $0x51] sm:$0xff]
      %v3414 = vld [vmem:[%s2778 + $0x61] sm:$0xff]
      %v3415 = vld [vmem:[%s2778 + $0x71] sm:$0xff]
      %v3416 = vpack.c.bf16 %v3409, %v3408
      %v3417 = vpack.c.bf16 %v3411, %v3410
      %v3418 = vpack.c.bf16 %v3413, %v3412
      %v3419 = vpack.c.bf16 %v3415, %v3414
      %s3420 = scalar_lea.vmem %s2, 128
      %v3421 = vld [vmem:[%s3420] sm:$0xf]
      %v3422 = vld [vmem:[%s3420 + $0x4] sm:$0xf]
      %v3423 = vld [vmem:[%s3420 + $0x8] sm:$0xf]
      %v3424 = vld [vmem:[%s3420 + $0xc] sm:$0xf]
      %v3425 = vld [vmem:[%s3420 + $0x10] sm:$0xf]
      %v3426 = vld [vmem:[%s3420 + $0x14] sm:$0xf]
      %v3427 = vld [vmem:[%s3420 + $0x18] sm:$0xf]
      %v3428 = vld [vmem:[%s3420 + $0x1c] sm:$0xf]
      %v3429 = vld [vmem:[%s3420 + $0x20] sm:$0xf]
      %v3430 = vld [vmem:[%s3420 + $0x24] sm:$0xf]
      %v3431 = vld [vmem:[%s3420 + $0x28] sm:$0xf]
      %v3432 = vld [vmem:[%s3420 + $0x2c] sm:$0xf]
      %v3433 = vld [vmem:[%s3420 + $0x30] sm:$0xf]
      %v3434 = vld [vmem:[%s3420 + $0x34] sm:$0xf]
      %v3435 = vld [vmem:[%s3420 + $0x38] sm:$0xf]
      %v3436 = vld [vmem:[%s3420 + $0x3c] sm:$0xf]
      %v3453 = vunpack.c.l.b16 %v3421
      %v3454 = vunpack.c.l.b16 %v3422
      %v3455 = vunpack.c.l.b16 %v3423
      %v3456 = vunpack.c.l.b16 %v3424
      %v3457 = vunpack.c.l.b16 %v3425
      %v3458 = vunpack.c.l.b16 %v3426
      %v3459 = vunpack.c.l.b16 %v3427
      %v3460 = vunpack.c.l.b16 %v3428
      %v3461 = vunpack.c.l.b16 %v3429
      %v3462 = vunpack.c.l.b16 %v3430
      %v3463 = vunpack.c.l.b16 %v3431
      %v3464 = vunpack.c.l.b16 %v3432
      %v3465 = vunpack.c.l.b16 %v3433
      %v3466 = vunpack.c.l.b16 %v3434
      %v3467 = vunpack.c.l.b16 %v3435
      %v3468 = vunpack.c.l.b16 %v3436
      %v3469 = vpack.c.b16 %v3454, %v3453
      %v3470 = vpack.c.b16 %v3456, %v3455
      %v3471 = vpack.c.b16 %v3458, %v3457
      %v3472 = vpack.c.b16 %v3460, %v3459
      %v3473 = vpack.c.b16 %v3462, %v3461
      %v3474 = vpack.c.b16 %v3464, %v3463
      %v3475 = vpack.c.b16 %v3466, %v3465
      %v3476 = vpack.c.b16 %v3468, %v3467
      %3485 = vmatprep.subr.bf16.mxu0 0
      %3486 = vmatpush1.bf16.msra.mxu0 %v3469
      %3487 = vmatprep.subr.bf16.mxu0 0
      %3488 = vmatpush1.bf16.msra.mxu0 %v3470
      %3489 = vmatprep.subr.bf16.mxu0 0
      %3490 = vmatpush1.bf16.msra.mxu0 %v3471
      %3491 = vmatprep.subr.bf16.mxu0 0
      %3492 = vmatpush1.bf16.msra.mxu0 %v3472
      %3493 = vmatprep.subr.bf16.mxu0 0
      %3494 = vmatpush1.bf16.msra.mxu0 %v3473
      %3495 = vmatprep.subr.bf16.mxu0 0
      %3496 = vmatpush1.bf16.msra.mxu0 %v3474
      %3497 = vmatprep.subr.bf16.mxu0 0
      %3498 = vmatpush1.bf16.msra.mxu0 %v3475
      %3499 = vmatprep.subr.bf16.mxu0 0
      %3500 = vmatpush1.bf16.msra.mxu0 %v3476
      %3501 = vmatprep.subr.bf16.mxu0 0
      %3502 = vmatpush1.bf16.msra.mxu0 0
      %3503 = vmatprep.subr.bf16.mxu0 0
      %3504 = vmatpush1.bf16.msra.mxu0 0
      %3505 = vmatprep.subr.bf16.mxu0 0
      %3506 = vmatpush1.bf16.msra.mxu0 0
      %3507 = vmatprep.subr.bf16.mxu0 0
      %3508 = vmatpush1.bf16.msra.mxu0 0
      %3509 = vmatprep.subr.bf16.mxu0 0
      %3510 = vmatpush1.bf16.msra.mxu0 0
      %3511 = vmatprep.subr.bf16.mxu0 0
      %3512 = vmatpush1.bf16.msra.mxu0 0
      %3513 = vmatprep.subr.bf16.mxu0 0
      %3514 = vmatpush1.bf16.msra.mxu0 0
      %3515 = vmatprep.subr.bf16.mxu0 0
      %3516 = vmatpush1.bf16.msra.mxu0 0
      %3517 = vmatprep.mubr.bf16.mxu0 0
      %3518 = vmatmul.mubr.bf16.gmra.mrb[0].mxu0 %v3416
      %v3519 = vpop.f32.mrb[0].mxu0
      %v3520 = vadd.f32 0.0, %v3519
      %v3521 = vpop.f32.mrb[0].mxu0
      %v3522 = vpop.f32.mrb[0].mxu0
      %v3523 = vadd.f32 0.0, %v3522
      %v3524 = vpop.f32.mrb[0].mxu0
      %3525 = vmatprep.mubr.bf16.mxu0 0
      %3526 = vmatmul.mubr.bf16.gmra.mrb[0].mxu0 %v3417
      %v3527 = vpop.f32.mrb[0].mxu0
      %v3528 = vadd.f32 0.0, %v3527
      %v3529 = vpop.f32.mrb[0].mxu0
      %v3530 = vpop.f32.mrb[0].mxu0
      %v3531 = vadd.f32 0.0, %v3530
      %v3532 = vpop.f32.mrb[0].mxu0
      %3533 = vmatprep.mubr.bf16.mxu0 0
      %3534 = vmatmul.mubr.bf16.gmra.mrb[0].mxu0 %v3418
      %v3535 = vpop.f32.mrb[0].mxu0
      %v3536 = vadd.f32 0.0, %v3535
      %v3537 = vpop.f32.mrb[0].mxu0
      %v3538 = vpop.f32.mrb[0].mxu0
      %v3539 = vadd.f32 0.0, %v3538
      %v3540 = vpop.f32.mrb[0].mxu0
      %3541 = vmatprep.mubr.bf16.mxu0 0
      %3542 = vmatmul.mubr.bf16.gmra.mrb[0].mxu0 %v3419
      %v3543 = vpop.f32.mrb[0].mxu0
      %v3544 = vadd.f32 0.0, %v3543
      %v3545 = vpop.f32.mrb[0].mxu0
      %v3546 = vpop.f32.mrb[0].mxu0
      %v3547 = vadd.f32 0.0, %v3546
      %v3548 = vpop.f32.mrb[0].mxu0
      %3549 = vdwg.mxu0
      %v3550 = vadd.f32 %v3378, %v3520
      %v3551 = vadd.f32 %v3381, %v3523
      %v3552 = vadd.f32 %v3386, %v3528
      %v3553 = vadd.f32 %v3389, %v3531
      %v3554 = vadd.f32 %v3394, %v3536
      %v3555 = vadd.f32 %v3397, %v3539
      %v3556 = vadd.f32 %v3402, %v3544
      %v3557 = vadd.f32 %v3405, %v3547
      %v3558 = vld [vmem:[%s2778 + $0x2] sm:$0xff]
      %v3559 = vld [vmem:[%s2778 + $0x12] sm:$0xff]
      %v3560 = vld [vmem:[%s2778 + $0x22] sm:$0xff]
      %v3561 = vld [vmem:[%s2778 + $0x32] sm:$0xff]
      %v3562 = vld [vmem:[%s2778 + $0x42] sm:$0xff]
      %v3563 = vld [vmem:[%s2778 + $0x52] sm:$0xff]
      %v3564 = vld [vmem:[%s2778 + $0x62] sm:$0xff]
      %v3565 = vld [vmem:[%s2778 + $0x72] sm:$0xff]
      %v3566 = vpack.c.bf16 %v3559, %v3558
      %v3567 = vpack.c.bf16 %v3561, %v3560
      %v3568 = vpack.c.bf16 %v3563, %v3562
      %v3569 = vpack.c.bf16 %v3565, %v3564
      %v3570 = vld [vmem:[%s2] sm:$0xf]
      %v3571 = vld [vmem:[%s2 + $0x4] sm:$0xf]
      %v3572 = vld [vmem:[%s2 + $0x8] sm:$0xf]
      %v3573 = vld [vmem:[%s2 + $0xc] sm:$0xf]
      %v3574 = vld [vmem:[%s2 + $0x10] sm:$0xf]
      %v3575 = vld [vmem:[%s2 + $0x14] sm:$0xf]
      %v3576 = vld [vmem:[%s2 + $0x18] sm:$0xf]
      %v3577 = vld [vmem:[%s2 + $0x1c] sm:$0xf]
      %v3578 = vld [vmem:[%s2 + $0x20] sm:$0xf]
      %v3579 = vld [vmem:[%s2 + $0x24] sm:$0xf]
      %v3580 = vld [vmem:[%s2 + $0x28] sm:$0xf]
      %v3581 = vld [vmem:[%s2 + $0x2c] sm:$0xf]
      %v3582 = vld [vmem:[%s2 + $0x30] sm:$0xf]
      %v3583 = vld [vmem:[%s2 + $0x34] sm:$0xf]
      %v3584 = vld [vmem:[%s2 + $0x38] sm:$0xf]
      %v3585 = vld [vmem:[%s2 + $0x3c] sm:$0xf]
      %v3602 = vunpack.c.l.b16 %v3570
      %v3603 = vunpack.c.l.b16 %v3571
      %v3604 = vunpack.c.l.b16 %v3572
      %v3605 = vunpack.c.l.b16 %v3573
      %v3606 = vunpack.c.l.b16 %v3574
      %v3607 = vunpack.c.l.b16 %v3575
      %v3608 = vunpack.c.l.b16 %v3576
      %v3609 = vunpack.c.l.b16 %v3577
      %v3610 = vunpack.c.l.b16 %v3578
      %v3611 = vunpack.c.l.b16 %v3579
      %v3612 = vunpack.c.l.b16 %v3580
      %v3613 = vunpack.c.l.b16 %v3581
      %v3614 = vunpack.c.l.b16 %v3582
      %v3615 = vunpack.c.l.b16 %v3583
      %v3616 = vunpack.c.l.b16 %v3584
      %v3617 = vunpack.c.l.b16 %v3585
      %v3618 = vpack.c.b16 %v3603, %v3602
      %v3619 = vpack.c.b16 %v3605, %v3604
      %v3620 = vpack.c.b16 %v3607, %v3606
      %v3621 = vpack.c.b16 %v3609, %v3608
      %v3622 = vpack.c.b16 %v3611, %v3610
      %v3623 = vpack.c.b16 %v3613, %v3612
      %v3624 = vpack.c.b16 %v3615, %v3614
      %v3625 = vpack.c.b16 %v3617, %v3616
      %3634 = vmatprep.subr.bf16.mxu0 0
      %3635 = vmatpush1.bf16.msra.mxu0 %v3618
      %3636 = vmatprep.subr.bf16.mxu0 0
      %3637 = vmatpush1.bf16.msra.mxu0 %v3619
      %3638 = vmatprep.subr.bf16.mxu0 0
      %3639 = vmatpush1.bf16.msra.mxu0 %v3620
      %3640 = vmatprep.subr.bf16.mxu0 0
      %3641 = vmatpush1.bf16.msra.mxu0 %v3621
      %3642 = vmatprep.subr.bf16.mxu0 0
      %3643 = vmatpush1.bf16.msra.mxu0 %v3622
      %3644 = vmatprep.subr.bf16.mxu0 0
      %3645 = vmatpush1.bf16.msra.mxu0 %v3623
      %3646 = vmatprep.subr.bf16.mxu0 0
      %3647 = vmatpush1.bf16.msra.mxu0 %v3624
      %3648 = vmatprep.subr.bf16.mxu0 0
      %3649 = vmatpush1.bf16.msra.mxu0 %v3625
      %3650 = vmatprep.subr.bf16.mxu0 0
      %3651 = vmatpush1.bf16.msra.mxu0 0
      %3652 = vmatprep.subr.bf16.mxu0 0
      %3653 = vmatpush1.bf16.msra.mxu0 0
      %3654 = vmatprep.subr.bf16.mxu0 0
      %3655 = vmatpush1.bf16.msra.mxu0 0
      %3656 = vmatprep.subr.bf16.mxu0 0
      %3657 = vmatpush1.bf16.msra.mxu0 0
      %3658 = vmatprep.subr.bf16.mxu0 0
      %3659 = vmatpush1.bf16.msra.mxu0 0
      %3660 = vmatprep.subr.bf16.mxu0 0
      %3661 = vmatpush1.bf16.msra.mxu0 0
      %3662 = vmatprep.subr.bf16.mxu0 0
      %3663 = vmatpush1.bf16.msra.mxu0 0
      %3664 = vmatprep.subr.bf16.mxu0 0
      %3665 = vmatpush1.bf16.msra.mxu0 0
      %3666 = vmatprep.mubr.bf16.mxu0 0
      %3667 = vmatmul.mubr.bf16.gmra.mrb[0].mxu0 %v3566
      %v3668 = vpop.f32.mrb[0].mxu0
      %v3669 = vadd.f32 0.0, %v3668
      %v3670 = vpop.f32.mrb[0].mxu0
      %v3671 = vpop.f32.mrb[0].mxu0
      %v3672 = vadd.f32 0.0, %v3671
      %v3673 = vpop.f32.mrb[0].mxu0
      %3674 = vmatprep.mubr.bf16.mxu0 0
      %3675 = vmatmul.mubr.bf16.gmra.mrb[0].mxu0 %v3567
      %v3676 = vpop.f32.mrb[0].mxu0
      %v3677 = vadd.f32 0.0, %v3676
      %v3678 = vpop.f32.mrb[0].mxu0
      %v3679 = vpop.f32.mrb[0].mxu0
      %v3680 = vadd.f32 0.0, %v3679
      %v3681 = vpop.f32.mrb[0].mxu0
      %3682 = vmatprep.mubr.bf16.mxu0 0
      %3683 = vmatmul.mubr.bf16.gmra.mrb[0].mxu0 %v3568
      %v3684 = vpop.f32.mrb[0].mxu0
      %v3685 = vadd.f32 0.0, %v3684
      %v3686 = vpop.f32.mrb[0].mxu0
      %v3687 = vpop.f32.mrb[0].mxu0
      %v3688 = vadd.f32 0.0, %v3687
      %v3689 = vpop.f32.mrb[0].mxu0
      %3690 = vmatprep.mubr.bf16.mxu0 0
      %3691 = vmatmul.mubr.bf16.gmra.mrb[0].mxu0 %v3569
      %v3692 = vpop.f32.mrb[0].mxu0
      %v3693 = vadd.f32 0.0, %v3692
      %v3694 = vpop.f32.mrb[0].mxu0
      %v3695 = vpop.f32.mrb[0].mxu0
      %v3696 = vadd.f32 0.0, %v3695
      %v3697 = vpop.f32.mrb[0].mxu0
      %3698 = vdwg.mxu0
      %v3699 = vadd.f32 %v3550, %v3669
      %v3700 = vadd.f32 %v3551, %v3672
      %v3701 = vadd.f32 %v3552, %v3677
      %v3702 = vadd.f32 %v3553, %v3680
      %v3703 = vadd.f32 %v3554, %v3685
      %v3704 = vadd.f32 %v3555, %v3688
      %v3705 = vadd.f32 %v3556, %v3693
      %v3706 = vadd.f32 %v3557, %v3696
      %s3707 = scalar_lea.vmem %s204, 192
      %3708 = vst [vmem:[%s3707] sm:$0xff] %v3699
      %3709 = vst [vmem:[%s3707 + $0x8] sm:$0xff] %v3700
      %3710 = vst [vmem:[%s3707 + $0x10] sm:$0xff] %v3701
      %3711 = vst [vmem:[%s3707 + $0x18] sm:$0xff] %v3702
      %3712 = vst [vmem:[%s3707 + $0x20] sm:$0xff] %v3703
      %3713 = vst [vmem:[%s3707 + $0x28] sm:$0xff] %v3704
      %3714 = vst [vmem:[%s3707 + $0x30] sm:$0xff] %v3705
      %3715 = vst [vmem:[%s3707 + $0x38] sm:$0xff] %v3706
      %v3716 = vadd.f32 %v3699, %v3700
      %v3717 = vadd.f32 %v3716, %v3701
      %v3718 = vadd.f32 %v3717, %v3702
      %v3719 = vadd.f32 %v3718, %v3703
      %v3720 = vadd.f32 %v3719, %v3704
      %v3721 = vadd.f32 %v3720, %v3705
      %v3722 = vadd.f32 %v3721, %v3706
      %v3723 = vrot.slane %v3722, 4
      %v3724 = vadd.f32 %v3722, %v3723
      %v3725 = vrot.slane %v3724, 2
      %v3726 = vadd.f32 %v3724, %v3725
      %v3727 = vrot.slane %v3726, 1
      %v3728 = vadd.f32 %v3726, %v3727
      %v3729 = vadd.f32 %v3101, %v3728
      %v3730 = vmul.f32 %v3699, %v3699
      %v3731 = vmul.f32 %v3700, %v3700
      %v3732 = vmul.f32 %v3701, %v3701
      %v3733 = vmul.f32 %v3702, %v3702
      %v3734 = vmul.f32 %v3703, %v3703
      %v3735 = vmul.f32 %v3704, %v3704
      %v3736 = vmul.f32 %v3705, %v3705
      %v3737 = vmul.f32 %v3706, %v3706
      %v3738 = vadd.f32 %v3730, %v3731
      %v3739 = vadd.f32 %v3738, %v3732
      %v3740 = vadd.f32 %v3739, %v3733
      %v3741 = vadd.f32 %v3740, %v3734
      %v3742 = vadd.f32 %v3741, %v3735
      %v3743 = vadd.f32 %v3742, %v3736
      %v3744 = vadd.f32 %v3743, %v3737
      %v3745 = vrot.slane %v3744, 4
      %v3746 = vadd.f32 %v3744, %v3745
      %v3747 = vrot.slane %v3746, 2
      %v3748 = vadd.f32 %v3746, %v3747
      %v3749 = vrot.slane %v3748, 1
      %v3750 = vadd.f32 %v3748, %v3749
      %v3751 = vadd.f32 %v3123, %v3750
      %3752 = vst [vmem:[%s208] sm:$0x1] %v3729
      %3753 = vst [vmem:[%s208 + $0x1] sm:$0x1] %v3751
      %p3754 = scmp.lt.s32.totalorder %s16, 1
      %s3755 = scalar_select %p3754, %s16, 1
      %s3756 = smul.addr %s3755, 32
      %s3757 = smul.addr %s3756, 8
      %s3758 = scalar_lea.vmem %s3, %s3757
      %p3759 = scmp.lt.s32.totalorder %s16, 1
      %s3760 = scalar_select %p3759, %s16, 1
      %s3761 = smul.addr %s3760, 2
      %s3762 = scalar_lea.vmem %s4, %s3761
      // Predicated region
      $region33: #{unet_block_inner.2} parent=31 // pred_check
        %p3763 = pneg %p102
      $region34: #{unet_block_inner.2} parent=31 // pred_check_branch
        %3765 = sbr.rel (%p3763) target = $region36
      $region35: #{unet_block_inner.2} parent=31 // pred_region
        _
      $region36: #{unet_block_inner.2} parent=31 // pred_fallthru
        _
      // Predicated region
      $region37: #{unet_block_inner.2} parent=31 // pred_check
        %p3766 = pneg %p128
      $region38: #{unet_block_inner.2} parent=31 // pred_check_branch
        %3768 = sbr.rel (%p3766) target = $region40
      $region39: #{unet_block_inner.2} parent=31 // pred_region
        _
      $region40: #{unet_block_inner.2} parent=31 // pred_fallthru
        _
    $region32: #{unet_block_inner.2} parent=5 // pred_fallthru
      _
    %p3769 = scmp.le.s32.totalorder 2, %s11
    // Predicated region
    $region41: #{unet_block_inner.2} parent=5 // pred_check
      %p3770 = pneg %p3769
    $region42: #{unet_block_inner.2} parent=5 // pred_check_branch
      %3772 = sbr.rel (%p3770) target = $region44
    $region43: #{unet_block_inner.2} parent=5 // pred_region
      %s3773 = ssub.s32 %s11, 2
      // Predicated region
      $region45: #{unet_block_inner.2} parent=43 // pred_check
        %p3774 = pneg %p108
      $region46: #{unet_block_inner.2} parent=43 // pred_check_branch
        %3776 = sbr.rel (%p3774) target = $region48
      $region47: #{unet_block_inner.2} parent=43 // pred_region
        %p3777 = scmp.lt.s32.totalorder %s17, 1
        %s3778 = scalar_select %p3777, %s17, 1
        %s3779 = smul.addr %s3778, 32
        %s3780 = smul.addr %s3779, 8
        %s3781 = scalar_lea.vmem %s3, %s3780
      $region48: #{unet_block_inner.2} parent=43 // pred_fallthru
        _
      // Predicated region
      $region49: #{unet_block_inner.2} parent=43 // pred_check
        %p3782 = pneg %p134
      $region50: #{unet_block_inner.2} parent=43 // pred_check_branch
        %3784 = sbr.rel (%p3782) target = $region52
      $region51: #{unet_block_inner.2} parent=43 // pred_region
        %p3785 = scmp.lt.s32.totalorder %s17, 1
        %s3786 = scalar_select %p3785, %s17, 1
        %s3787 = smul.addr %s3786, 2
        %s3788 = scalar_lea.vmem %s4, %s3787
      $region52: #{unet_block_inner.2} parent=43 // pred_fallthru
        _
    $region44: #{unet_block_inner.2} parent=5 // pred_fallthru
      _
  $region6: #{unet_block_inner.2} parent=0 // loop_footer
    %s15 = sadd.s32 1, %s11
  $region7: #{unet_block_inner.2} parent=0 // loop_footer_branch
    %10 = sbr.rel target = $region3
  $region8: #{unet_block_inner.2} parent=0 // loop_exit
    _

</llo_original>
